<compile_context>
chip_gen: v7x
topology: tpu7x:2x2x1
jax: 0.10.0
libtpu: 0.0.40
codegen_flags: <defaults>
</compile_context>

<pallas_src>
import functools

import jax
import jax.numpy as jnp
from jax.experimental import pallas as pl
from jax.experimental.pallas import tpu as pltpu


# ----------------------------- helpers -----------------------------

def _row_tile(m):
    """Largest row tile (multiple of 8) dividing m, preferring >=2 grid steps."""
    if m % 8 != 0:
        return m
    target = max(8, min(256, m // 2))
    tm = (target // 8) * 8
    while m % tm:
        tm -= 8
    return max(tm, 8)


# ----------------------------- Pallas kernels -----------------------------

def _fused_mha_kernel(q_ref, kv_ref, bias_ref, wq_ref, bq_ref, wkv_ref,
                      bkv_ref, wo_ref, bo_ref, out_ref, att_ref,
                      *, n_heads, qkv_dim):
    """Whole MHA block for one batch element, entirely in VMEM.

    q_ref:   (Lq, Dq)      kv_ref: (Lk, Dk)      bias_ref: (Lq, Lk) additive mask
    wq_ref:  (Dq, H*d)     wkv_ref: (Dk, 2*H*d)  wo_ref:  (H*d, Dq)
    out_ref: (Lq, Dq)      att_ref: (H, Lq, Lk)
    """
    q_in = q_ref[...].astype(jnp.float32)
    kv_in = kv_ref[...].astype(jnp.float32)
    bias = bias_ref[...].astype(jnp.float32)
    hd = n_heads * qkv_dim
    scale = 1.0 / jnp.sqrt(jnp.float32(qkv_dim))

    # Projections (K and V fused into one lane-dense matmul).
    qp = (jnp.dot(q_in, wq_ref[...], preferred_element_type=jnp.float32)
          + bq_ref[...]) * scale                                    # (Lq, H*d)
    kvp = jnp.dot(kv_in, wkv_ref[...],
                  preferred_element_type=jnp.float32) + bkv_ref[...]  # (Lk, 2*H*d)
    kp = kvp[:, :hd]
    vp = kvp[:, hd:]

    # Per-head scaled dot-product attention (static unroll; H is small).
    ctx_parts = []
    for h in range(n_heads):
        sl = slice(h * qkv_dim, (h + 1) * qkv_dim)
        qh = qp[:, sl]                                # (Lq, d)
        kh = kp[:, sl]                                # (Lk, d)
        vh = vp[:, sl]                                # (Lk, d)
        s = jnp.dot(qh, kh.T, preferred_element_type=jnp.float32) + bias
        m = jnp.max(s, axis=-1, keepdims=True)
        e = jnp.exp(s - m)
        a = e / jnp.sum(e, axis=-1, keepdims=True)    # (Lq, Lk)
        att_ref[h] = a.astype(att_ref.dtype)
        ctx_parts.append(jnp.dot(a, vh, preferred_element_type=jnp.float32))
    ctx = jnp.concatenate(ctx_parts, axis=-1)         # (Lq, H*d)

    # Output projection + residual add + LayerNorm (weight=1, bias=0, eps=1e-5).
    out = jnp.dot(ctx, wo_ref[...], preferred_element_type=jnp.float32) + bo_ref[...]
    x = out + q_in
    mu = jnp.mean(x, axis=-1, keepdims=True)
    var = jnp.mean((x - mu) ** 2, axis=-1, keepdims=True)
    out_ref[...] = ((x - mu) * jax.lax.rsqrt(var + 1e-5)).astype(out_ref.dtype)


def _ffn_kernel(x_ref, w1_ref, b1_ref, w2_ref, b2_ref, o_ref):
    """Fused position-wise FFN: ReLU(x@w1+b1)@w2+b2, residual add + LayerNorm."""
    x = x_ref[...].astype(jnp.float32)
    h = jnp.maximum(
        jnp.dot(x, w1_ref[...], preferred_element_type=jnp.float32) + b1_ref[...],
        0.0)
    y = jnp.dot(h, w2_ref[...], preferred_element_type=jnp.float32) + b2_ref[...]
    z = y + x
    mu = jnp.mean(z, axis=-1, keepdims=True)
    var = jnp.mean((z - mu) ** 2, axis=-1, keepdims=True)
    o_ref[...] = ((z - mu) * jax.lax.rsqrt(var + 1e-5)).astype(o_ref.dtype)


def _linear_kernel(x_ref, w_ref, b_ref, o_ref, *, relu):
    x = x_ref[...].astype(jnp.float32)
    y = jnp.dot(x, w_ref[...], preferred_element_type=jnp.float32) + b_ref[...]
    if relu:
        y = jnp.maximum(y, 0.0)
    o_ref[...] = y.astype(o_ref.dtype)


# ----------------------------- Pallas wrappers -----------------------------

def pallas_mha(p, q, kv, mask_bias, n_heads, qkv_dim):
    """Fused multi-head attention block.

    q: (B, Lq, Dq); kv: (B, Lk, Dk); mask_bias: (B, Lq, Lk) f32 additive bias.
    Returns LayerNorm(out_proj(attn) + q) of shape (B, Lq, Dq) and the
    attention weights (B, H, Lq, Lk).
    """
    B, Lq, Dq = q.shape
    Lk, Dk = kv.shape[1], kv.shape[2]
    hd = n_heads * qkv_dim
    return pl.pallas_call(
        functools.partial(_fused_mha_kernel, n_heads=n_heads, qkv_dim=qkv_dim),
        out_shape=(
            jax.ShapeDtypeStruct((B, Lq, Dq), jnp.float32),
            jax.ShapeDtypeStruct((B, n_heads, Lq, Lk), jnp.float32),
        ),
        grid=(B,),
        in_specs=[
            pl.BlockSpec((None, Lq, Dq), lambda b: (b, 0, 0)),
            pl.BlockSpec((None, Lk, Dk), lambda b: (b, 0, 0)),
            pl.BlockSpec((None, Lq, Lk), lambda b: (b, 0, 0)),
            pl.BlockSpec((Dq, hd), lambda b: (0, 0)),
            pl.BlockSpec((1, hd), lambda b: (0, 0)),
            pl.BlockSpec((Dk, 2 * hd), lambda b: (0, 0)),
            pl.BlockSpec((1, 2 * hd), lambda b: (0, 0)),
            pl.BlockSpec((hd, Dq), lambda b: (0, 0)),
            pl.BlockSpec((1, Dq), lambda b: (0, 0)),
        ],
        out_specs=(
            pl.BlockSpec((None, Lq, Dq), lambda b: (b, 0, 0)),
            pl.BlockSpec((None, n_heads, Lq, Lk), lambda b: (b, 0, 0, 0)),
        ),
        compiler_params=pltpu.CompilerParams(
            dimension_semantics=("parallel",)),
    )(q, kv, mask_bias, p["w_q"], p["b_q"], p["w_kv"], p["b_kv"],
      p["w_o"], p["b_o"])


def pallas_ffn(p, x):
    """Fused PosWiseFeedForwardNet (1x1 convs == per-token linears) + add + LN."""
    B, L, D = x.shape
    F = p["w1"].shape[1]
    M = B * L
    tm = _row_tile(M)
    out = pl.pallas_call(
        _ffn_kernel,
        out_shape=jax.ShapeDtypeStruct((M, D), jnp.float32),
        grid=(M // tm,),
        in_specs=[
            pl.BlockSpec((tm, D), lambda i: (i, 0)),
            pl.BlockSpec((D, F), lambda i: (0, 0)),
            pl.BlockSpec((1, F), lambda i: (0, 0)),
            pl.BlockSpec((F, D), lambda i: (0, 0)),
            pl.BlockSpec((1, D), lambda i: (0, 0)),
        ],
        out_specs=pl.BlockSpec((tm, D), lambda i: (i, 0)),
        compiler_params=pltpu.CompilerParams(
            dimension_semantics=("parallel",)),
    )(x.reshape(M, D), p["w1"], p["b1"], p["w2"], p["b2"])
    return out.reshape(B, L, D)


def pallas_linear(x2d, w, b, relu=False):
    """Row-tiled linear: x2d (M, K) @ w (K, N) + b (1, N)."""
    M, K = x2d.shape
    N = w.shape[1]
    tm = _row_tile(M)
    return pl.pallas_call(
        functools.partial(_linear_kernel, relu=relu),
        out_shape=jax.ShapeDtypeStruct((M, N), jnp.float32),
        grid=(M // tm,),
        in_specs=[
            pl.BlockSpec((tm, K), lambda i: (i, 0)),
            pl.BlockSpec((K, N), lambda i: (0, 0)),
            pl.BlockSpec((1, N), lambda i: (0, 0)),
        ],
        out_specs=pl.BlockSpec((tm, N), lambda i: (i, 0)),
        compiler_params=pltpu.CompilerParams(
            dimension_semantics=("parallel",)),
    )(x2d, w, b)


# ----------------------------- Model pieces -----------------------------

def decoder_layer(p, dec_in, enc_out, self_bias, dec_enc_bias, n_heads, qkv_dim):
    out, self_att = pallas_mha(p["dec_att"], dec_in, dec_in, self_bias,
                               n_heads, qkv_dim)
    out, dec_enc_att = pallas_mha(p["dec_enc_att"], out, enc_out, dec_enc_bias,
                                  n_heads, qkv_dim)
    out = pallas_ffn(p["ffn"], out)
    return out, self_att, dec_enc_att


def get_pos_embedding_table(maxlen, embed_dim):
    pos = jnp.arange(maxlen, dtype=jnp.float32)[:, None]
    hid = jnp.arange(embed_dim)[None, :]
    angle = pos / jnp.power(10000.0, (2 * (hid // 2)).astype(jnp.float32) / embed_dim)
    return jnp.where(hid % 2 == 0, jnp.sin(angle), jnp.cos(angle)).astype(jnp.float32)


def decoder_forward(params, cfg, enc_out, captions, lengths):
    """Matches Decoder.forward (dropout = identity, att_method='pixel')."""
    B = enc_out.shape[0]
    maxlen = cfg["maxlen"]
    num_pixels = enc_out.shape[1]

    # sort by caption length, descending (gather / argsort stay in XLA)
    cap_lengths_all = lengths[:, 0]
    sorted_idx = jnp.argsort(-cap_lengths_all)
    cap_lengths = cap_lengths_all[sorted_idx]
    enc_out = enc_out[sorted_idx]
    captions = captions[sorted_idx]
    dec_lengths = cap_lengths - 1

    # token + positional embeddings (tg_emb padding_idx=0 -> row 0 is zeros)
    tok = jnp.take(params["tg_emb"], captions, axis=0)       # (B, L, D)
    pos = params["pos_emb"][None, :, :]                      # (1, L, D)
    dec_out = tok + pos

    # masks as additive f32 biases (0 keep / -1e9 masked)
    pad = (captions == 0)[:, None, :]                                   # (B,1,L)
    sub = (jnp.triu(jnp.ones((maxlen, maxlen), jnp.int32), k=1) > 0)[None]
    self_mask = jnp.logical_or(pad, sub)                                # (B,L,L)
    self_bias = jnp.where(self_mask, jnp.float32(-1e9), jnp.float32(0.0))
    dec_enc_bias = jnp.zeros((B, maxlen, num_pixels), jnp.float32)      # 'pixel'

    dec_atts, dec_enc_atts = [], []
    for lp in params["layers"]:
        dec_out, da, dea = decoder_layer(lp, dec_out, enc_out, self_bias,
                                         dec_enc_bias, cfg["n_heads"],
                                         cfg["qkv_dim"])
        dec_atts.append(da)
        dec_enc_atts.append(dea)

    B_, L_, D_ = dec_out.shape
    preds = pallas_linear(dec_out.reshape(B_ * L_, D_), params["proj_w"],
                          params["proj_b"]).reshape(B_, L_, -1)
    return preds, captions, dec_lengths, sorted_idx, dec_atts, dec_enc_atts


# ----------------------------- Parameter init -----------------------------

def _linear_params(key, d_in, d_out):
    kw, kb = jax.random.split(key)
    bound = 1.0 / jnp.sqrt(d_in)
    w = jax.random.uniform(kw, (d_in, d_out), jnp.float32, -bound, bound)
    b = jax.random.uniform(kb, (1, d_out), jnp.float32, -bound, bound)
    return w, b


def init_params(key, cfg):
    D, H, dqkv = cfg["embed_dim"], cfg["n_heads"], cfg["qkv_dim"]
    enc_dim, d_ff = cfg["enc_dim"], cfg["d_ff"]
    V, maxlen = cfg["vocab_size"], cfg["maxlen"]

    keys = jax.random.split(key, 2 + cfg["n_layers"])
    tg_emb = jax.random.normal(keys[0], (V, D), jnp.float32)
    tg_emb = tg_emb.at[0].set(0.0)                   # padding_idx = 0
    pos_emb = get_pos_embedding_table(maxlen, D)
    proj_w, _ = _linear_params(keys[1], D, V)        # projection has no bias
    proj_b = jnp.zeros((1, V), jnp.float32)

    def mha_params(k, q_dim, k_dim):
        ks = jax.random.split(k, 4)
        wq, bq = _linear_params(ks[0], q_dim, dqkv * H)
        wk, bk = _linear_params(ks[1], k_dim, dqkv * H)
        wv, bv = _linear_params(ks[2], k_dim, dqkv * H)
        wo, bo = _linear_params(ks[3], dqkv * H, q_dim)
        # fuse K and V projections (same input) into one lane-dense matmul
        return {"w_q": wq, "b_q": bq,
                "w_kv": jnp.concatenate([wk, wv], axis=1),
                "b_kv": jnp.concatenate([bk, bv], axis=1),
                "w_o": wo, "b_o": bo}

    layers = []
    for i in range(cfg["n_layers"]):
        ks = jax.random.split(keys[2 + i], 4)
        w1, b1 = _linear_params(ks[2], D, d_ff)
        w2, b2 = _linear_params(ks[3], d_ff, D)
        layers.append({
            "dec_att": mha_params(ks[0], D, D),
            "dec_enc_att": mha_params(ks[1], D, enc_dim),   # 'pixel' attention
            "ffn": {"w1": w1, "b1": b1, "w2": w2, "b2": b2},
        })

    return {"tg_emb": tg_emb, "pos_emb": pos_emb, "proj_w": proj_w,
            "proj_b": proj_b, "layers": layers}


# ----------------------------- Main -----------------------------

if __name__ == "__main__":
    cfg = dict(
        n_layers=2, n_heads=4, embed_dim=32, qkv_dim=16,
        enc_dim=64, d_ff=64, vocab_size=50, maxlen=8,
        batch=2, num_pixels=16,
    )

    root = jax.random.PRNGKey(0)
    kp, ke, kc, kl = jax.random.split(root, 4)
    params = init_params(kp, cfg)

    B, P, L = cfg["batch"], cfg["num_pixels"], cfg["maxlen"]
    enc_out = jax.random.normal(ke, (B, P, cfg["enc_dim"]), jnp.float32)

    # captions: token ids in [1, vocab), padded with 0 after each caption's length
    lengths = jnp.array([[6], [4]], dtype=jnp.int32)
    toks = jax.random.randint(kc, (B, L), 1, cfg["vocab_size"], dtype=jnp.int32)
    valid = jnp.arange(L)[None, :] < lengths  # (B, L)
    captions = jnp.where(valid, toks, 0)

    fwd = jax.jit(functools.partial(decoder_forward, params, cfg))
    preds, caps_sorted, dec_lengths, sorted_idx, dec_atts, dec_enc_atts = fwd(
        enc_out, captions, lengths)

    jax.block_until_ready(preds)
    jax.block_until_ready(dec_atts[-1])
    jax.block_until_ready(dec_enc_atts[-1])

    assert preds.shape == (B, L, cfg["vocab_size"])
    assert dec_atts[0].shape == (B, cfg["n_heads"], L, L)
    assert dec_enc_atts[0].shape == (B, cfg["n_heads"], L, P)
    assert bool(jnp.all(jnp.isfinite(preds)))
    print("KERNEL_OK")
</pallas_src>

<mosaic_0001>
module attributes {stable_mosaic.version = 11 : i64} {
  func.func @_linear_kernel(%arg0: i32, %arg1: memref<8x32xf32, #tpu.memory_space<vmem>>, %arg2: memref<32x50xf32, #tpu.memory_space<vmem>>, %arg3: memref<1x50xf32, #tpu.memory_space<vmem>>, %arg4: memref<8x50xf32, #tpu.memory_space<vmem>>) attributes {dimension_semantics = [#tpu.dimension_semantics<parallel>], iteration_bounds = array<i64: 2>, scalar_prefetch = 0 : i64, scratch_operands = 0 : i64, tpu.core_type = #tpu.core_type<tc>, window_params = [{transform_indices = @transform_0, window_bounds = array<i64: 8, 32>}, {pipeline_mode = #tpu.pipeline_mode<synchronous>, transform_indices = @transform_1, window_bounds = array<i64: 32, 50>}, {pipeline_mode = #tpu.pipeline_mode<synchronous>, transform_indices = @transform_2, window_bounds = array<i64: 1, 50>}, {transform_indices = @transform_3, window_bounds = array<i64: 8, 50>}]} {
    %c0 = arith.constant 0 : index
    %c0_0 = arith.constant 0 : index
    %0 = vector.load %arg1[%c0, %c0_0] : memref<8x32xf32, #tpu.memory_space<vmem>>, vector<8x32xf32>
    %c0_1 = arith.constant 0 : index
    %c0_2 = arith.constant 0 : index
    %1 = vector.load %arg2[%c0_1, %c0_2] : memref<32x50xf32, #tpu.memory_space<vmem>>, vector<32x50xf32>
    %cst = arith.constant dense<0.000000e+00> : vector<8x50xf32>
    %2 = tpu.matmul %0, %1, %cst {dimension_numbers = #tpu.dot_dimension_numbers<[1], [0], [0], [1], [0, 0, 1, 1], [], []>} : vector<8x32xf32>, vector<32x50xf32>, vector<8x50xf32> -> vector<8x50xf32>
    %c0_3 = arith.constant 0 : index
    %c0_4 = arith.constant 0 : index
    %3 = vector.load %arg3[%c0_3, %c0_4] : memref<1x50xf32, #tpu.memory_space<vmem>>, vector<1x50xf32>
    %4 = vector.broadcast %3 : vector<1x50xf32> to vector<8x50xf32>
    %5 = arith.addf %2, %4 : vector<8x50xf32>
    %c0_5 = arith.constant 0 : index
    %c0_6 = arith.constant 0 : index
    %6 = vector.load %arg4[%c0_5, %c0_6] : memref<8x50xf32, #tpu.memory_space<vmem>>, vector<8x50xf32>
    tpu.vector_store %arg4[%c0_5, %c0_6], %5 {strides = array<i32>} : memref<8x50xf32, #tpu.memory_space<vmem>>, vector<8x50xf32>,
    return
  }
  func.func @transform_0(%arg0: i32) -> (i32, i32) {
    %c0_i32 = arith.constant 0 : i32
    %c0_i32_0 = arith.constant 0 : i32
    return %arg0, %c0_i32 : i32, i32
  }
  func.func @transform_1(%arg0: i32) -> (i32, i32) {
    %c0_i32 = arith.constant 0 : i32
    %c0_i32_0 = arith.constant 0 : i32
    %c0_i32_1 = arith.constant 0 : i32
    return %c0_i32, %c0_i32_0 : i32, i32
  }
  func.func @transform_2(%arg0: i32) -> (i32, i32) {
    %c0_i32 = arith.constant 0 : i32
    %c0_i32_0 = arith.constant 0 : i32
    %c0_i32_1 = arith.constant 0 : i32
    return %c0_i32, %c0_i32_0 : i32, i32
  }
  func.func @transform_3(%arg0: i32) -> (i32, i32) {
    %c0_i32 = arith.constant 0 : i32
    %c0_i32_0 = arith.constant 0 : i32
    return %arg0, %c0_i32 : i32, i32
  }
}

module attributes {stable_mosaic.version = 11 : i64} {
  func.func @_fused_mha_kernel(%arg0: i32, %arg1: memref<1x8x32xf32, #tpu.memory_space<vmem>>, %arg2: memref<1x8x32xf32, #tpu.memory_space<vmem>>, %arg3: memref<1x8x8xf32, #tpu.memory_space<vmem>>, %arg4: memref<32x64xf32, #tpu.memory_space<vmem>>, %arg5: memref<1x64xf32, #tpu.memory_space<vmem>>, %arg6: memref<32x128xf32, #tpu.memory_space<vmem>>, %arg7: memref<1x128xf32, #tpu.memory_space<vmem>>, %arg8: memref<64x32xf32, #tpu.memory_space<vmem>>, %arg9: memref<1x32xf32, #tpu.memory_space<vmem>>, %arg10: memref<1x8x32xf32, #tpu.memory_space<vmem>>, %arg11: memref<1x4x8x8xf32, #tpu.memory_space<vmem>>) attributes {dimension_semantics = [#tpu.dimension_semantics<parallel>], iteration_bounds = array<i64: 2>, scalar_prefetch = 0 : i64, scratch_operands = 0 : i64, tpu.core_type = #tpu.core_type<tc>, window_params = [{transform_indices = @transform_0, window_bounds = array<i64: 1, 8, 32>}, {transform_indices = @transform_1, window_bounds = array<i64: 1, 8, 32>}, {transform_indices = @transform_2, window_bounds = array<i64: 1, 8, 8>}, {pipeline_mode = #tpu.pipeline_mode<synchronous>, transform_indices = @transform_3, window_bounds = array<i64: 32, 64>}, {pipeline_mode = #tpu.pipeline_mode<synchronous>, transform_indices = @transform_4, window_bounds = array<i64: 1, 64>}, {pipeline_mode = #tpu.pipeline_mode<synchronous>, transform_indices = @transform_5, window_bounds = array<i64: 32, 128>}, {pipeline_mode = #tpu.pipeline_mode<synchronous>, transform_indices = @transform_6, window_bounds = array<i64: 1, 128>}, {pipeline_mode = #tpu.pipeline_mode<synchronous>, transform_indices = @transform_7, window_bounds = array<i64: 64, 32>}, {pipeline_mode = #tpu.pipeline_mode<synchronous>, transform_indices = @transform_8, window_bounds = array<i64: 1, 32>}, {transform_indices = @transform_9, window_bounds = array<i64: 1, 8, 32>}, {transform_indices = @transform_10, window_bounds = array<i64: 1, 4, 8, 8>}]} {
    %c0 = arith.constant 0 : index
    %c0_0 = arith.constant 0 : index
    %c0_1 = arith.constant 0 : index
    %0 = vector.load %arg1[%c0, %c0_0, %c0_1] : memref<1x8x32xf32, #tpu.memory_space<vmem>>, vector<1x8x32xf32>
    %1 = vector.shape_cast %0 : vector<1x8x32xf32> to vector<8x32xf32>
    %c0_2 = arith.constant 0 : index
    %c0_3 = arith.constant 0 : index
    %c0_4 = arith.constant 0 : index
    %2 = vector.load %arg2[%c0_2, %c0_3, %c0_4] : memref<1x8x32xf32, #tpu.memory_space<vmem>>, vector<1x8x32xf32>
    %3 = vector.shape_cast %2 : vector<1x8x32xf32> to vector<8x32xf32>
    %c0_5 = arith.constant 0 : index
    %c0_6 = arith.constant 0 : index
    %c0_7 = arith.constant 0 : index
    %4 = vector.load %arg3[%c0_5, %c0_6, %c0_7] : memref<1x8x8xf32, #tpu.memory_space<vmem>>, vector<1x8x8xf32>
    %5 = vector.shape_cast %4 : vector<1x8x8xf32> to vector<8x8xf32>
    %cst = arith.constant 1.600000e+01 : f32
    %6 = math.sqrt %cst : f32
    %cst_8 = arith.constant 1.000000e+00 : f32
    %7 = arith.divf %cst_8, %6 : f32
    %c0_9 = arith.constant 0 : index
    %c0_10 = arith.constant 0 : index
    %8 = vector.load %arg4[%c0_9, %c0_10] : memref<32x64xf32, #tpu.memory_space<vmem>>, vector<32x64xf32>
    %cst_11 = arith.constant dense<0.000000e+00> : vector<8x64xf32>
    %9 = tpu.matmul %1, %8, %cst_11 {dimension_numbers = #tpu.dot_dimension_numbers<[1], [0], [0], [1], [0, 0, 1, 1], [], []>} : vector<8x32xf32>, vector<32x64xf32>, vector<8x64xf32> -> vector<8x64xf32>
    %c0_12 = arith.constant 0 : index
    %c0_13 = arith.constant 0 : index
    %10 = vector.load %arg5[%c0_12, %c0_13] : memref<1x64xf32, #tpu.memory_space<vmem>>, vector<1x64xf32>
    %11 = vector.broadcast %10 : vector<1x64xf32> to vector<8x64xf32>
    %12 = arith.addf %9, %11 : vector<8x64xf32>
    %13 = vector.broadcast %7 : f32 to vector<8x64xf32>
    %14 = arith.mulf %12, %13 : vector<8x64xf32>
    %c0_14 = arith.constant 0 : index
    %c0_15 = arith.constant 0 : index
    %15 = vector.load %arg6[%c0_14, %c0_15] : memref<32x128xf32, #tpu.memory_space<vmem>>, vector<32x128xf32>
    %cst_16 = arith.constant dense<0.000000e+00> : vector<8x128xf32>
    %16 = tpu.matmul %3, %15, %cst_16 {dimension_numbers = #tpu.dot_dimension_numbers<[1], [0], [0], [1], [0, 0, 1, 1], [], []>} : vector<8x32xf32>, vector<32x128xf32>, vector<8x128xf32> -> vector<8x128xf32>
    %c0_17 = arith.constant 0 : index
    %c0_18 = arith.constant 0 : index
    %17 = vector.load %arg7[%c0_17, %c0_18] : memref<1x128xf32, #tpu.memory_space<vmem>>, vector<1x128xf32>
    %18 = vector.broadcast %17 : vector<1x128xf32> to vector<8x128xf32>
    %19 = arith.addf %16, %18 : vector<8x128xf32>
    %20 = vector.extract_strided_slice %19 {offsets = [0, 0], sizes = [8, 64], strides = [1, 1]} : vector<8x128xf32> to vector<8x64xf32>
    %21 = vector.extract_strided_slice %19 {offsets = [0, 64], sizes = [8, 64], strides = [1, 1]} : vector<8x128xf32> to vector<8x64xf32>
    %22 = vector.extract_strided_slice %14 {offsets = [0, 0], sizes = [8, 16], strides = [1, 1]} : vector<8x64xf32> to vector<8x16xf32>
    %23 = vector.extract_strided_slice %20 {offsets = [0, 0], sizes = [8, 16], strides = [1, 1]} : vector<8x64xf32> to vector<8x16xf32>
    %24 = vector.extract_strided_slice %21 {offsets = [0, 0], sizes = [8, 16], strides = [1, 1]} : vector<8x64xf32> to vector<8x16xf32>
    %25 = tpu.transpose %23, [1, 0] : vector<8x16xf32> -> vector<16x8xf32>
    %cst_19 = arith.constant dense<0.000000e+00> : vector<8x8xf32>
    %26 = tpu.matmul %22, %25, %cst_19 {dimension_numbers = #tpu.dot_dimension_numbers<[1], [0], [0], [1], [0, 0, 1, 1], [], []>} : vector<8x16xf32>, vector<16x8xf32>, vector<8x8xf32> -> vector<8x8xf32>
    %27 = arith.addf %26, %5 : vector<8x8xf32>
    %cst_20 = arith.constant dense<0xFF800000> : vector<8xf32>
    %28 = vector.multi_reduction <maximumf>, %27, %cst_20 [1] : vector<8x8xf32> to vector<8xf32>
    %29 = vector.shape_cast %28 : vector<8xf32> to vector<8x1xf32>
    %30 = vector.broadcast %29 : vector<8x1xf32> to vector<8x8xf32>
    %31 = arith.subf %27, %30 : vector<8x8xf32>
    %32 = math.exp %31 : vector<8x8xf32>
    %cst_21 = arith.constant dense<0.000000e+00> : vector<8xf32>
    %33 = vector.multi_reduction <add>, %32, %cst_21 [1] : vector<8x8xf32> to vector<8xf32>
    %34 = vector.shape_cast %33 : vector<8xf32> to vector<8x1xf32>
    %35 = vector.broadcast %34 : vector<8x1xf32> to vector<8x8xf32>
    %36 = arith.divf %32, %35 : vector<8x8xf32>
    %c0_22 = arith.constant 0 : index
    %c0_23 = arith.constant 0 : index
    %c0_24 = arith.constant 0 : index
    %c0_25 = arith.constant 0 : index
    %37 = vector.load %arg11[%c0_22, %c0_23, %c0_24, %c0_25] : memref<1x4x8x8xf32, #tpu.memory_space<vmem>>, vector<1x1x8x8xf32>
    %38 = vector.shape_cast %37 : vector<1x1x8x8xf32> to vector<8x8xf32>
    %39 = vector.shape_cast %36 : vector<8x8xf32> to vector<1x1x8x8xf32>
    tpu.vector_store %arg11[%c0_22, %c0_23, %c0_24, %c0_25], %39 {strides = array<i32>} : memref<1x4x8x8xf32, #tpu.memory_space<vmem>>, vector<1x1x8x8xf32>,
    %cst_26 = arith.constant dense<0.000000e+00> : vector<8x16xf32>
    %40 = tpu.matmul %36, %24, %cst_26 {dimension_numbers = #tpu.dot_dimension_numbers<[1], [0], [0], [1], [0, 0, 1, 1], [], []>} : vector<8x8xf32>, vector<8x16xf32>, vector<8x16xf32> -> vector<8x16xf32>
    %41 = vector.extract_strided_slice %14 {offsets = [0, 16], sizes = [8, 16], strides = [1, 1]} : vector<8x64xf32> to vector<8x16xf32>
    %42 = vector.extract_strided_slice %20 {offsets = [0, 16], sizes = [8, 16], strides = [1, 1]} : vector<8x64xf32> to vector<8x16xf32>
    %43 = vector.extract_strided_slice %21 {offsets = [0, 16], sizes = [8, 16], strides = [1, 1]} : vector<8x64xf32> to vector<8x16xf32>
    %44 = tpu.transpose %42, [1, 0] : vector<8x16xf32> -> vector<16x8xf32>
    %cst_27 = arith.constant dense<0.000000e+00> : vector<8x8xf32>
    %45 = tpu.matmul %41, %44, %cst_27 {dimension_numbers = #tpu.dot_dimension_numbers<[1], [0], [0], [1], [0, 0, 1, 1], [], []>} : vector<8x16xf32>, vector<16x8xf32>, vector<8x8xf32> -> vector<8x8xf32>
    %46 = arith.addf %45, %5 : vector<8x8xf32>
    %cst_28 = arith.constant dense<0xFF800000> : vector<8xf32>
    %47 = vector.multi_reduction <maximumf>, %46, %cst_28 [1] : vector<8x8xf32> to vector<8xf32>
    %48 = vector.shape_cast %47 : vector<8xf32> to vector<8x1xf32>
    %49 = vector.broadcast %48 : vector<8x1xf32> to vector<8x8xf32>
    %50 = arith.subf %46, %49 : vector<8x8xf32>
    %51 = math.exp %50 : vector<8x8xf32>
    %cst_29 = arith.constant dense<0.000000e+00> : vector<8xf32>
    %52 = vector.multi_reduction <add>, %51, %cst_29 [1] : vector<8x8xf32> to vector<8xf32>
    %53 = vector.shape_cast %52 : vector<8xf32> to vector<8x1xf32>
    %54 = vector.broadcast %53 : vector<8x1xf32> to vector<8x8xf32>
    %55 = arith.divf %51, %54 : vector<8x8xf32>
    %c0_30 = arith.constant 0 : index
    %c1 = arith.constant 1 : index
    %c0_31 = arith.constant 0 : index
    %c0_32 = arith.constant 0 : index
    %56 = vector.load %arg11[%c0_30, %c1, %c0_31, %c0_32] : memref<1x4x8x8xf32, #tpu.memory_space<vmem>>, vector<1x1x8x8xf32>
    %57 = vector.shape_cast %56 : vector<1x1x8x8xf32> to vector<8x8xf32>
    %58 = vector.shape_cast %55 : vector<8x8xf32> to vector<1x1x8x8xf32>
    tpu.vector_store %arg11[%c0_30, %c1, %c0_31, %c0_32], %58 {strides = array<i32>} : memref<1x4x8x8xf32, #tpu.memory_space<vmem>>, vector<1x1x8x8xf32>,
    %cst_33 = arith.constant dense<0.000000e+00> : vector<8x16xf32>
    %59 = tpu.matmul %55, %43, %cst_33 {dimension_numbers = #tpu.dot_dimension_numbers<[1], [0], [0], [1], [0, 0, 1, 1], [], []>} : vector<8x8xf32>, vector<8x16xf32>, vector<8x16xf32> -> vector<8x16xf32>
    %60 = vector.extract_strided_slice %14 {offsets = [0, 32], sizes = [8, 16], strides = [1, 1]} : vector<8x64xf32> to vector<8x16xf32>
    %61 = vector.extract_strided_slice %20 {offsets = [0, 32], sizes = [8, 16], strides = [1, 1]} : vector<8x64xf32> to vector<8x16xf32>
    %62 = vector.extract_strided_slice %21 {offsets = [0, 32], sizes = [8, 16], strides = [1, 1]} : vector<8x64xf32> to vector<8x16xf32>
    %63 = tpu.transpose %61, [1, 0] : vector<8x16xf32> -> vector<16x8xf32>
    %cst_34 = arith.constant dense<0.000000e+00> : vector<8x8xf32>
    %64 = tpu.matmul %60, %63, %cst_34 {dimension_numbers = #tpu.dot_dimension_numbers<[1], [0], [0], [1], [0, 0, 1, 1], [], []>} : vector<8x16xf32>, vector<16x8xf32>, vector<8x8xf32> -> vector<8x8xf32>
    %65 = arith.addf %64, %5 : vector<8x8xf32>
    %cst_35 = arith.constant dense<0xFF800000> : vector<8xf32>
    %66 = vector.multi_reduction <maximumf>, %65, %cst_35 [1] : vector<8x8xf32> to vector<8xf32>
    %67 = vector.shape_cast %66 : vector<8xf32> to vector<8x1xf32>
    %68 = vector.broadcast %67 : vector<8x1xf32> to vector<8x8xf32>
    %69 = arith.subf %65, %68 : vector<8x8xf32>
    %70 = math.exp %69 : vector<8x8xf32>
    %cst_36 = arith.constant dense<0.000000e+00> : vector<8xf32>
    %71 = vector.multi_reduction <add>, %70, %cst_36 [1] : vector<8x8xf32> to vector<8xf32>
    %72 = vector.shape_cast %71 : vector<8xf32> to vector<8x1xf32>
    %73 = vector.broadcast %72 : vector<8x1xf32> to vector<8x8xf32>
    %74 = arith.divf %70, %73 : vector<8x8xf32>
    %c0_37 = arith.constant 0 : index
    %c2 = arith.constant 2 : index
    %c0_38 = arith.constant 0 : index
    %c0_39 = arith.constant 0 : index
    %75 = vector.load %arg11[%c0_37, %c2, %c0_38, %c0_39] : memref<1x4x8x8xf32, #tpu.memory_space<vmem>>, vector<1x1x8x8xf32>
    %76 = vector.shape_cast %75 : vector<1x1x8x8xf32> to vector<8x8xf32>
    %77 = vector.shape_cast %74 : vector<8x8xf32> to vector<1x1x8x8xf32>
    tpu.vector_store %arg11[%c0_37, %c2, %c0_38, %c0_39], %77 {strides = array<i32>} : memref<1x4x8x8xf32, #tpu.memory_space<vmem>>, vector<1x1x8x8xf32>,
    %cst_40 = arith.constant dense<0.000000e+00> : vector<8x16xf32>
    %78 = tpu.matmul %74, %62, %cst_40 {dimension_numbers = #tpu.dot_dimension_numbers<[1], [0], [0], [1], [0, 0, 1, 1], [], []>} : vector<8x8xf32>, vector<8x16xf32>, vector<8x16xf32> -> vector<8x16xf32>
    %79 = vector.extract_strided_slice %14 {offsets = [0, 48], sizes = [8, 16], strides = [1, 1]} : vector<8x64xf32> to vector<8x16xf32>
    %80 = vector.extract_strided_slice %20 {offsets = [0, 48], sizes = [8, 16], strides = [1, 1]} : vector<8x64xf32> to vector<8x16xf32>
    %81 = vector.extract_strided_slice %21 {offsets = [0, 48], sizes = [8, 16], strides = [1, 1]} : vector<8x64xf32> to vector<8x16xf32>
    %82 = tpu.transpose %80, [1, 0] : vector<8x16xf32> -> vector<16x8xf32>
    %cst_41 = arith.constant dense<0.000000e+00> : vector<8x8xf32>
    %83 = tpu.matmul %79, %82, %cst_41 {dimension_numbers = #tpu.dot_dimension_numbers<[1], [0], [0], [1], [0, 0, 1, 1], [], []>} : vector<8x16xf32>, vector<16x8xf32>, vector<8x8xf32> -> vector<8x8xf32>
    %84 = arith.addf %83, %5 : vector<8x8xf32>
    %cst_42 = arith.constant dense<0xFF800000> : vector<8xf32>
    %85 = vector.multi_reduction <maximumf>, %84, %cst_42 [1] : vector<8x8xf32> to vector<8xf32>
    %86 = vector.shape_cast %85 : vector<8xf32> to vector<8x1xf32>
    %87 = vector.broadcast %86 : vector<8x1xf32> to vector<8x8xf32>
    %88 = arith.subf %84, %87 : vector<8x8xf32>
    %89 = math.exp %88 : vector<8x8xf32>
    %cst_43 = arith.constant dense<0.000000e+00> : vector<8xf32>
    %90 = vector.multi_reduction <add>, %89, %cst_43 [1] : vector<8x8xf32> to vector<8xf32>
    %91 = vector.shape_cast %90 : vector<8xf32> to vector<8x1xf32>
    %92 = vector.broadcast %91 : vector<8x1xf32> to vector<8x8xf32>
    %93 = arith.divf %89, %92 : vector<8x8xf32>
    %c0_44 = arith.constant 0 : index
    %c3 = arith.constant 3 : index
    %c0_45 = arith.constant 0 : index
    %c0_46 = arith.constant 0 : index
    %94 = vector.load %arg11[%c0_44, %c3, %c0_45, %c0_46] : memref<1x4x8x8xf32, #tpu.memory_space<vmem>>, vector<1x1x8x8xf32>
    %95 = vector.shape_cast %94 : vector<1x1x8x8xf32> to vector<8x8xf32>
    %96 = vector.shape_cast %93 : vector<8x8xf32> to vector<1x1x8x8xf32>
    tpu.vector_store %arg11[%c0_44, %c3, %c0_45, %c0_46], %96 {strides = array<i32>} : memref<1x4x8x8xf32, #tpu.memory_space<vmem>>, vector<1x1x8x8xf32>,
    %cst_47 = arith.constant dense<0.000000e+00> : vector<8x16xf32>
    %97 = tpu.matmul %93, %81, %cst_47 {dimension_numbers = #tpu.dot_dimension_numbers<[1], [0], [0], [1], [0, 0, 1, 1], [], []>} : vector<8x8xf32>, vector<8x16xf32>, vector<8x16xf32> -> vector<8x16xf32>
    %98 = tpu.concatenate %40, %59, %78, %97 in 1 : vector<8x16xf32>, vector<8x16xf32>, vector<8x16xf32>, vector<8x16xf32> -> vector<8x64xf32>
    %c0_48 = arith.constant 0 : index
    %c0_49 = arith.constant 0 : index
    %99 = vector.load %arg8[%c0_48, %c0_49] : memref<64x32xf32, #tpu.memory_space<vmem>>, vector<64x32xf32>
    %cst_50 = arith.constant dense<0.000000e+00> : vector<8x32xf32>
    %100 = tpu.matmul %98, %99, %cst_50 {dimension_numbers = #tpu.dot_dimension_numbers<[1], [0], [0], [1], [0, 0, 1, 1], [], []>} : vector<8x64xf32>, vector<64x32xf32>, vector<8x32xf32> -> vector<8x32xf32>
    %c0_51 = arith.constant 0 : index
    %c0_52 = arith.constant 0 : index
    %101 = vector.load %arg9[%c0_51, %c0_52] : memref<1x32xf32, #tpu.memory_space<vmem>>, vector<1x32xf32>
    %102 = vector.broadcast %101 : vector<1x32xf32> to vector<8x32xf32>
    %103 = arith.addf %100, %102 : vector<8x32xf32>
    %104 = arith.addf %103, %1 : vector<8x32xf32>
    %cst_53 = arith.constant dense<0.000000e+00> : vector<8xf32>
    %105 = vector.multi_reduction <add>, %104, %cst_53 [1] : vector<8x32xf32> to vector<8xf32>
    %106 = vector.shape_cast %105 : vector<8xf32> to vector<8x1xf32>
    %cst_54 = arith.constant 3.200000e+01 : f32
    %107 = vector.broadcast %cst_54 : f32 to vector<8x1xf32>
    %108 = arith.divf %106, %107 : vector<8x1xf32>
    %109 = vector.broadcast %108 : vector<8x1xf32> to vector<8x32xf32>
    %110 = arith.subf %104, %109 : vector<8x32xf32>
    %111 = arith.mulf %110, %110 : vector<8x32xf32>
    %cst_55 = arith.constant dense<0.000000e+00> : vector<8xf32>
    %112 = vector.multi_reduction <add>, %111, %cst_55 [1] : vector<8x32xf32> to vector<8xf32>
    %113 = vector.shape_cast %112 : vector<8xf32> to vector<8x1xf32>
    %cst_56 = arith.constant 3.200000e+01 : f32
    %114 = vector.broadcast %cst_56 : f32 to vector<8x1xf32>
    %115 = arith.divf %113, %114 : vector<8x1xf32>
    %116 = vector.broadcast %108 : vector<8x1xf32> to vector<8x32xf32>
    %117 = arith.subf %104, %116 : vector<8x32xf32>
    %cst_57 = arith.constant 9.99999974E-6 : f32
    %118 = vector.broadcast %cst_57 : f32 to vector<8x1xf32>
    %119 = arith.addf %115, %118 : vector<8x1xf32>
    %120 = math.rsqrt %119 : vector<8x1xf32>
    %121 = vector.broadcast %120 : vector<8x1xf32> to vector<8x32xf32>
    %122 = arith.mulf %117, %121 : vector<8x32xf32>
    %c0_58 = arith.constant 0 : index
    %c0_59 = arith.constant 0 : index
    %c0_60 = arith.constant 0 : index
    %123 = vector.load %arg10[%c0_58, %c0_59, %c0_60] : memref<1x8x32xf32, #tpu.memory_space<vmem>>, vector<1x8x32xf32>
    %124 = vector.shape_cast %123 : vector<1x8x32xf32> to vector<8x32xf32>
    %125 = vector.shape_cast %122 : vector<8x32xf32> to vector<1x8x32xf32>
    tpu.vector_store %arg10[%c0_58, %c0_59, %c0_60], %125 {strides = array<i32>} : memref<1x8x32xf32, #tpu.memory_space<vmem>>, vector<1x8x32xf32>,
    return
  }
  func.func @transform_0(%arg0: i32) -> (i32, i32, i32) {
    %c0_i32 = arith.constant 0 : i32
    %c0_i32_0 = arith.constant 0 : i32
    %c0_i32_1 = arith.constant 0 : i32
    return %arg0, %c0_i32, %c0_i32_0 : i32, i32, i32
  }
  func.func @transform_1(%arg0: i32) -> (i32, i32, i32) {
    %c0_i32 = arith.constant 0 : i32
    %c0_i32_0 = arith.constant 0 : i32
    %c0_i32_1 = arith.constant 0 : i32
    return %arg0, %c0_i32, %c0_i32_0 : i32, i32, i32
  }
  func.func @transform_2(%arg0: i32) -> (i32, i32, i32) {
    %c0_i32 = arith.constant 0 : i32
    %c0_i32_0 = arith.constant 0 : i32
    %c0_i32_1 = arith.constant 0 : i32
    return %arg0, %c0_i32, %c0_i32_0 : i32, i32, i32
  }
  func.func @transform_3(%arg0: i32) -> (i32, i32) {
    %c0_i32 = arith.constant 0 : i32
    %c0_i32_0 = arith.constant 0 : i32
    %c0_i32_1 = arith.constant 0 : i32
    return %c0_i32, %c0_i32_0 : i32, i32
  }
  func.func @transform_4(%arg0: i32) -> (i32, i32) {
    %c0_i32 = arith.constant 0 : i32
    %c0_i32_0 = arith.constant 0 : i32
    %c0_i32_1 = arith.constant 0 : i32
    return %c0_i32, %c0_i32_0 : i32, i32
  }
  func.func @transform_5(%arg0: i32) -> (i32, i32) {
    %c0_i32 = arith.constant 0 : i32
    %c0_i32_0 = arith.constant 0 : i32
    %c0_i32_1 = arith.constant 0 : i32
    return %c0_i32, %c0_i32_0 : i32, i32
  }
  func.func @transform_6(%arg0: i32) -> (i32, i32) {
    %c0_i32 = arith.constant 0 : i32
    %c0_i32_0 = arith.constant 0 : i32
    %c0_i32_1 = arith.constant 0 : i32
    return %c0_i32, %c0_i32_0 : i32, i32
  }
  func.func @transform_7(%arg0: i32) -> (i32, i32) {
    %c0_i32 = arith.constant 0 : i32
    %c0_i32_0 = arith.constant 0 : i32
    %c0_i32_1 = arith.constant 0 : i32
    return %c0_i32, %c0_i32_0 : i32, i32
  }
  func.func @transform_8(%arg0: i32) -> (i32, i32) {
    %c0_i32 = arith.constant 0 : i32
    %c0_i32_0 = arith.constant 0 : i32
    %c0_i32_1 = arith.constant 0 : i32
    return %c0_i32, %c0_i32_0 : i32, i32
  }
  func.func @transform_9(%arg0: i32) -> (i32, i32, i32) {
    %c0_i32 = arith.constant 0 : i32
    %c0_i32_0 = arith.constant 0 : i32
    %c0_i32_1 = arith.constant 0 : i32
    return %arg0, %c0_i32, %c0_i32_0 : i32, i32, i32
  }
  func.func @transform_10(%arg0: i32) -> (i32, i32, i32, i32) {
    %c0_i32 = arith.constant 0 : i32
    %c0_i32_0 = arith.constant 0 : i32
    %c0_i32_1 = arith.constant 0 : i32
    %c0_i32_2 = arith.constant 0 : i32
    return %arg0, %c0_i32, %c0_i32_0, %c0_i32_1 : i32, i32, i32, i32
  }
}

module attributes {stable_mosaic.version = 11 : i64} {
  func.func @_ffn_kernel(%arg0: i32, %arg1: memref<8x32xf32, #tpu.memory_space<vmem>>, %arg2: memref<32x64xf32, #tpu.memory_space<vmem>>, %arg3: memref<1x64xf32, #tpu.memory_space<vmem>>, %arg4: memref<64x32xf32, #tpu.memory_space<vmem>>, %arg5: memref<1x32xf32, #tpu.memory_space<vmem>>, %arg6: memref<8x32xf32, #tpu.memory_space<vmem>>) attributes {dimension_semantics = [#tpu.dimension_semantics<parallel>], iteration_bounds = array<i64: 2>, scalar_prefetch = 0 : i64, scratch_operands = 0 : i64, tpu.core_type = #tpu.core_type<tc>, window_params = [{transform_indices = @transform_0, window_bounds = array<i64: 8, 32>}, {pipeline_mode = #tpu.pipeline_mode<synchronous>, transform_indices = @transform_1, window_bounds = array<i64: 32, 64>}, {pipeline_mode = #tpu.pipeline_mode<synchronous>, transform_indices = @transform_2, window_bounds = array<i64: 1, 64>}, {pipeline_mode = #tpu.pipeline_mode<synchronous>, transform_indices = @transform_3, window_bounds = array<i64: 64, 32>}, {pipeline_mode = #tpu.pipeline_mode<synchronous>, transform_indices = @transform_4, window_bounds = array<i64: 1, 32>}, {transform_indices = @transform_5, window_bounds = array<i64: 8, 32>}]} {
    %c0 = arith.constant 0 : index
    %c0_0 = arith.constant 0 : index
    %0 = vector.load %arg1[%c0, %c0_0] : memref<8x32xf32, #tpu.memory_space<vmem>>, vector<8x32xf32>
    %c0_1 = arith.constant 0 : index
    %c0_2 = arith.constant 0 : index
    %1 = vector.load %arg2[%c0_1, %c0_2] : memref<32x64xf32, #tpu.memory_space<vmem>>, vector<32x64xf32>
    %cst = arith.constant dense<0.000000e+00> : vector<8x64xf32>
    %2 = tpu.matmul %0, %1, %cst {dimension_numbers = #tpu.dot_dimension_numbers<[1], [0], [0], [1], [0, 0, 1, 1], [], []>} : vector<8x32xf32>, vector<32x64xf32>, vector<8x64xf32> -> vector<8x64xf32>
    %c0_3 = arith.constant 0 : index
    %c0_4 = arith.constant 0 : index
    %3 = vector.load %arg3[%c0_3, %c0_4] : memref<1x64xf32, #tpu.memory_space<vmem>>, vector<1x64xf32>
    %4 = vector.broadcast %3 : vector<1x64xf32> to vector<8x64xf32>
    %5 = arith.addf %2, %4 : vector<8x64xf32>
    %cst_5 = arith.constant 0.000000e+00 : f32
    %6 = vector.broadcast %cst_5 : f32 to vector<8x64xf32>
    %7 = arith.maximumf %5, %6 : vector<8x64xf32>
    %c0_6 = arith.constant 0 : index
    %c0_7 = arith.constant 0 : index
    %8 = vector.load %arg4[%c0_6, %c0_7] : memref<64x32xf32, #tpu.memory_space<vmem>>, vector<64x32xf32>
    %cst_8 = arith.constant dense<0.000000e+00> : vector<8x32xf32>
    %9 = tpu.matmul %7, %8, %cst_8 {dimension_numbers = #tpu.dot_dimension_numbers<[1], [0], [0], [1], [0, 0, 1, 1], [], []>} : vector<8x64xf32>, vector<64x32xf32>, vector<8x32xf32> -> vector<8x32xf32>
    %c0_9 = arith.constant 0 : index
    %c0_10 = arith.constant 0 : index
    %10 = vector.load %arg5[%c0_9, %c0_10] : memref<1x32xf32, #tpu.memory_space<vmem>>, vector<1x32xf32>
    %11 = vector.broadcast %10 : vector<1x32xf32> to vector<8x32xf32>
    %12 = arith.addf %9, %11 : vector<8x32xf32>
    %13 = arith.addf %12, %0 : vector<8x32xf32>
    %cst_11 = arith.constant dense<0.000000e+00> : vector<8xf32>
    %14 = vector.multi_reduction <add>, %13, %cst_11 [1] : vector<8x32xf32> to vector<8xf32>
    %15 = vector.shape_cast %14 : vector<8xf32> to vector<8x1xf32>
    %cst_12 = arith.constant 3.200000e+01 : f32
    %16 = vector.broadcast %cst_12 : f32 to vector<8x1xf32>
    %17 = arith.divf %15, %16 : vector<8x1xf32>
    %18 = vector.broadcast %17 : vector<8x1xf32> to vector<8x32xf32>
    %19 = arith.subf %13, %18 : vector<8x32xf32>
    %20 = arith.mulf %19, %19 : vector<8x32xf32>
    %cst_13 = arith.constant dense<0.000000e+00> : vector<8xf32>
    %21 = vector.multi_reduction <add>, %20, %cst_13 [1] : vector<8x32xf32> to vector<8xf32>
    %22 = vector.shape_cast %21 : vector<8xf32> to vector<8x1xf32>
    %cst_14 = arith.constant 3.200000e+01 : f32
    %23 = vector.broadcast %cst_14 : f32 to vector<8x1xf32>
    %24 = arith.divf %22, %23 : vector<8x1xf32>
    %25 = vector.broadcast %17 : vector<8x1xf32> to vector<8x32xf32>
    %26 = arith.subf %13, %25 : vector<8x32xf32>
    %cst_15 = arith.constant 9.99999974E-6 : f32
    %27 = vector.broadcast %cst_15 : f32 to vector<8x1xf32>
    %28 = arith.addf %24, %27 : vector<8x1xf32>
    %29 = math.rsqrt %28 : vector<8x1xf32>
    %30 = vector.broadcast %29 : vector<8x1xf32> to vector<8x32xf32>
    %31 = arith.mulf %26, %30 : vector<8x32xf32>
    %c0_16 = arith.constant 0 : index
    %c0_17 = arith.constant 0 : index
    %32 = vector.load %arg6[%c0_16, %c0_17] : memref<8x32xf32, #tpu.memory_space<vmem>>, vector<8x32xf32>
    tpu.vector_store %arg6[%c0_16, %c0_17], %31 {strides = array<i32>} : memref<8x32xf32, #tpu.memory_space<vmem>>, vector<8x32xf32>,
    return
  }
  func.func @transform_0(%arg0: i32) -> (i32, i32) {
    %c0_i32 = arith.constant 0 : i32
    %c0_i32_0 = arith.constant 0 : i32
    return %arg0, %c0_i32 : i32, i32
  }
  func.func @transform_1(%arg0: i32) -> (i32, i32) {
    %c0_i32 = arith.constant 0 : i32
    %c0_i32_0 = arith.constant 0 : i32
    %c0_i32_1 = arith.constant 0 : i32
    return %c0_i32, %c0_i32_0 : i32, i32
  }
  func.func @transform_2(%arg0: i32) -> (i32, i32) {
    %c0_i32 = arith.constant 0 : i32
    %c0_i32_0 = arith.constant 0 : i32
    %c0_i32_1 = arith.constant 0 : i32
    return %c0_i32, %c0_i32_0 : i32, i32
  }
  func.func @transform_3(%arg0: i32) -> (i32, i32) {
    %c0_i32 = arith.constant 0 : i32
    %c0_i32_0 = arith.constant 0 : i32
    %c0_i32_1 = arith.constant 0 : i32
    return %c0_i32, %c0_i32_0 : i32, i32
  }
  func.func @transform_4(%arg0: i32) -> (i32, i32) {
    %c0_i32 = arith.constant 0 : i32
    %c0_i32_0 = arith.constant 0 : i32
    %c0_i32_1 = arith.constant 0 : i32
    return %c0_i32, %c0_i32_0 : i32, i32
  }
  func.func @transform_5(%arg0: i32) -> (i32, i32) {
    %c0_i32 = arith.constant 0 : i32
    %c0_i32_0 = arith.constant 0 : i32
    return %arg0, %c0_i32 : i32, i32
  }
}

module attributes {stable_mosaic.version = 11 : i64} {
  func.func @_fused_mha_kernel(%arg0: i32, %arg1: memref<1x8x32xf32, #tpu.memory_space<vmem>>, %arg2: memref<1x16x64xf32, #tpu.memory_space<vmem>>, %arg3: memref<1x8x16xf32, #tpu.memory_space<vmem>>, %arg4: memref<32x64xf32, #tpu.memory_space<vmem>>, %arg5: memref<1x64xf32, #tpu.memory_space<vmem>>, %arg6: memref<64x128xf32, #tpu.memory_space<vmem>>, %arg7: memref<1x128xf32, #tpu.memory_space<vmem>>, %arg8: memref<64x32xf32, #tpu.memory_space<vmem>>, %arg9: memref<1x32xf32, #tpu.memory_space<vmem>>, %arg10: memref<1x8x32xf32, #tpu.memory_space<vmem>>, %arg11: memref<1x4x8x16xf32, #tpu.memory_space<vmem>>) attributes {dimension_semantics = [#tpu.dimension_semantics<parallel>], iteration_bounds = array<i64: 2>, scalar_prefetch = 0 : i64, scratch_operands = 0 : i64, tpu.core_type = #tpu.core_type<tc>, window_params = [{transform_indices = @transform_0, window_bounds = array<i64: 1, 8, 32>}, {transform_indices = @transform_1, window_bounds = array<i64: 1, 16, 64>}, {transform_indices = @transform_2, window_bounds = array<i64: 1, 8, 16>}, {pipeline_mode = #tpu.pipeline_mode<synchronous>, transform_indices = @transform_3, window_bounds = array<i64: 32, 64>}, {pipeline_mode = #tpu.pipeline_mode<synchronous>, transform_indices = @transform_4, window_bounds = array<i64: 1, 64>}, {pipeline_mode = #tpu.pipeline_mode<synchronous>, transform_indices = @transform_5, window_bounds = array<i64: 64, 128>}, {pipeline_mode = #tpu.pipeline_mode<synchronous>, transform_indices = @transform_6, window_bounds = array<i64: 1, 128>}, {pipeline_mode = #tpu.pipeline_mode<synchronous>, transform_indices = @transform_7, window_bounds = array<i64: 64, 32>}, {pipeline_mode = #tpu.pipeline_mode<synchronous>, transform_indices = @transform_8, window_bounds = array<i64: 1, 32>}, {transform_indices = @transform_9, window_bounds = array<i64: 1, 8, 32>}, {transform_indices = @transform_10, window_bounds = array<i64: 1, 4, 8, 16>}]} {
    %c0 = arith.constant 0 : index
    %c0_0 = arith.constant 0 : index
    %c0_1 = arith.constant 0 : index
    %0 = vector.load %arg1[%c0, %c0_0, %c0_1] : memref<1x8x32xf32, #tpu.memory_space<vmem>>, vector<1x8x32xf32>
    %1 = vector.shape_cast %0 : vector<1x8x32xf32> to vector<8x32xf32>
    %c0_2 = arith.constant 0 : index
    %c0_3 = arith.constant 0 : index
    %c0_4 = arith.constant 0 : index
    %2 = vector.load %arg2[%c0_2, %c0_3, %c0_4] : memref<1x16x64xf32, #tpu.memory_space<vmem>>, vector<1x16x64xf32>
    %3 = vector.shape_cast %2 : vector<1x16x64xf32> to vector<16x64xf32>
    %c0_5 = arith.constant 0 : index
    %c0_6 = arith.constant 0 : index
    %c0_7 = arith.constant 0 : index
    %4 = vector.load %arg3[%c0_5, %c0_6, %c0_7] : memref<1x8x16xf32, #tpu.memory_space<vmem>>, vector<1x8x16xf32>
    %5 = vector.shape_cast %4 : vector<1x8x16xf32> to vector<8x16xf32>
    %cst = arith.constant 1.600000e+01 : f32
    %6 = math.sqrt %cst : f32
    %cst_8 = arith.constant 1.000000e+00 : f32
    %7 = arith.divf %cst_8, %6 : f32
    %c0_9 = arith.constant 0 : index
    %c0_10 = arith.constant 0 : index
    %8 = vector.load %arg4[%c0_9, %c0_10] : memref<32x64xf32, #tpu.memory_space<vmem>>, vector<32x64xf32>
    %cst_11 = arith.constant dense<0.000000e+00> : vector<8x64xf32>
    %9 = tpu.matmul %1, %8, %cst_11 {dimension_numbers = #tpu.dot_dimension_numbers<[1], [0], [0], [1], [0, 0, 1, 1], [], []>} : vector<8x32xf32>, vector<32x64xf32>, vector<8x64xf32> -> vector<8x64xf32>
    %c0_12 = arith.constant 0 : index
    %c0_13 = arith.constant 0 : index
    %10 = vector.load %arg5[%c0_12, %c0_13] : memref<1x64xf32, #tpu.memory_space<vmem>>, vector<1x64xf32>
    %11 = vector.broadcast %10 : vector<1x64xf32> to vector<8x64xf32>
    %12 = arith.addf %9, %11 : vector<8x64xf32>
    %13 = vector.broadcast %7 : f32 to vector<8x64xf32>
    %14 = arith.mulf %12, %13 : vector<8x64xf32>
    %c0_14 = arith.constant 0 : index
    %c0_15 = arith.constant 0 : index
    %15 = vector.load %arg6[%c0_14, %c0_15] : memref<64x128xf32, #tpu.memory_space<vmem>>, vector<64x128xf32>
    %cst_16 = arith.constant dense<0.000000e+00> : vector<16x128xf32>
    %16 = tpu.matmul %3, %15, %cst_16 {dimension_numbers = #tpu.dot_dimension_numbers<[1], [0], [0], [1], [0, 0, 1, 1], [], []>} : vector<16x64xf32>, vector<64x128xf32>, vector<16x128xf32> -> vector<16x128xf32>
    %c0_17 = arith.constant 0 : index
    %c0_18 = arith.constant 0 : index
    %17 = vector.load %arg7[%c0_17, %c0_18] : memref<1x128xf32, #tpu.memory_space<vmem>>, vector<1x128xf32>
    %18 = vector.broadcast %17 : vector<1x128xf32> to vector<16x128xf32>
    %19 = arith.addf %16, %18 : vector<16x128xf32>
    %20 = vector.extract_strided_slice %19 {offsets = [0, 0], sizes = [16, 64], strides = [1, 1]} : vector<16x128xf32> to vector<16x64xf32>
    %21 = vector.extract_strided_slice %19 {offsets = [0, 64], sizes = [16, 64], strides = [1, 1]} : vector<16x128xf32> to vector<16x64xf32>
    %22 = vector.extract_strided_slice %14 {offsets = [0, 0], sizes = [8, 16], strides = [1, 1]} : vector<8x64xf32> to vector<8x16xf32>
    %23 = vector.extract_strided_slice %20 {offsets = [0, 0], sizes = [16, 16], strides = [1, 1]} : vector<16x64xf32> to vector<16x16xf32>
    %24 = vector.extract_strided_slice %21 {offsets = [0, 0], sizes = [16, 16], strides = [1, 1]} : vector<16x64xf32> to vector<16x16xf32>
    %25 = tpu.transpose %23, [1, 0] : vector<16x16xf32> -> vector<16x16xf32>
    %cst_19 = arith.constant dense<0.000000e+00> : vector<8x16xf32>
    %26 = tpu.matmul %22, %25, %cst_19 {dimension_numbers = #tpu.dot_dimension_numbers<[1], [0], [0], [1], [0, 0, 1, 1], [], []>} : vector<8x16xf32>, vector<16x16xf32>, vector<8x16xf32> -> vector<8x16xf32>
    %27 = arith.addf %26, %5 : vector<8x16xf32>
    %cst_20 = arith.constant dense<0xFF800000> : vector<8xf32>
    %28 = vector.multi_reduction <maximumf>, %27, %cst_20 [1] : vector<8x16xf32> to vector<8xf32>
    %29 = vector.shape_cast %28 : vector<8xf32> to vector<8x1xf32>
    %30 = vector.broadcast %29 : vector<8x1xf32> to vector<8x16xf32>
    %31 = arith.subf %27, %30 : vector<8x16xf32>
    %32 = math.exp %31 : vector<8x16xf32>
    %cst_21 = arith.constant dense<0.000000e+00> : vector<8xf32>
    %33 = vector.multi_reduction <add>, %32, %cst_21 [1] : vector<8x16xf32> to vector<8xf32>
    %34 = vector.shape_cast %33 : vector<8xf32> to vector<8x1xf32>
    %35 = vector.broadcast %34 : vector<8x1xf32> to vector<8x16xf32>
    %36 = arith.divf %32, %35 : vector<8x16xf32>
    %c0_22 = arith.constant 0 : index
    %c0_23 = arith.constant 0 : index
    %c0_24 = arith.constant 0 : index
    %c0_25 = arith.constant 0 : index
    %37 = vector.load %arg11[%c0_22, %c0_23, %c0_24, %c0_25] : memref<1x4x8x16xf32, #tpu.memory_space<vmem>>, vector<1x1x8x16xf32>
    %38 = vector.shape_cast %37 : vector<1x1x8x16xf32> to vector<8x16xf32>
    %39 = vector.shape_cast %36 : vector<8x16xf32> to vector<1x1x8x16xf32>
    tpu.vector_store %arg11[%c0_22, %c0_23, %c0_24, %c0_25], %39 {strides = array<i32>} : memref<1x4x8x16xf32, #tpu.memory_space<vmem>>, vector<1x1x8x16xf32>,
    %cst_26 = arith.constant dense<0.000000e+00> : vector<8x16xf32>
    %40 = tpu.matmul %36, %24, %cst_26 {dimension_numbers = #tpu.dot_dimension_numbers<[1], [0], [0], [1], [0, 0, 1, 1], [], []>} : vector<8x16xf32>, vector<16x16xf32>, vector<8x16xf32> -> vector<8x16xf32>
    %41 = vector.extract_strided_slice %14 {offsets = [0, 16], sizes = [8, 16], strides = [1, 1]} : vector<8x64xf32> to vector<8x16xf32>
    %42 = vector.extract_strided_slice %20 {offsets = [0, 16], sizes = [16, 16], strides = [1, 1]} : vector<16x64xf32> to vector<16x16xf32>
    %43 = vector.extract_strided_slice %21 {offsets = [0, 16], sizes = [16, 16], strides = [1, 1]} : vector<16x64xf32> to vector<16x16xf32>
    %44 = tpu.transpose %42, [1, 0] : vector<16x16xf32> -> vector<16x16xf32>
    %cst_27 = arith.constant dense<0.000000e+00> : vector<8x16xf32>
    %45 = tpu.matmul %41, %44, %cst_27 {dimension_numbers = #tpu.dot_dimension_numbers<[1], [0], [0], [1], [0, 0, 1, 1], [], []>} : vector<8x16xf32>, vector<16x16xf32>, vector<8x16xf32> -> vector<8x16xf32>
    %46 = arith.addf %45, %5 : vector<8x16xf32>
    %cst_28 = arith.constant dense<0xFF800000> : vector<8xf32>
    %47 = vector.multi_reduction <maximumf>, %46, %cst_28 [1] : vector<8x16xf32> to vector<8xf32>
    %48 = vector.shape_cast %47 : vector<8xf32> to vector<8x1xf32>
    %49 = vector.broadcast %48 : vector<8x1xf32> to vector<8x16xf32>
    %50 = arith.subf %46, %49 : vector<8x16xf32>
    %51 = math.exp %50 : vector<8x16xf32>
    %cst_29 = arith.constant dense<0.000000e+00> : vector<8xf32>
    %52 = vector.multi_reduction <add>, %51, %cst_29 [1] : vector<8x16xf32> to vector<8xf32>
    %53 = vector.shape_cast %52 : vector<8xf32> to vector<8x1xf32>
    %54 = vector.broadcast %53 : vector<8x1xf32> to vector<8x16xf32>
    %55 = arith.divf %51, %54 : vector<8x16xf32>
    %c0_30 = arith.constant 0 : index
    %c1 = arith.constant 1 : index
    %c0_31 = arith.constant 0 : index
    %c0_32 = arith.constant 0 : index
    %56 = vector.load %arg11[%c0_30, %c1, %c0_31, %c0_32] : memref<1x4x8x16xf32, #tpu.memory_space<vmem>>, vector<1x1x8x16xf32>
    %57 = vector.shape_cast %56 : vector<1x1x8x16xf32> to vector<8x16xf32>
    %58 = vector.shape_cast %55 : vector<8x16xf32> to vector<1x1x8x16xf32>
    tpu.vector_store %arg11[%c0_30, %c1, %c0_31, %c0_32], %58 {strides = array<i32>} : memref<1x4x8x16xf32, #tpu.memory_space<vmem>>, vector<1x1x8x16xf32>,
    %cst_33 = arith.constant dense<0.000000e+00> : vector<8x16xf32>
    %59 = tpu.matmul %55, %43, %cst_33 {dimension_numbers = #tpu.dot_dimension_numbers<[1], [0], [0], [1], [0, 0, 1, 1], [], []>} : vector<8x16xf32>, vector<16x16xf32>, vector<8x16xf32> -> vector<8x16xf32>
    %60 = vector.extract_strided_slice %14 {offsets = [0, 32], sizes = [8, 16], strides = [1, 1]} : vector<8x64xf32> to vector<8x16xf32>
    %61 = vector.extract_strided_slice %20 {offsets = [0, 32], sizes = [16, 16], strides = [1, 1]} : vector<16x64xf32> to vector<16x16xf32>
    %62 = vector.extract_strided_slice %21 {offsets = [0, 32], sizes = [16, 16], strides = [1, 1]} : vector<16x64xf32> to vector<16x16xf32>
    %63 = tpu.transpose %61, [1, 0] : vector<16x16xf32> -> vector<16x16xf32>
    %cst_34 = arith.constant dense<0.000000e+00> : vector<8x16xf32>
    %64 = tpu.matmul %60, %63, %cst_34 {dimension_numbers = #tpu.dot_dimension_numbers<[1], [0], [0], [1], [0, 0, 1, 1], [], []>} : vector<8x16xf32>, vector<16x16xf32>, vector<8x16xf32> -> vector<8x16xf32>
    %65 = arith.addf %64, %5 : vector<8x16xf32>
    %cst_35 = arith.constant dense<0xFF800000> : vector<8xf32>
    %66 = vector.multi_reduction <maximumf>, %65, %cst_35 [1] : vector<8x16xf32> to vector<8xf32>
    %67 = vector.shape_cast %66 : vector<8xf32> to vector<8x1xf32>
    %68 = vector.broadcast %67 : vector<8x1xf32> to vector<8x16xf32>
    %69 = arith.subf %65, %68 : vector<8x16xf32>
    %70 = math.exp %69 : vector<8x16xf32>
    %cst_36 = arith.constant dense<0.000000e+00> : vector<8xf32>
    %71 = vector.multi_reduction <add>, %70, %cst_36 [1] : vector<8x16xf32> to vector<8xf32>
    %72 = vector.shape_cast %71 : vector<8xf32> to vector<8x1xf32>
    %73 = vector.broadcast %72 : vector<8x1xf32> to vector<8x16xf32>
    %74 = arith.divf %70, %73 : vector<8x16xf32>
    %c0_37 = arith.constant 0 : index
    %c2 = arith.constant 2 : index
    %c0_38 = arith.constant 0 : index
    %c0_39 = arith.constant 0 : index
    %75 = vector.load %arg11[%c0_37, %c2, %c0_38, %c0_39] : memref<1x4x8x16xf32, #tpu.memory_space<vmem>>, vector<1x1x8x16xf32>
    %76 = vector.shape_cast %75 : vector<1x1x8x16xf32> to vector<8x16xf32>
    %77 = vector.shape_cast %74 : vector<8x16xf32> to vector<1x1x8x16xf32>
    tpu.vector_store %arg11[%c0_37, %c2, %c0_38, %c0_39], %77 {strides = array<i32>} : memref<1x4x8x16xf32, #tpu.memory_space<vmem>>, vector<1x1x8x16xf32>,
    %cst_40 = arith.constant dense<0.000000e+00> : vector<8x16xf32>
    %78 = tpu.matmul %74, %62, %cst_40 {dimension_numbers = #tpu.dot_dimension_numbers<[1], [0], [0], [1], [0, 0, 1, 1], [], []>} : vector<8x16xf32>, vector<16x16xf32>, vector<8x16xf32> -> vector<8x16xf32>
    %79 = vector.extract_strided_slice %14 {offsets = [0, 48], sizes = [8, 16], strides = [1, 1]} : vector<8x64xf32> to vector<8x16xf32>
    %80 = vector.extract_strided_slice %20 {offsets = [0, 48], sizes = [16, 16], strides = [1, 1]} : vector<16x64xf32> to vector<16x16xf32>
    %81 = vector.extract_strided_slice %21 {offsets = [0, 48], sizes = [16, 16], strides = [1, 1]} : vector<16x64xf32> to vector<16x16xf32>
    %82 = tpu.transpose %80, [1, 0] : vector<16x16xf32> -> vector<16x16xf32>
    %cst_41 = arith.constant dense<0.000000e+00> : vector<8x16xf32>
    %83 = tpu.matmul %79, %82, %cst_41 {dimension_numbers = #tpu.dot_dimension_numbers<[1], [0], [0], [1], [0, 0, 1, 1], [], []>} : vector<8x16xf32>, vector<16x16xf32>, vector<8x16xf32> -> vector<8x16xf32>
    %84 = arith.addf %83, %5 : vector<8x16xf32>
    %cst_42 = arith.constant dense<0xFF800000> : vector<8xf32>
    %85 = vector.multi_reduction <maximumf>, %84, %cst_42 [1] : vector<8x16xf32> to vector<8xf32>
    %86 = vector.shape_cast %85 : vector<8xf32> to vector<8x1xf32>
    %87 = vector.broadcast %86 : vector<8x1xf32> to vector<8x16xf32>
    %88 = arith.subf %84, %87 : vector<8x16xf32>
    %89 = math.exp %88 : vector<8x16xf32>
    %cst_43 = arith.constant dense<0.000000e+00> : vector<8xf32>
    %90 = vector.multi_reduction <add>, %89, %cst_43 [1] : vector<8x16xf32> to vector<8xf32>
    %91 = vector.shape_cast %90 : vector<8xf32> to vector<8x1xf32>
    %92 = vector.broadcast %91 : vector<8x1xf32> to vector<8x16xf32>
    %93 = arith.divf %89, %92 : vector<8x16xf32>
    %c0_44 = arith.constant 0 : index
    %c3 = arith.constant 3 : index
    %c0_45 = arith.constant 0 : index
    %c0_46 = arith.constant 0 : index
    %94 = vector.load %arg11[%c0_44, %c3, %c0_45, %c0_46] : memref<1x4x8x16xf32, #tpu.memory_space<vmem>>, vector<1x1x8x16xf32>
    %95 = vector.shape_cast %94 : vector<1x1x8x16xf32> to vector<8x16xf32>
    %96 = vector.shape_cast %93 : vector<8x16xf32> to vector<1x1x8x16xf32>
    tpu.vector_store %arg11[%c0_44, %c3, %c0_45, %c0_46], %96 {strides = array<i32>} : memref<1x4x8x16xf32, #tpu.memory_space<vmem>>, vector<1x1x8x16xf32>,
    %cst_47 = arith.constant dense<0.000000e+00> : vector<8x16xf32>
    %97 = tpu.matmul %93, %81, %cst_47 {dimension_numbers = #tpu.dot_dimension_numbers<[1], [0], [0], [1], [0, 0, 1, 1], [], []>} : vector<8x16xf32>, vector<16x16xf32>, vector<8x16xf32> -> vector<8x16xf32>
    %98 = tpu.concatenate %40, %59, %78, %97 in 1 : vector<8x16xf32>, vector<8x16xf32>, vector<8x16xf32>, vector<8x16xf32> -> vector<8x64xf32>
    %c0_48 = arith.constant 0 : index
    %c0_49 = arith.constant 0 : index
    %99 = vector.load %arg8[%c0_48, %c0_49] : memref<64x32xf32, #tpu.memory_space<vmem>>, vector<64x32xf32>
    %cst_50 = arith.constant dense<0.000000e+00> : vector<8x32xf32>
    %100 = tpu.matmul %98, %99, %cst_50 {dimension_numbers = #tpu.dot_dimension_numbers<[1], [0], [0], [1], [0, 0, 1, 1], [], []>} : vector<8x64xf32>, vector<64x32xf32>, vector<8x32xf32> -> vector<8x32xf32>
    %c0_51 = arith.constant 0 : index
    %c0_52 = arith.constant 0 : index
    %101 = vector.load %arg9[%c0_51, %c0_52] : memref<1x32xf32, #tpu.memory_space<vmem>>, vector<1x32xf32>
    %102 = vector.broadcast %101 : vector<1x32xf32> to vector<8x32xf32>
    %103 = arith.addf %100, %102 : vector<8x32xf32>
    %104 = arith.addf %103, %1 : vector<8x32xf32>
    %cst_53 = arith.constant dense<0.000000e+00> : vector<8xf32>
    %105 = vector.multi_reduction <add>, %104, %cst_53 [1] : vector<8x32xf32> to vector<8xf32>
    %106 = vector.shape_cast %105 : vector<8xf32> to vector<8x1xf32>
    %cst_54 = arith.constant 3.200000e+01 : f32
    %107 = vector.broadcast %cst_54 : f32 to vector<8x1xf32>
    %108 = arith.divf %106, %107 : vector<8x1xf32>
    %109 = vector.broadcast %108 : vector<8x1xf32> to vector<8x32xf32>
    %110 = arith.subf %104, %109 : vector<8x32xf32>
    %111 = arith.mulf %110, %110 : vector<8x32xf32>
    %cst_55 = arith.constant dense<0.000000e+00> : vector<8xf32>
    %112 = vector.multi_reduction <add>, %111, %cst_55 [1] : vector<8x32xf32> to vector<8xf32>
    %113 = vector.shape_cast %112 : vector<8xf32> to vector<8x1xf32>
    %cst_56 = arith.constant 3.200000e+01 : f32
    %114 = vector.broadcast %cst_56 : f32 to vector<8x1xf32>
    %115 = arith.divf %113, %114 : vector<8x1xf32>
    %116 = vector.broadcast %108 : vector<8x1xf32> to vector<8x32xf32>
    %117 = arith.subf %104, %116 : vector<8x32xf32>
    %cst_57 = arith.constant 9.99999974E-6 : f32
    %118 = vector.broadcast %cst_57 : f32 to vector<8x1xf32>
    %119 = arith.addf %115, %118 : vector<8x1xf32>
    %120 = math.rsqrt %119 : vector<8x1xf32>
    %121 = vector.broadcast %120 : vector<8x1xf32> to vector<8x32xf32>
    %122 = arith.mulf %117, %121 : vector<8x32xf32>
    %c0_58 = arith.constant 0 : index
    %c0_59 = arith.constant 0 : index
    %c0_60 = arith.constant 0 : index
    %123 = vector.load %arg10[%c0_58, %c0_59, %c0_60] : memref<1x8x32xf32, #tpu.memory_space<vmem>>, vector<1x8x32xf32>
    %124 = vector.shape_cast %123 : vector<1x8x32xf32> to vector<8x32xf32>
    %125 = vector.shape_cast %122 : vector<8x32xf32> to vector<1x8x32xf32>
    tpu.vector_store %arg10[%c0_58, %c0_59, %c0_60], %125 {strides = array<i32>} : memref<1x8x32xf32, #tpu.memory_space<vmem>>, vector<1x8x32xf32>,
    return
  }
  func.func @transform_0(%arg0: i32) -> (i32, i32, i32) {
    %c0_i32 = arith.constant 0 : i32
    %c0_i32_0 = arith.constant 0 : i32
    %c0_i32_1 = arith.constant 0 : i32
    return %arg0, %c0_i32, %c0_i32_0 : i32, i32, i32
  }
  func.func @transform_1(%arg0: i32) -> (i32, i32, i32) {
    %c0_i32 = arith.constant 0 : i32
    %c0_i32_0 = arith.constant 0 : i32
    %c0_i32_1 = arith.constant 0 : i32
    return %arg0, %c0_i32, %c0_i32_0 : i32, i32, i32
  }
  func.func @transform_2(%arg0: i32) -> (i32, i32, i32) {
    %c0_i32 = arith.constant 0 : i32
    %c0_i32_0 = arith.constant 0 : i32
    %c0_i32_1 = arith.constant 0 : i32
    return %arg0, %c0_i32, %c0_i32_0 : i32, i32, i32
  }
  func.func @transform_3(%arg0: i32) -> (i32, i32) {
    %c0_i32 = arith.constant 0 : i32
    %c0_i32_0 = arith.constant 0 : i32
    %c0_i32_1 = arith.constant 0 : i32
    return %c0_i32, %c0_i32_0 : i32, i32
  }
  func.func @transform_4(%arg0: i32) -> (i32, i32) {
    %c0_i32 = arith.constant 0 : i32
    %c0_i32_0 = arith.constant 0 : i32
    %c0_i32_1 = arith.constant 0 : i32
    return %c0_i32, %c0_i32_0 : i32, i32
  }
  func.func @transform_5(%arg0: i32) -> (i32, i32) {
    %c0_i32 = arith.constant 0 : i32
    %c0_i32_0 = arith.constant 0 : i32
    %c0_i32_1 = arith.constant 0 : i32
    return %c0_i32, %c0_i32_0 : i32, i32
  }
  func.func @transform_6(%arg0: i32) -> (i32, i32) {
    %c0_i32 = arith.constant 0 : i32
    %c0_i32_0 = arith.constant 0 : i32
    %c0_i32_1 = arith.constant 0 : i32
    return %c0_i32, %c0_i32_0 : i32, i32
  }
  func.func @transform_7(%arg0: i32) -> (i32, i32) {
    %c0_i32 = arith.constant 0 : i32
    %c0_i32_0 = arith.constant 0 : i32
    %c0_i32_1 = arith.constant 0 : i32
    return %c0_i32, %c0_i32_0 : i32, i32
  }
  func.func @transform_8(%arg0: i32) -> (i32, i32) {
    %c0_i32 = arith.constant 0 : i32
    %c0_i32_0 = arith.constant 0 : i32
    %c0_i32_1 = arith.constant 0 : i32
    return %c0_i32, %c0_i32_0 : i32, i32
  }
  func.func @transform_9(%arg0: i32) -> (i32, i32, i32) {
    %c0_i32 = arith.constant 0 : i32
    %c0_i32_0 = arith.constant 0 : i32
    %c0_i32_1 = arith.constant 0 : i32
    return %arg0, %c0_i32, %c0_i32_0 : i32, i32, i32
  }
  func.func @transform_10(%arg0: i32) -> (i32, i32, i32, i32) {
    %c0_i32 = arith.constant 0 : i32
    %c0_i32_0 = arith.constant 0 : i32
    %c0_i32_1 = arith.constant 0 : i32
    %c0_i32_2 = arith.constant 0 : i32
    return %arg0, %c0_i32, %c0_i32_0, %c0_i32_1 : i32, i32, i32, i32
  }
}

</mosaic_0001>

<llo_original>
// kernel: decoder_forward.13
$region0: #{decoder_forward.13}
  #allocation0 [shape = 'u32[]', space=smem, size = 0x4, offset = 0x4, fixed_abs, tag = 'smem constant byte address 0x4 - core index']
  #allocation1 [shape = 'u32[144,128]{1,0:T(1,128)}', space=vmem, size = 0x12000, scoped, tag = 'internal scratch']
  %s0 = inlined_call_operand.vmem [shape: f32[16,32], index: 0, kind: input, shape index: {}]
  %s1 = inlined_call_operand.vmem [shape: f32[32,50], index: 1, kind: input, shape index: {}]
  %s2 = inlined_call_operand.vmem [shape: f32[1,50], index: 2, kind: input, shape index: {}]
  %s3 = inlined_call_operand.hbm [shape: f32[16,50], index: 3, kind: output, shape index: {}]
  %s4 = sld [smem:[#allocation0]]
  $region45: #{decoder_forward.13} parent=0
    _
  %s6 = ssub.s32 1, %s4
  %s7 = scalar_select 0, %s6, %s4
  $region1: #{decoder_forward.13} parent=0
    #allocation2 [shape = 'u8[8192]{0}', space=vmem, size = 0x2000, scoped, tag = 'output window, operand 0']
    #allocation3 [shape = 's32[2]{0}', space=sflag, size = 0x8, scoped, tag = 'scoped memory for decoder_forward.13']
    %8 = vsyncpa [#allocation3], 0
    %s9 = scalar_lea.sflag [#allocation3], 1
    %10 = vsyncpa %s9, 0
    loop: start=0, step=1, limit=4
    $region2: #{decoder_forward.13} parent=1 // loop_pre_header
      _
    $region3: #{decoder_forward.13} parent=1 // loop_header
      %s12 = sphi 0, %s16
      %p13 = scmp.ge.s32.totalorder %s12, 4
      %s22 = sphi 0, %s24
      %s25 = sphi 0, %s22
      %s26 = sphi 0, %s25
      %s42 = sphi 0, %s26
      %s46 = sphi 0, %s46
      %s48 = sphi 0, %s46
      %s49 = sphi 0, %s48
      %s63 = sphi 0, %s49
      %s67 = sphi 0, %s67
      %s69 = sphi 0, %s67
      %s70 = sphi 0, %s69
      %s84 = sphi 0, %s70
      %s90 = sphi 0, %s92
      %s93 = sphi 0, %s90
      %s94 = sphi 0, %s93
      %s110 = sphi 0, %s94
    $region4: #{decoder_forward.13} parent=1 // loop_header_branch
      %15 = sbr.rel (%p13) target = $region8
    $region5: #{decoder_forward.13} parent=1 // loop_body
      %s17 = ssub.s32 %s12, 1
      %s18 = ssub.s32 %s12, 2
      %s19 = sadd.s32 %s12, 1
      %s20 = ssub.s32 %s12, %s19
      %p21 = scmp.eq.s32.totalorder %s20, 0
      %s23 = sadd.s32 %s22, 1
      %s24 = scalar_select %p21, %s22, %s23
      %p27 = pneg %p21
      %p28 = scmp.eq.s32.totalorder %s12, 1
      %p29 = por %p27, %p28
      %p30 = scmp.ne.s32.totalorder %s22, %s25
      %p31 = scmp.eq.s32.totalorder %s12, 0
      %p32 = por %p30, %p31
      %p33 = scmp.ne.s32.totalorder %s22, %s25
      %p34 = scmp.eq.s32.totalorder %s17, 1
      %p35 = por %p33, %p34
      %p36 = scmp.ne.s32.totalorder %s25, %s26
      %p37 = scmp.eq.s32.totalorder %s17, 0
      %p38 = por %p36, %p37
      %p39 = scmp.ne.s32.totalorder %s25, %s26
      %p40 = scmp.eq.s32.totalorder %s18, 1
      %p41 = por %p39, %p40
      %p43 = scmp.ne.s32.totalorder %s26, %s42
      %p44 = scmp.eq.s32.totalorder %s18, 0
      %p45 = por %p43, %p44
      %s47 = sadd.s32 %s46, 1
      %p50 = scmp.eq.s32.totalorder %s12, 1
      %p51 = scmp.ne.s32.totalorder %s46, %s48
      %p52 = scmp.eq.s32.totalorder %s12, 0
      %p53 = por %p51, %p52
      %p54 = scmp.ne.s32.totalorder %s46, %s48
      %p55 = scmp.eq.s32.totalorder %s17, 1
      %p56 = por %p54, %p55
      %p57 = scmp.ne.s32.totalorder %s48, %s49
      %p58 = scmp.eq.s32.totalorder %s17, 0
      %p59 = por %p57, %p58
      %p60 = scmp.ne.s32.totalorder %s48, %s49
      %p61 = scmp.eq.s32.totalorder %s18, 1
      %p62 = por %p60, %p61
      %p64 = scmp.ne.s32.totalorder %s49, %s63
      %p65 = scmp.eq.s32.totalorder %s18, 0
      %p66 = por %p64, %p65
      %s68 = sadd.s32 %s67, 1
      %p71 = scmp.eq.s32.totalorder %s12, 1
      %p72 = scmp.ne.s32.totalorder %s67, %s69
      %p73 = scmp.eq.s32.totalorder %s12, 0
      %p74 = por %p72, %p73
      %p75 = scmp.ne.s32.totalorder %s67, %s69
      %p76 = scmp.eq.s32.totalorder %s17, 1
      %p77 = por %p75, %p76
      %p78 = scmp.ne.s32.totalorder %s69, %s70
      %p79 = scmp.eq.s32.totalorder %s17, 0
      %p80 = por %p78, %p79
      %p81 = scmp.ne.s32.totalorder %s69, %s70
      %p82 = scmp.eq.s32.totalorder %s18, 1
      %p83 = por %p81, %p82
      %p85 = scmp.ne.s32.totalorder %s70, %s84
      %p86 = scmp.eq.s32.totalorder %s18, 0
      %p87 = por %p85, %p86
      %s88 = ssub.s32 %s12, %s19
      %p89 = scmp.eq.s32.totalorder %s88, 0
      %s91 = sadd.s32 %s90, 1
      %s92 = scalar_select %p89, %s90, %s91
      %p95 = pneg %p89
      %p96 = scmp.eq.s32.totalorder %s12, 1
      %p97 = por %p95, %p96
      %p98 = scmp.ne.s32.totalorder %s90, %s93
      %p99 = scmp.eq.s32.totalorder %s12, 0
      %p100 = por %p98, %p99
      %p101 = scmp.ne.s32.totalorder %s90, %s93
      %p102 = scmp.eq.s32.totalorder %s17, 1
      %p103 = por %p101, %p102
      %p104 = scmp.ne.s32.totalorder %s93, %s94
      %p105 = scmp.eq.s32.totalorder %s17, 0
      %p106 = por %p104, %p105
      %p107 = scmp.ne.s32.totalorder %s93, %s94
      %p108 = scmp.eq.s32.totalorder %s18, 1
      %p109 = por %p107, %p108
      %p111 = scmp.ne.s32.totalorder %s94, %s110
      %p112 = scmp.eq.s32.totalorder %s18, 0
      %p113 = por %p111, %p112
      %p114 = scmp.le.s32.totalorder 1, %s12
      %p115 = scmp.lt.s32.totalorder %s12, 3
      %p116 = pnand %p114, %p115
      %p117 = pneg %p116
      // Predicated region
      $region9: #{decoder_forward.13} parent=5 // pred_check
        _
      $region10: #{decoder_forward.13} parent=5 // pred_check_branch
        %119 = sbr.rel (%p116) target = $region12
      $region11: #{decoder_forward.13} parent=5 // pred_region
        %s120 = ssub.s32 %s12, 1
        // Predicated region
        $region13: #{decoder_forward.13} parent=11 // pred_check
          %p121 = pneg %p59
        $region14: #{decoder_forward.13} parent=11 // pred_check_branch
          %123 = sbr.rel (%p121) target = $region16
        $region15: #{decoder_forward.13} parent=11 // pred_region
          _
        $region16: #{decoder_forward.13} parent=11 // pred_fallthru
          _
        // Predicated region
        $region17: #{decoder_forward.13} parent=11 // pred_check
          %p124 = pneg %p80
        $region18: #{decoder_forward.13} parent=11 // pred_check_branch
          %126 = sbr.rel (%p124) target = $region20
        $region19: #{decoder_forward.13} parent=11 // pred_region
          _
        $region20: #{decoder_forward.13} parent=11 // pred_fallthru
          _
      $region12: #{decoder_forward.13} parent=5 // pred_fallthru
        _
      %p127 = scmp.lt.s32.totalorder %s12, 2
      // Predicated region
      $region21: #{decoder_forward.13} parent=5 // pred_check
        %p128 = pneg %p127
      $region22: #{decoder_forward.13} parent=5 // pred_check_branch
        %130 = sbr.rel (%p128) target = $region24
      $region23: #{decoder_forward.13} parent=5 // pred_region
        // Predicated region
        $region25: #{decoder_forward.13} parent=23 // pred_check
          %p131 = pneg %p32
        $region26: #{decoder_forward.13} parent=23 // pred_check_branch
          %133 = sbr.rel (%p131) target = $region28
        $region27: #{decoder_forward.13} parent=23 // pred_region
          %p134 = scmp.lt.s32.totalorder %s12, 1
          %s135 = scalar_select %p134, %s12, 1
          %s136 = smul.addr %s135, 8
          %s137 = scalar_lea.vmem %s0, %s136
        $region28: #{decoder_forward.13} parent=23 // pred_fallthru
          _
      $region24: #{decoder_forward.13} parent=5 // pred_fallthru
        _
      %p138 = scmp.le.s32.totalorder 1, %s12
      %p139 = scmp.lt.s32.totalorder %s12, 3
      %p140 = pnand %p138, %p139
      %p141 = pneg %p140
      // Predicated region
      $region29: #{decoder_forward.13} parent=5 // pred_check
        _
      $region30: #{decoder_forward.13} parent=5 // pred_check_branch
        %143 = sbr.rel (%p140) target = $region32
      $region31: #{decoder_forward.13} parent=5 // pred_region
        %s144 = ssub.s32 %s12, 1
        %p145 = scmp.lt.s32.totalorder %s17, 1
        %s146 = scalar_select %p145, %s17, 1
        %s147 = smul.addr %s146, 8
        %s148 = scalar_lea.vmem %s0, %s147
        %p149 = pneg %p38
        %p150 = pneg %p35
        %p151 = pneg %p59
        %p152 = pneg %p56
        %p153 = pneg %p80
        %p154 = pneg %p77
        %p155 = pneg %p106
        %p156 = pneg %p103
        %s157 = sand.u32 %s93, 1
        %s158 = scalar_lea.sflag [#allocation3], %s157
        %s159 = sand.u32 %s93, 1
        %s160 = smul.addr %s159, 8
        %s161 = scalar_lea.vmem [#allocation2], %s160
        %p162 = scmp.lt.s32.totalorder %s17, 1
        %s163 = scalar_select %p162, %s17, 1
        %s164 = smul.addr %s163, 8
        %s165 = scalar_lea.vmem %s0, %s164
        %v166 = vld [vmem:[%s165] sm:$0xff]
        %v167 = vld [vmem:[%s1] sm:$0xff]
        %v168 = vld [vmem:[%s1 + $0x8] sm:$0xff]
        %v169 = vld [vmem:[%s1 + $0x10] sm:$0xff]
        %v170 = vld [vmem:[%s1 + $0x18] sm:$0xff]
        %v171 = vld [vmem:[%s2] sm:$0x1]
        %v173 = vlaneseq
        %v174 = vshrl.u32 %v173, 7
        %v175 = vsub.s32 0, %v174
        %v176 = vrot.slane %v171, %v175
        %vm178 = vcmask 261120
        %v180 = vsel %vm178, %v166, 0
        %182 = vmatprep.subr.mxu0 0.0
        %183 = vmatpush1.msra.mxu0 %v167
        %184 = vmatprep.subr.mxu0 0.0
        %185 = vmatpush1.msra.mxu0 %v168
        %186 = vmatprep.subr.mxu0 0.0
        %187 = vmatpush1.msra.mxu0 %v169
        %188 = vmatprep.subr.mxu0 0.0
        %189 = vmatpush1.msra.mxu0 %v170
        %190 = vmatprep.subr.mxu0 0.0
        %191 = vmatpush1.msra.mxu0 0.0
        %192 = vmatprep.subr.mxu0 0.0
        %193 = vmatpush1.msra.mxu0 0.0
        %194 = vmatprep.subr.mxu0 0.0
        %195 = vmatpush1.msra.mxu0 0.0
        %196 = vmatprep.subr.mxu0 0.0
        %197 = vmatpush1.msra.mxu0 0.0
        %198 = vmatprep.subr.mxu0 0.0
        %199 = vmatpush1.msra.mxu0 0.0
        %200 = vmatprep.subr.mxu0 0.0
        %201 = vmatpush1.msra.mxu0 0.0
        %202 = vmatprep.subr.mxu0 0.0
        %203 = vmatpush1.msra.mxu0 0.0
        %204 = vmatprep.subr.mxu0 0.0
        %205 = vmatpush1.msra.mxu0 0.0
        %206 = vmatprep.subr.mxu0 0.0
        %207 = vmatpush1.msra.mxu0 0.0
        %208 = vmatprep.subr.mxu0 0.0
        %209 = vmatpush1.msra.mxu0 0.0
        %210 = vmatprep.subr.mxu0 0.0
        %211 = vmatpush1.msra.mxu0 0.0
        %212 = vmatprep.subr.mxu0 0.0
        %213 = vmatpush1.msra.mxu0 0.0
        %214 = vmatprep.subr.mxu0 0.0
        %215 = vmatpush1.msra.mxu0 0.0
        %216 = vmatprep.subr.mxu0 0.0
        %217 = vmatpush1.msra.mxu0 0.0
        %218 = vmatprep.subr.mxu0 0.0
        %219 = vmatpush1.msra.mxu0 0.0
        %220 = vmatprep.subr.mxu0 0.0
        %221 = vmatpush1.msra.mxu0 0.0
        %222 = vmatprep.subr.mxu0 0.0
        %223 = vmatpush1.msra.mxu0 0.0
        %224 = vmatprep.subr.mxu0 0.0
        %225 = vmatpush1.msra.mxu0 0.0
        %226 = vmatprep.subr.mxu0 0.0
        %227 = vmatpush1.msra.mxu0 0.0
        %228 = vmatprep.subr.mxu0 0.0
        %229 = vmatpush1.msra.mxu0 0.0
        %230 = vmatprep.subr.mxu0 0.0
        %231 = vmatpush1.msra.mxu0 0.0
        %232 = vmatprep.subr.mxu0 0.0
        %233 = vmatpush1.msra.mxu0 0.0
        %234 = vmatprep.subr.mxu0 0.0
        %235 = vmatpush1.msra.mxu0 0.0
        %236 = vmatprep.subr.mxu0 0.0
        %237 = vmatpush1.msra.mxu0 0.0
        %238 = vmatprep.subr.mxu0 0.0
        %239 = vmatpush1.msra.mxu0 0.0
        %240 = vmatprep.subr.mxu0 0.0
        %241 = vmatpush1.msra.mxu0 0.0
        %242 = vmatprep.subr.mxu0 0.0
        %243 = vmatpush1.msra.mxu0 0.0
        %244 = vmatprep.subr.mxu0 0.0
        %245 = vmatpush1.msra.mxu0 0.0
        %246 = vmatprep.mubr.f32.mxu0 0.0
        %247 = vmatmul.mubr.f32.gmra.mrb[0].mxu0 %v180
        %v248 = vpop.f32.mrb[0].mxu0
        %v249 = vadd.f32 %v176, %v248
        %v250 = vpop.f32.mrb[0].mxu0
        %251 = vdwg.mxu0
        %vm252 = vcmask 408576
        %253 = vst.msk [vmem:[%s161] sm:$0xff] %vm252, %v249
        %s254 = sand.u32 %s93, 1
        %s255 = scalar_lea.sflag [#allocation3], %s254
        %s256 = sand.u32 %s93, 1
        %s257 = smul.addr %s256, 8
        %s258 = scalar_lea.vmem [#allocation2], %s257
        // Predicated region
        $region33: #{decoder_forward.13} parent=31 // pred_check
          %p259 = pneg %p103
        $region34: #{decoder_forward.13} parent=31 // pred_check_branch
          %261 = sbr.rel (%p259) target = $region36
        $region35: #{decoder_forward.13} parent=31 // pred_region
          %s263 = ssub.s32 128, 128
          %264 = vsyncadd %s255, %s263
          %s265 = smul.addr %s17, 128
          %s266 = scalar_lea.hbm %s3, %s265
          %s268 = sshll.u32 %s258, 4
          %s269 = int_to_ptr.vmem [resolvable:$true] %s268
          %271 = dma.vmem_to_hbm [thread:$0]  %s269, 128, %s266, %s255
        $region36: #{decoder_forward.13} parent=31 // pred_fallthru
          _
      $region32: #{decoder_forward.13} parent=5 // pred_fallthru
        _
      %p272 = scmp.le.s32.totalorder 2, %s12
      // Predicated region
      $region37: #{decoder_forward.13} parent=5 // pred_check
        %p273 = pneg %p272
      $region38: #{decoder_forward.13} parent=5 // pred_check_branch
        %275 = sbr.rel (%p273) target = $region40
      $region39: #{decoder_forward.13} parent=5 // pred_region
        %s276 = ssub.s32 %s12, 2
        // Predicated region
        $region41: #{decoder_forward.13} parent=39 // pred_check
          %p277 = pneg %p109
        $region42: #{decoder_forward.13} parent=39 // pred_check_branch
          %279 = sbr.rel (%p277) target = $region44
        $region43: #{decoder_forward.13} parent=39 // pred_region
          %s280 = sand.u32 %s94, 1
          %s281 = scalar_lea.sflag [#allocation3], %s280
          %s282 = sand.u32 %s94, 1
          %s283 = smul.addr %s282, 8
          %s284 = scalar_lea.vmem [#allocation2], %s283
          %285 = dma.done %s281, 128
        $region44: #{decoder_forward.13} parent=39 // pred_fallthru
          _
      $region40: #{decoder_forward.13} parent=5 // pred_fallthru
        _
    $region6: #{decoder_forward.13} parent=1 // loop_footer
      %s16 = sadd.s32 1, %s12
    $region7: #{decoder_forward.13} parent=1 // loop_footer_branch
      %11 = sbr.rel target = $region3
    $region8: #{decoder_forward.13} parent=1 // loop_exit
      _
    %286 = vsyncpa [#allocation3], 1
    %s287 = scalar_lea.sflag [#allocation3], 1
    %288 = vsyncpa %s287, 1

// kernel: decoder_forward.9
$region0: #{decoder_forward.9}
  #allocation0 [shape = 'u32[]', space=smem, size = 0x4, offset = 0x4, fixed_abs, tag = 'smem constant byte address 0x4 - core index']
  #allocation1 [shape = 'u32[144,128]{1,0:T(1,128)}', space=vmem, size = 0x12000, scoped, tag = 'internal scratch']
  %s0 = inlined_call_operand.vmem [shape: f32[16,32], index: 0, kind: input, shape index: {}]
  %s1 = inlined_call_operand.vmem [shape: f32[32,64], index: 1, kind: input, shape index: {}]
  %s2 = inlined_call_operand.vmem [shape: f32[1,64], index: 2, kind: input, shape index: {}]
  %s3 = inlined_call_operand.vmem [shape: f32[64,32], index: 3, kind: input, shape index: {}]
  %s4 = inlined_call_operand.vmem [shape: f32[1,32], index: 4, kind: input, shape index: {}]
  %s5 = inlined_call_operand.vmem [shape: f32[16,32], index: 5, kind: output, shape index: {}]
  %s6 = sld [smem:[#allocation0]]
  $region53: #{decoder_forward.9} parent=0
    _
  %s8 = ssub.s32 1, %s6
  %s9 = scalar_select 0, %s8, %s6
  loop: start=0, step=1, limit=4
  $region2: #{decoder_forward.9} parent=0 // loop_pre_header
    _
  $region3: #{decoder_forward.9} parent=0 // loop_header
    %s11 = sphi 0, %s15
    %p12 = scmp.ge.s32.totalorder %s11, 4
    %s21 = sphi 0, %s23
    %s24 = sphi 0, %s21
    %s25 = sphi 0, %s24
    %s41 = sphi 0, %s25
    %s45 = sphi 0, %s45
    %s47 = sphi 0, %s45
    %s48 = sphi 0, %s47
    %s62 = sphi 0, %s48
    %s66 = sphi 0, %s66
    %s68 = sphi 0, %s66
    %s69 = sphi 0, %s68
    %s83 = sphi 0, %s69
    %s87 = sphi 0, %s87
    %s89 = sphi 0, %s87
    %s90 = sphi 0, %s89
    %s104 = sphi 0, %s90
    %s108 = sphi 0, %s108
    %s110 = sphi 0, %s108
    %s111 = sphi 0, %s110
    %s125 = sphi 0, %s111
    %s131 = sphi 0, %s133
    %s134 = sphi 0, %s131
    %s135 = sphi 0, %s134
    %s151 = sphi 0, %s135
  $region4: #{decoder_forward.9} parent=0 // loop_header_branch
    %14 = sbr.rel (%p12) target = $region8
  $region5: #{decoder_forward.9} parent=0 // loop_body
    %s16 = ssub.s32 %s11, 1
    %s17 = ssub.s32 %s11, 2
    %s18 = sadd.s32 %s11, 1
    %s19 = ssub.s32 %s11, %s18
    %p20 = scmp.eq.s32.totalorder %s19, 0
    %s22 = sadd.s32 %s21, 1
    %s23 = scalar_select %p20, %s21, %s22
    %p26 = pneg %p20
    %p27 = scmp.eq.s32.totalorder %s11, 1
    %p28 = por %p26, %p27
    %p29 = scmp.ne.s32.totalorder %s21, %s24
    %p30 = scmp.eq.s32.totalorder %s11, 0
    %p31 = por %p29, %p30
    %p32 = scmp.ne.s32.totalorder %s21, %s24
    %p33 = scmp.eq.s32.totalorder %s16, 1
    %p34 = por %p32, %p33
    %p35 = scmp.ne.s32.totalorder %s24, %s25
    %p36 = scmp.eq.s32.totalorder %s16, 0
    %p37 = por %p35, %p36
    %p38 = scmp.ne.s32.totalorder %s24, %s25
    %p39 = scmp.eq.s32.totalorder %s17, 1
    %p40 = por %p38, %p39
    %p42 = scmp.ne.s32.totalorder %s25, %s41
    %p43 = scmp.eq.s32.totalorder %s17, 0
    %p44 = por %p42, %p43
    %s46 = sadd.s32 %s45, 1
    %p49 = scmp.eq.s32.totalorder %s11, 1
    %p50 = scmp.ne.s32.totalorder %s45, %s47
    %p51 = scmp.eq.s32.totalorder %s11, 0
    %p52 = por %p50, %p51
    %p53 = scmp.ne.s32.totalorder %s45, %s47
    %p54 = scmp.eq.s32.totalorder %s16, 1
    %p55 = por %p53, %p54
    %p56 = scmp.ne.s32.totalorder %s47, %s48
    %p57 = scmp.eq.s32.totalorder %s16, 0
    %p58 = por %p56, %p57
    %p59 = scmp.ne.s32.totalorder %s47, %s48
    %p60 = scmp.eq.s32.totalorder %s17, 1
    %p61 = por %p59, %p60
    %p63 = scmp.ne.s32.totalorder %s48, %s62
    %p64 = scmp.eq.s32.totalorder %s17, 0
    %p65 = por %p63, %p64
    %s67 = sadd.s32 %s66, 1
    %p70 = scmp.eq.s32.totalorder %s11, 1
    %p71 = scmp.ne.s32.totalorder %s66, %s68
    %p72 = scmp.eq.s32.totalorder %s11, 0
    %p73 = por %p71, %p72
    %p74 = scmp.ne.s32.totalorder %s66, %s68
    %p75 = scmp.eq.s32.totalorder %s16, 1
    %p76 = por %p74, %p75
    %p77 = scmp.ne.s32.totalorder %s68, %s69
    %p78 = scmp.eq.s32.totalorder %s16, 0
    %p79 = por %p77, %p78
    %p80 = scmp.ne.s32.totalorder %s68, %s69
    %p81 = scmp.eq.s32.totalorder %s17, 1
    %p82 = por %p80, %p81
    %p84 = scmp.ne.s32.totalorder %s69, %s83
    %p85 = scmp.eq.s32.totalorder %s17, 0
    %p86 = por %p84, %p85
    %s88 = sadd.s32 %s87, 1
    %p91 = scmp.eq.s32.totalorder %s11, 1
    %p92 = scmp.ne.s32.totalorder %s87, %s89
    %p93 = scmp.eq.s32.totalorder %s11, 0
    %p94 = por %p92, %p93
    %p95 = scmp.ne.s32.totalorder %s87, %s89
    %p96 = scmp.eq.s32.totalorder %s16, 1
    %p97 = por %p95, %p96
    %p98 = scmp.ne.s32.totalorder %s89, %s90
    %p99 = scmp.eq.s32.totalorder %s16, 0
    %p100 = por %p98, %p99
    %p101 = scmp.ne.s32.totalorder %s89, %s90
    %p102 = scmp.eq.s32.totalorder %s17, 1
    %p103 = por %p101, %p102
    %p105 = scmp.ne.s32.totalorder %s90, %s104
    %p106 = scmp.eq.s32.totalorder %s17, 0
    %p107 = por %p105, %p106
    %s109 = sadd.s32 %s108, 1
    %p112 = scmp.eq.s32.totalorder %s11, 1
    %p113 = scmp.ne.s32.totalorder %s108, %s110
    %p114 = scmp.eq.s32.totalorder %s11, 0
    %p115 = por %p113, %p114
    %p116 = scmp.ne.s32.totalorder %s108, %s110
    %p117 = scmp.eq.s32.totalorder %s16, 1
    %p118 = por %p116, %p117
    %p119 = scmp.ne.s32.totalorder %s110, %s111
    %p120 = scmp.eq.s32.totalorder %s16, 0
    %p121 = por %p119, %p120
    %p122 = scmp.ne.s32.totalorder %s110, %s111
    %p123 = scmp.eq.s32.totalorder %s17, 1
    %p124 = por %p122, %p123
    %p126 = scmp.ne.s32.totalorder %s111, %s125
    %p127 = scmp.eq.s32.totalorder %s17, 0
    %p128 = por %p126, %p127
    %s129 = ssub.s32 %s11, %s18
    %p130 = scmp.eq.s32.totalorder %s129, 0
    %s132 = sadd.s32 %s131, 1
    %s133 = scalar_select %p130, %s131, %s132
    %p136 = pneg %p130
    %p137 = scmp.eq.s32.totalorder %s11, 1
    %p138 = por %p136, %p137
    %p139 = scmp.ne.s32.totalorder %s131, %s134
    %p140 = scmp.eq.s32.totalorder %s11, 0
    %p141 = por %p139, %p140
    %p142 = scmp.ne.s32.totalorder %s131, %s134
    %p143 = scmp.eq.s32.totalorder %s16, 1
    %p144 = por %p142, %p143
    %p145 = scmp.ne.s32.totalorder %s134, %s135
    %p146 = scmp.eq.s32.totalorder %s16, 0
    %p147 = por %p145, %p146
    %p148 = scmp.ne.s32.totalorder %s134, %s135
    %p149 = scmp.eq.s32.totalorder %s17, 1
    %p150 = por %p148, %p149
    %p152 = scmp.ne.s32.totalorder %s135, %s151
    %p153 = scmp.eq.s32.totalorder %s17, 0
    %p154 = por %p152, %p153
    %p155 = scmp.le.s32.totalorder 1, %s11
    %p156 = scmp.lt.s32.totalorder %s11, 3
    %p157 = pnand %p155, %p156
    %p158 = pneg %p157
    // Predicated region
    $region9: #{decoder_forward.9} parent=5 // pred_check
      _
    $region10: #{decoder_forward.9} parent=5 // pred_check_branch
      %160 = sbr.rel (%p157) target = $region12
    $region11: #{decoder_forward.9} parent=5 // pred_region
      %s161 = ssub.s32 %s11, 1
      // Predicated region
      $region13: #{decoder_forward.9} parent=11 // pred_check
        %p162 = pneg %p58
      $region14: #{decoder_forward.9} parent=11 // pred_check_branch
        %164 = sbr.rel (%p162) target = $region16
      $region15: #{decoder_forward.9} parent=11 // pred_region
        _
      $region16: #{decoder_forward.9} parent=11 // pred_fallthru
        _
      // Predicated region
      $region17: #{decoder_forward.9} parent=11 // pred_check
        %p165 = pneg %p79
      $region18: #{decoder_forward.9} parent=11 // pred_check_branch
        %167 = sbr.rel (%p165) target = $region20
      $region19: #{decoder_forward.9} parent=11 // pred_region
        _
      $region20: #{decoder_forward.9} parent=11 // pred_fallthru
        _
      // Predicated region
      $region21: #{decoder_forward.9} parent=11 // pred_check
        %p168 = pneg %p100
      $region22: #{decoder_forward.9} parent=11 // pred_check_branch
        %170 = sbr.rel (%p168) target = $region24
      $region23: #{decoder_forward.9} parent=11 // pred_region
        _
      $region24: #{decoder_forward.9} parent=11 // pred_fallthru
        _
      // Predicated region
      $region25: #{decoder_forward.9} parent=11 // pred_check
        %p171 = pneg %p121
      $region26: #{decoder_forward.9} parent=11 // pred_check_branch
        %173 = sbr.rel (%p171) target = $region28
      $region27: #{decoder_forward.9} parent=11 // pred_region
        _
      $region28: #{decoder_forward.9} parent=11 // pred_fallthru
        _
    $region12: #{decoder_forward.9} parent=5 // pred_fallthru
      _
    %p174 = scmp.lt.s32.totalorder %s11, 2
    // Predicated region
    $region29: #{decoder_forward.9} parent=5 // pred_check
      %p175 = pneg %p174
    $region30: #{decoder_forward.9} parent=5 // pred_check_branch
      %177 = sbr.rel (%p175) target = $region32
    $region31: #{decoder_forward.9} parent=5 // pred_region
      // Predicated region
      $region33: #{decoder_forward.9} parent=31 // pred_check
        %p178 = pneg %p31
      $region34: #{decoder_forward.9} parent=31 // pred_check_branch
        %180 = sbr.rel (%p178) target = $region36
      $region35: #{decoder_forward.9} parent=31 // pred_region
        %p181 = scmp.lt.s32.totalorder %s11, 1
        %s182 = scalar_select %p181, %s11, 1
        %s183 = smul.addr %s182, 8
        %s184 = scalar_lea.vmem %s0, %s183
      $region36: #{decoder_forward.9} parent=31 // pred_fallthru
        _
    $region32: #{decoder_forward.9} parent=5 // pred_fallthru
      _
    %p185 = scmp.le.s32.totalorder 1, %s11
    %p186 = scmp.lt.s32.totalorder %s11, 3
    %p187 = pnand %p185, %p186
    %p188 = pneg %p187
    // Predicated region
    $region37: #{decoder_forward.9} parent=5 // pred_check
      _
    $region38: #{decoder_forward.9} parent=5 // pred_check_branch
      %190 = sbr.rel (%p187) target = $region40
    $region39: #{decoder_forward.9} parent=5 // pred_region
      %s191 = ssub.s32 %s11, 1
      %p192 = scmp.lt.s32.totalorder %s16, 1
      %s193 = scalar_select %p192, %s16, 1
      %s194 = smul.addr %s193, 8
      %s195 = scalar_lea.vmem %s0, %s194
      %p196 = pneg %p37
      %p197 = pneg %p34
      %p198 = pneg %p58
      %p199 = pneg %p55
      %p200 = pneg %p79
      %p201 = pneg %p76
      %p202 = pneg %p100
      %p203 = pneg %p97
      %p204 = pneg %p121
      %p205 = pneg %p118
      %p206 = pneg %p147
      %p207 = pneg %p144
      %p208 = scmp.lt.s32.totalorder %s16, 1
      %s209 = scalar_select %p208, %s16, 1
      %s210 = smul.addr %s209, 8
      %s211 = scalar_lea.vmem %s5, %s210
      %p212 = scmp.lt.s32.totalorder %s16, 1
      %s213 = scalar_select %p212, %s16, 1
      %s214 = smul.addr %s213, 8
      %s215 = scalar_lea.vmem %s0, %s214
      %p216 = scmp.lt.s32.totalorder %s16, 1
      %s217 = scalar_select %p216, %s16, 1
      %s218 = smul.addr %s217, 8
      %s219 = scalar_lea.vmem %s5, %s218
      %v220 = vld [vmem:[%s215] sm:$0xff]
      %v221 = vld [vmem:[%s1] sm:$0xff]
      %v222 = vld [vmem:[%s1 + $0x8] sm:$0xff]
      %v223 = vld [vmem:[%s1 + $0x10] sm:$0xff]
      %v224 = vld [vmem:[%s1 + $0x18] sm:$0xff]
      %v225 = vld [vmem:[%s2] sm:$0x1]
      %v227 = vlaneseq
      %v228 = vshrl.u32 %v227, 7
      %v229 = vsub.s32 0, %v228
      %v230 = vrot.slane %v225, %v229
      %vm232 = vcmask 261120
      %v234 = vsel %vm232, %v220, 0
      %236 = vmatprep.subr.mxu0 0.0
      %237 = vmatpush1.msra.mxu0 %v221
      %238 = vmatprep.subr.mxu0 0.0
      %239 = vmatpush1.msra.mxu0 %v222
      %240 = vmatprep.subr.mxu0 0.0
      %241 = vmatpush1.msra.mxu0 %v223
      %242 = vmatprep.subr.mxu0 0.0
      %243 = vmatpush1.msra.mxu0 %v224
      %244 = vmatprep.subr.mxu0 0.0
      %245 = vmatpush1.msra.mxu0 0.0
      %246 = vmatprep.subr.mxu0 0.0
      %247 = vmatpush1.msra.mxu0 0.0
      %248 = vmatprep.subr.mxu0 0.0
      %249 = vmatpush1.msra.mxu0 0.0
      %250 = vmatprep.subr.mxu0 0.0
      %251 = vmatpush1.msra.mxu0 0.0
      %252 = vmatprep.subr.mxu0 0.0
      %253 = vmatpush1.msra.mxu0 0.0
      %254 = vmatprep.subr.mxu0 0.0
      %255 = vmatpush1.msra.mxu0 0.0
      %256 = vmatprep.subr.mxu0 0.0
      %257 = vmatpush1.msra.mxu0 0.0
      %258 = vmatprep.subr.mxu0 0.0
      %259 = vmatpush1.msra.mxu0 0.0
      %260 = vmatprep.subr.mxu0 0.0
      %261 = vmatpush1.msra.mxu0 0.0
      %262 = vmatprep.subr.mxu0 0.0
      %263 = vmatpush1.msra.mxu0 0.0
      %264 = vmatprep.subr.mxu0 0.0
      %265 = vmatpush1.msra.mxu0 0.0
      %266 = vmatprep.subr.mxu0 0.0
      %267 = vmatpush1.msra.mxu0 0.0
      %268 = vmatprep.subr.mxu0 0.0
      %269 = vmatpush1.msra.mxu0 0.0
      %270 = vmatprep.subr.mxu0 0.0
      %271 = vmatpush1.msra.mxu0 0.0
      %272 = vmatprep.subr.mxu0 0.0
      %273 = vmatpush1.msra.mxu0 0.0
      %274 = vmatprep.subr.mxu0 0.0
      %275 = vmatpush1.msra.mxu0 0.0
      %276 = vmatprep.subr.mxu0 0.0
      %277 = vmatpush1.msra.mxu0 0.0
      %278 = vmatprep.subr.mxu0 0.0
      %279 = vmatpush1.msra.mxu0 0.0
      %280 = vmatprep.subr.mxu0 0.0
      %281 = vmatpush1.msra.mxu0 0.0
      %282 = vmatprep.subr.mxu0 0.0
      %283 = vmatpush1.msra.mxu0 0.0
      %284 = vmatprep.subr.mxu0 0.0
      %285 = vmatpush1.msra.mxu0 0.0
      %286 = vmatprep.subr.mxu0 0.0
      %287 = vmatpush1.msra.mxu0 0.0
      %288 = vmatprep.subr.mxu0 0.0
      %289 = vmatpush1.msra.mxu0 0.0
      %290 = vmatprep.subr.mxu0 0.0
      %291 = vmatpush1.msra.mxu0 0.0
      %292 = vmatprep.subr.mxu0 0.0
      %293 = vmatpush1.msra.mxu0 0.0
      %294 = vmatprep.subr.mxu0 0.0
      %295 = vmatpush1.msra.mxu0 0.0
      %296 = vmatprep.subr.mxu0 0.0
      %297 = vmatpush1.msra.mxu0 0.0
      %298 = vmatprep.subr.mxu0 0.0
      %299 = vmatpush1.msra.mxu0 0.0
      %300 = vmatprep.mubr.f32.mxu0 0.0
      %301 = vmatmul.mubr.f32.gmra.mrb[0].mxu0 %v234
      %v302 = vpop.f32.mrb[0].mxu0
      %v303 = vadd.f32 %v230, %v302
      %v304 = vpop.f32.mrb[0].mxu0
      %305 = vdwg.mxu0
      %v306 = vmax.f32 %v303, 0.0
      %v307 = vld [vmem:[%s3] sm:$0xff]
      %v308 = vld [vmem:[%s3 + $0x8] sm:$0xff]
      %v309 = vld [vmem:[%s3 + $0x10] sm:$0xff]
      %v310 = vld [vmem:[%s3 + $0x18] sm:$0xff]
      %v311 = vld [vmem:[%s3 + $0x20] sm:$0xff]
      %v312 = vld [vmem:[%s3 + $0x28] sm:$0xff]
      %v313 = vld [vmem:[%s3 + $0x30] sm:$0xff]
      %v314 = vld [vmem:[%s3 + $0x38] sm:$0xff]
      %v315 = vld [vmem:[%s4] sm:$0x1]
      %v317 = vlaneseq
      %v318 = vshrl.u32 %v317, 7
      %v319 = vsub.s32 0, %v318
      %v320 = vrot.slane %v315, %v319
      %vm322 = vcmask 523264
      %v324 = vsel %vm322, %v306, 0
      %326 = vmatprep.subr.mxu0 0.0
      %327 = vmatpush1.msra.mxu0 %v307
      %328 = vmatprep.subr.mxu0 0.0
      %329 = vmatpush1.msra.mxu0 %v308
      %330 = vmatprep.subr.mxu0 0.0
      %331 = vmatpush1.msra.mxu0 %v309
      %332 = vmatprep.subr.mxu0 0.0
      %333 = vmatpush1.msra.mxu0 %v310
      %334 = vmatprep.subr.mxu0 0.0
      %335 = vmatpush1.msra.mxu0 %v311
      %336 = vmatprep.subr.mxu0 0.0
      %337 = vmatpush1.msra.mxu0 %v312
      %338 = vmatprep.subr.mxu0 0.0
      %339 = vmatpush1.msra.mxu0 %v313
      %340 = vmatprep.subr.mxu0 0.0
      %341 = vmatpush1.msra.mxu0 %v314
      %342 = vmatprep.subr.mxu0 0.0
      %343 = vmatpush1.msra.mxu0 0.0
      %344 = vmatprep.subr.mxu0 0.0
      %345 = vmatpush1.msra.mxu0 0.0
      %346 = vmatprep.subr.mxu0 0.0
      %347 = vmatpush1.msra.mxu0 0.0
      %348 = vmatprep.subr.mxu0 0.0
      %349 = vmatpush1.msra.mxu0 0.0
      %350 = vmatprep.subr.mxu0 0.0
      %351 = vmatpush1.msra.mxu0 0.0
      %352 = vmatprep.subr.mxu0 0.0
      %353 = vmatpush1.msra.mxu0 0.0
      %354 = vmatprep.subr.mxu0 0.0
      %355 = vmatpush1.msra.mxu0 0.0
      %356 = vmatprep.subr.mxu0 0.0
      %357 = vmatpush1.msra.mxu0 0.0
      %358 = vmatprep.subr.mxu0 0.0
      %359 = vmatpush1.msra.mxu0 0.0
      %360 = vmatprep.subr.mxu0 0.0
      %361 = vmatpush1.msra.mxu0 0.0
      %362 = vmatprep.subr.mxu0 0.0
      %363 = vmatpush1.msra.mxu0 0.0
      %364 = vmatprep.subr.mxu0 0.0
      %365 = vmatpush1.msra.mxu0 0.0
      %366 = vmatprep.subr.mxu0 0.0
      %367 = vmatpush1.msra.mxu0 0.0
      %368 = vmatprep.subr.mxu0 0.0
      %369 = vmatpush1.msra.mxu0 0.0
      %370 = vmatprep.subr.mxu0 0.0
      %371 = vmatpush1.msra.mxu0 0.0
      %372 = vmatprep.subr.mxu0 0.0
      %373 = vmatpush1.msra.mxu0 0.0
      %374 = vmatprep.subr.mxu0 0.0
      %375 = vmatpush1.msra.mxu0 0.0
      %376 = vmatprep.subr.mxu0 0.0
      %377 = vmatpush1.msra.mxu0 0.0
      %378 = vmatprep.subr.mxu0 0.0
      %379 = vmatpush1.msra.mxu0 0.0
      %380 = vmatprep.subr.mxu0 0.0
      %381 = vmatpush1.msra.mxu0 0.0
      %382 = vmatprep.subr.mxu0 0.0
      %383 = vmatpush1.msra.mxu0 0.0
      %384 = vmatprep.subr.mxu0 0.0
      %385 = vmatpush1.msra.mxu0 0.0
      %386 = vmatprep.subr.mxu0 0.0
      %387 = vmatpush1.msra.mxu0 0.0
      %388 = vmatprep.subr.mxu0 0.0
      %389 = vmatpush1.msra.mxu0 0.0
      %390 = vmatprep.mubr.f32.mxu0 0.0
      %391 = vmatmul.mubr.f32.gmra.mrb[0].mxu0 %v324
      %v392 = vpop.f32.mrb[0].mxu0
      %v393 = vadd.f32 %v320, %v392
      %v394 = vpop.f32.mrb[0].mxu0
      %395 = vdwg.mxu0
      %v396 = vadd.f32 %v393, %v220
      %v397 = vsel %vm232, %v396, 0.0
      %398 = vadd.xlane.f32.xlu0 %v397
      %v399 = vpop.xlane.xlu0 %398
      %v400 = vrcp.pop 32.0
      %v401 = vmul.f32 %v399, %v400
      %v402 = vsub.f32 %v396, %v401
      %v403 = vmul.f32 %v402, %v402
      %v404 = vsel %vm232, %v403, 0.0
      %405 = vadd.xlane.f32.xlu0 %v404
      %v406 = vpop.xlane.xlu0 %405
      %v407 = vmul.f32 %v406, %v400
      %v408 = vadd.f32 %v407, 1e-05
      %v409 = vrsqrt.pop %v408
      %v410 = vmul.f32 %v402, %v409
      %411 = vst.msk [vmem:[%s219] sm:$0xff] %vm232, %v410
      %p412 = scmp.lt.s32.totalorder %s16, 1
      %s413 = scalar_select %p412, %s16, 1
      %s414 = smul.addr %s413, 8
      %s415 = scalar_lea.vmem %s5, %s414
      // Predicated region
      $region41: #{decoder_forward.9} parent=39 // pred_check
        %p416 = pneg %p144
      $region42: #{decoder_forward.9} parent=39 // pred_check_branch
        %418 = sbr.rel (%p416) target = $region44
      $region43: #{decoder_forward.9} parent=39 // pred_region
        _
      $region44: #{decoder_forward.9} parent=39 // pred_fallthru
        _
    $region40: #{decoder_forward.9} parent=5 // pred_fallthru
      _
    %p419 = scmp.le.s32.totalorder 2, %s11
    // Predicated region
    $region45: #{decoder_forward.9} parent=5 // pred_check
      %p420 = pneg %p419
    $region46: #{decoder_forward.9} parent=5 // pred_check_branch
      %422 = sbr.rel (%p420) target = $region48
    $region47: #{decoder_forward.9} parent=5 // pred_region
      %s423 = ssub.s32 %s11, 2
      // Predicated region
      $region49: #{decoder_forward.9} parent=47 // pred_check
        %p424 = pneg %p150
      $region50: #{decoder_forward.9} parent=47 // pred_check_branch
        %426 = sbr.rel (%p424) target = $region52
      $region51: #{decoder_forward.9} parent=47 // pred_region
        %p427 = scmp.lt.s32.totalorder %s17, 1
        %s428 = scalar_select %p427, %s17, 1
        %s429 = smul.addr %s428, 8
        %s430 = scalar_lea.vmem %s5, %s429
      $region52: #{decoder_forward.9} parent=47 // pred_fallthru
        _
    $region48: #{decoder_forward.9} parent=5 // pred_fallthru
      _
  $region6: #{decoder_forward.9} parent=0 // loop_footer
    %s15 = sadd.s32 1, %s11
  $region7: #{decoder_forward.9} parent=0 // loop_footer_branch
    %10 = sbr.rel target = $region3
  $region8: #{decoder_forward.9} parent=0 // loop_exit
    _

// kernel: decoder_forward.8
$region0: #{decoder_forward.8}
  #allocation0 [shape = 'u32[]', space=smem, size = 0x4, offset = 0x4, fixed_abs, tag = 'smem constant byte address 0x4 - core index']
  #allocation1 [shape = 'u32[144,128]{1,0:T(1,128)}', space=vmem, size = 0x12000, scoped, tag = 'internal scratch']
  %s0 = inlined_call_operand.vmem [shape: f32[2,8,32], index: 0, kind: input, shape index: {}]
  %s1 = inlined_call_operand.vmem [shape: f32[2,16,64], index: 1, kind: input, shape index: {}]
  %s2 = inlined_call_operand.vmem [shape: f32[2,8,16], index: 2, kind: input, shape index: {}]
  %s3 = inlined_call_operand.vmem [shape: f32[32,64], index: 3, kind: input, shape index: {}]
  %s4 = inlined_call_operand.vmem [shape: f32[1,64], index: 4, kind: input, shape index: {}]
  %s5 = inlined_call_operand.vmem [shape: f32[64,128], index: 5, kind: input, shape index: {}]
  %s6 = inlined_call_operand.vmem [shape: f32[1,128], index: 6, kind: input, shape index: {}]
  %s7 = inlined_call_operand.vmem [shape: f32[64,32], index: 7, kind: input, shape index: {}]
  %s8 = inlined_call_operand.vmem [shape: f32[1,32], index: 8, kind: input, shape index: {}]
  %s9 = inlined_call_operand.vmem [shape: f32[2,8,32], index: 9, kind: output, shape index: {0}]
  %s10 = inlined_call_operand.hbm [shape: f32[2,4,8,16], index: 10, kind: output, shape index: {1}]
  %11 = xla_tuple %s9, %s10
  %s12 = sld [smem:[#allocation0]]
  $region77: #{decoder_forward.8} parent=0
    _
  %s14 = ssub.s32 1, %s12
  %s15 = scalar_select 0, %s14, %s12
  $region1: #{decoder_forward.8} parent=0
    #allocation2 [shape = 'u8[32768]{0}', space=vmem, size = 0x8000, scoped, tag = 'output window, operand 1']
    #allocation3 [shape = 's32[2]{0}', space=sflag, size = 0x8, scoped, tag = 'scoped memory for decoder_forward.8']
    %16 = vsyncpa [#allocation3], 0
    %s17 = scalar_lea.sflag [#allocation3], 1
    %18 = vsyncpa %s17, 0
    loop: start=0, step=1, limit=4
    $region2: #{decoder_forward.8} parent=1 // loop_pre_header
      _
    $region3: #{decoder_forward.8} parent=1 // loop_header
      %s20 = sphi 0, %s24
      %p21 = scmp.ge.s32.totalorder %s20, 4
      %s30 = sphi 0, %s32
      %s33 = sphi 0, %s30
      %s34 = sphi 0, %s33
      %s50 = sphi 0, %s34
      %s56 = sphi 0, %s58
      %s59 = sphi 0, %s56
      %s60 = sphi 0, %s59
      %s76 = sphi 0, %s60
      %s82 = sphi 0, %s84
      %s85 = sphi 0, %s82
      %s86 = sphi 0, %s85
      %s102 = sphi 0, %s86
      %s106 = sphi 0, %s106
      %s108 = sphi 0, %s106
      %s109 = sphi 0, %s108
      %s123 = sphi 0, %s109
      %s127 = sphi 0, %s127
      %s129 = sphi 0, %s127
      %s130 = sphi 0, %s129
      %s144 = sphi 0, %s130
      %s148 = sphi 0, %s148
      %s150 = sphi 0, %s148
      %s151 = sphi 0, %s150
      %s165 = sphi 0, %s151
      %s169 = sphi 0, %s169
      %s171 = sphi 0, %s169
      %s172 = sphi 0, %s171
      %s186 = sphi 0, %s172
      %s190 = sphi 0, %s190
      %s192 = sphi 0, %s190
      %s193 = sphi 0, %s192
      %s207 = sphi 0, %s193
      %s211 = sphi 0, %s211
      %s213 = sphi 0, %s211
      %s214 = sphi 0, %s213
      %s228 = sphi 0, %s214
      %s234 = sphi 0, %s236
      %s237 = sphi 0, %s234
      %s238 = sphi 0, %s237
      %s254 = sphi 0, %s238
      %s260 = sphi 0, %s262
      %s263 = sphi 0, %s260
      %s264 = sphi 0, %s263
      %s280 = sphi 0, %s264
    $region4: #{decoder_forward.8} parent=1 // loop_header_branch
      %23 = sbr.rel (%p21) target = $region8
    $region5: #{decoder_forward.8} parent=1 // loop_body
      %s25 = ssub.s32 %s20, 1
      %s26 = ssub.s32 %s20, 2
      %s27 = sadd.s32 %s20, 1
      %s28 = ssub.s32 %s20, %s27
      %p29 = scmp.eq.s32.totalorder %s28, 0
      %s31 = sadd.s32 %s30, 1
      %s32 = scalar_select %p29, %s30, %s31
      %p35 = pneg %p29
      %p36 = scmp.eq.s32.totalorder %s20, 1
      %p37 = por %p35, %p36
      %p38 = scmp.ne.s32.totalorder %s30, %s33
      %p39 = scmp.eq.s32.totalorder %s20, 0
      %p40 = por %p38, %p39
      %p41 = scmp.ne.s32.totalorder %s30, %s33
      %p42 = scmp.eq.s32.totalorder %s25, 1
      %p43 = por %p41, %p42
      %p44 = scmp.ne.s32.totalorder %s33, %s34
      %p45 = scmp.eq.s32.totalorder %s25, 0
      %p46 = por %p44, %p45
      %p47 = scmp.ne.s32.totalorder %s33, %s34
      %p48 = scmp.eq.s32.totalorder %s26, 1
      %p49 = por %p47, %p48
      %p51 = scmp.ne.s32.totalorder %s34, %s50
      %p52 = scmp.eq.s32.totalorder %s26, 0
      %p53 = por %p51, %p52
      %s54 = ssub.s32 %s20, %s27
      %p55 = scmp.eq.s32.totalorder %s54, 0
      %s57 = sadd.s32 %s56, 1
      %s58 = scalar_select %p55, %s56, %s57
      %p61 = pneg %p55
      %p62 = scmp.eq.s32.totalorder %s20, 1
      %p63 = por %p61, %p62
      %p64 = scmp.ne.s32.totalorder %s56, %s59
      %p65 = scmp.eq.s32.totalorder %s20, 0
      %p66 = por %p64, %p65
      %p67 = scmp.ne.s32.totalorder %s56, %s59
      %p68 = scmp.eq.s32.totalorder %s25, 1
      %p69 = por %p67, %p68
      %p70 = scmp.ne.s32.totalorder %s59, %s60
      %p71 = scmp.eq.s32.totalorder %s25, 0
      %p72 = por %p70, %p71
      %p73 = scmp.ne.s32.totalorder %s59, %s60
      %p74 = scmp.eq.s32.totalorder %s26, 1
      %p75 = por %p73, %p74
      %p77 = scmp.ne.s32.totalorder %s60, %s76
      %p78 = scmp.eq.s32.totalorder %s26, 0
      %p79 = por %p77, %p78
      %s80 = ssub.s32 %s20, %s27
      %p81 = scmp.eq.s32.totalorder %s80, 0
      %s83 = sadd.s32 %s82, 1
      %s84 = scalar_select %p81, %s82, %s83
      %p87 = pneg %p81
      %p88 = scmp.eq.s32.totalorder %s20, 1
      %p89 = por %p87, %p88
      %p90 = scmp.ne.s32.totalorder %s82, %s85
      %p91 = scmp.eq.s32.totalorder %s20, 0
      %p92 = por %p90, %p91
      %p93 = scmp.ne.s32.totalorder %s82, %s85
      %p94 = scmp.eq.s32.totalorder %s25, 1
      %p95 = por %p93, %p94
      %p96 = scmp.ne.s32.totalorder %s85, %s86
      %p97 = scmp.eq.s32.totalorder %s25, 0
      %p98 = por %p96, %p97
      %p99 = scmp.ne.s32.totalorder %s85, %s86
      %p100 = scmp.eq.s32.totalorder %s26, 1
      %p101 = por %p99, %p100
      %p103 = scmp.ne.s32.totalorder %s86, %s102
      %p104 = scmp.eq.s32.totalorder %s26, 0
      %p105 = por %p103, %p104
      %s107 = sadd.s32 %s106, 1
      %p110 = scmp.eq.s32.totalorder %s20, 1
      %p111 = scmp.ne.s32.totalorder %s106, %s108
      %p112 = scmp.eq.s32.totalorder %s20, 0
      %p113 = por %p111, %p112
      %p114 = scmp.ne.s32.totalorder %s106, %s108
      %p115 = scmp.eq.s32.totalorder %s25, 1
      %p116 = por %p114, %p115
      %p117 = scmp.ne.s32.totalorder %s108, %s109
      %p118 = scmp.eq.s32.totalorder %s25, 0
      %p119 = por %p117, %p118
      %p120 = scmp.ne.s32.totalorder %s108, %s109
      %p121 = scmp.eq.s32.totalorder %s26, 1
      %p122 = por %p120, %p121
      %p124 = scmp.ne.s32.totalorder %s109, %s123
      %p125 = scmp.eq.s32.totalorder %s26, 0
      %p126 = por %p124, %p125
      %s128 = sadd.s32 %s127, 1
      %p131 = scmp.eq.s32.totalorder %s20, 1
      %p132 = scmp.ne.s32.totalorder %s127, %s129
      %p133 = scmp.eq.s32.totalorder %s20, 0
      %p134 = por %p132, %p133
      %p135 = scmp.ne.s32.totalorder %s127, %s129
      %p136 = scmp.eq.s32.totalorder %s25, 1
      %p137 = por %p135, %p136
      %p138 = scmp.ne.s32.totalorder %s129, %s130
      %p139 = scmp.eq.s32.totalorder %s25, 0
      %p140 = por %p138, %p139
      %p141 = scmp.ne.s32.totalorder %s129, %s130
      %p142 = scmp.eq.s32.totalorder %s26, 1
      %p143 = por %p141, %p142
      %p145 = scmp.ne.s32.totalorder %s130, %s144
      %p146 = scmp.eq.s32.totalorder %s26, 0
      %p147 = por %p145, %p146
      %s149 = sadd.s32 %s148, 1
      %p152 = scmp.eq.s32.totalorder %s20, 1
      %p153 = scmp.ne.s32.totalorder %s148, %s150
      %p154 = scmp.eq.s32.totalorder %s20, 0
      %p155 = por %p153, %p154
      %p156 = scmp.ne.s32.totalorder %s148, %s150
      %p157 = scmp.eq.s32.totalorder %s25, 1
      %p158 = por %p156, %p157
      %p159 = scmp.ne.s32.totalorder %s150, %s151
      %p160 = scmp.eq.s32.totalorder %s25, 0
      %p161 = por %p159, %p160
      %p162 = scmp.ne.s32.totalorder %s150, %s151
      %p163 = scmp.eq.s32.totalorder %s26, 1
      %p164 = por %p162, %p163
      %p166 = scmp.ne.s32.totalorder %s151, %s165
      %p167 = scmp.eq.s32.totalorder %s26, 0
      %p168 = por %p166, %p167
      %s170 = sadd.s32 %s169, 1
      %p173 = scmp.eq.s32.totalorder %s20, 1
      %p174 = scmp.ne.s32.totalorder %s169, %s171
      %p175 = scmp.eq.s32.totalorder %s20, 0
      %p176 = por %p174, %p175
      %p177 = scmp.ne.s32.totalorder %s169, %s171
      %p178 = scmp.eq.s32.totalorder %s25, 1
      %p179 = por %p177, %p178
      %p180 = scmp.ne.s32.totalorder %s171, %s172
      %p181 = scmp.eq.s32.totalorder %s25, 0
      %p182 = por %p180, %p181
      %p183 = scmp.ne.s32.totalorder %s171, %s172
      %p184 = scmp.eq.s32.totalorder %s26, 1
      %p185 = por %p183, %p184
      %p187 = scmp.ne.s32.totalorder %s172, %s186
      %p188 = scmp.eq.s32.totalorder %s26, 0
      %p189 = por %p187, %p188
      %s191 = sadd.s32 %s190, 1
      %p194 = scmp.eq.s32.totalorder %s20, 1
      %p195 = scmp.ne.s32.totalorder %s190, %s192
      %p196 = scmp.eq.s32.totalorder %s20, 0
      %p197 = por %p195, %p196
      %p198 = scmp.ne.s32.totalorder %s190, %s192
      %p199 = scmp.eq.s32.totalorder %s25, 1
      %p200 = por %p198, %p199
      %p201 = scmp.ne.s32.totalorder %s192, %s193
      %p202 = scmp.eq.s32.totalorder %s25, 0
      %p203 = por %p201, %p202
      %p204 = scmp.ne.s32.totalorder %s192, %s193
      %p205 = scmp.eq.s32.totalorder %s26, 1
      %p206 = por %p204, %p205
      %p208 = scmp.ne.s32.totalorder %s193, %s207
      %p209 = scmp.eq.s32.totalorder %s26, 0
      %p210 = por %p208, %p209
      %s212 = sadd.s32 %s211, 1
      %p215 = scmp.eq.s32.totalorder %s20, 1
      %p216 = scmp.ne.s32.totalorder %s211, %s213
      %p217 = scmp.eq.s32.totalorder %s20, 0
      %p218 = por %p216, %p217
      %p219 = scmp.ne.s32.totalorder %s211, %s213
      %p220 = scmp.eq.s32.totalorder %s25, 1
      %p221 = por %p219, %p220
      %p222 = scmp.ne.s32.totalorder %s213, %s214
      %p223 = scmp.eq.s32.totalorder %s25, 0
      %p224 = por %p222, %p223
      %p225 = scmp.ne.s32.totalorder %s213, %s214
      %p226 = scmp.eq.s32.totalorder %s26, 1
      %p227 = por %p225, %p226
      %p229 = scmp.ne.s32.totalorder %s214, %s228
      %p230 = scmp.eq.s32.totalorder %s26, 0
      %p231 = por %p229, %p230
      %s232 = ssub.s32 %s20, %s27
      %p233 = scmp.eq.s32.totalorder %s232, 0
      %s235 = sadd.s32 %s234, 1
      %s236 = scalar_select %p233, %s234, %s235
      %p239 = pneg %p233
      %p240 = scmp.eq.s32.totalorder %s20, 1
      %p241 = por %p239, %p240
      %p242 = scmp.ne.s32.totalorder %s234, %s237
      %p243 = scmp.eq.s32.totalorder %s20, 0
      %p244 = por %p242, %p243
      %p245 = scmp.ne.s32.totalorder %s234, %s237
      %p246 = scmp.eq.s32.totalorder %s25, 1
      %p247 = por %p245, %p246
      %p248 = scmp.ne.s32.totalorder %s237, %s238
      %p249 = scmp.eq.s32.totalorder %s25, 0
      %p250 = por %p248, %p249
      %p251 = scmp.ne.s32.totalorder %s237, %s238
      %p252 = scmp.eq.s32.totalorder %s26, 1
      %p253 = por %p251, %p252
      %p255 = scmp.ne.s32.totalorder %s238, %s254
      %p256 = scmp.eq.s32.totalorder %s26, 0
      %p257 = por %p255, %p256
      %s258 = ssub.s32 %s20, %s27
      %p259 = scmp.eq.s32.totalorder %s258, 0
      %s261 = sadd.s32 %s260, 1
      %s262 = scalar_select %p259, %s260, %s261
      %p265 = pneg %p259
      %p266 = scmp.eq.s32.totalorder %s20, 1
      %p267 = por %p265, %p266
      %p268 = scmp.ne.s32.totalorder %s260, %s263
      %p269 = scmp.eq.s32.totalorder %s20, 0
      %p270 = por %p268, %p269
      %p271 = scmp.ne.s32.totalorder %s260, %s263
      %p272 = scmp.eq.s32.totalorder %s25, 1
      %p273 = por %p271, %p272
      %p274 = scmp.ne.s32.totalorder %s263, %s264
      %p275 = scmp.eq.s32.totalorder %s25, 0
      %p276 = por %p274, %p275
      %p277 = scmp.ne.s32.totalorder %s263, %s264
      %p278 = scmp.eq.s32.totalorder %s26, 1
      %p279 = por %p277, %p278
      %p281 = scmp.ne.s32.totalorder %s264, %s280
      %p282 = scmp.eq.s32.totalorder %s26, 0
      %p283 = por %p281, %p282
      %p284 = scmp.le.s32.totalorder 1, %s20
      %p285 = scmp.lt.s32.totalorder %s20, 3
      %p286 = pnand %p284, %p285
      %p287 = pneg %p286
      // Predicated region
      $region9: #{decoder_forward.8} parent=5 // pred_check
        _
      $region10: #{decoder_forward.8} parent=5 // pred_check_branch
        %289 = sbr.rel (%p286) target = $region12
      $region11: #{decoder_forward.8} parent=5 // pred_region
        %s290 = ssub.s32 %s20, 1
        // Predicated region
        $region13: #{decoder_forward.8} parent=11 // pred_check
          %p291 = pneg %p119
        $region14: #{decoder_forward.8} parent=11 // pred_check_branch
          %293 = sbr.rel (%p291) target = $region16
        $region15: #{decoder_forward.8} parent=11 // pred_region
          _
        $region16: #{decoder_forward.8} parent=11 // pred_fallthru
          _
        // Predicated region
        $region17: #{decoder_forward.8} parent=11 // pred_check
          %p294 = pneg %p140
        $region18: #{decoder_forward.8} parent=11 // pred_check_branch
          %296 = sbr.rel (%p294) target = $region20
        $region19: #{decoder_forward.8} parent=11 // pred_region
          _
        $region20: #{decoder_forward.8} parent=11 // pred_fallthru
          _
        // Predicated region
        $region21: #{decoder_forward.8} parent=11 // pred_check
          %p297 = pneg %p161
        $region22: #{decoder_forward.8} parent=11 // pred_check_branch
          %299 = sbr.rel (%p297) target = $region24
        $region23: #{decoder_forward.8} parent=11 // pred_region
          _
        $region24: #{decoder_forward.8} parent=11 // pred_fallthru
          _
        // Predicated region
        $region25: #{decoder_forward.8} parent=11 // pred_check
          %p300 = pneg %p182
        $region26: #{decoder_forward.8} parent=11 // pred_check_branch
          %302 = sbr.rel (%p300) target = $region28
        $region27: #{decoder_forward.8} parent=11 // pred_region
          _
        $region28: #{decoder_forward.8} parent=11 // pred_fallthru
          _
        // Predicated region
        $region29: #{decoder_forward.8} parent=11 // pred_check
          %p303 = pneg %p203
        $region30: #{decoder_forward.8} parent=11 // pred_check_branch
          %305 = sbr.rel (%p303) target = $region32
        $region31: #{decoder_forward.8} parent=11 // pred_region
          _
        $region32: #{decoder_forward.8} parent=11 // pred_fallthru
          _
        // Predicated region
        $region33: #{decoder_forward.8} parent=11 // pred_check
          %p306 = pneg %p224
        $region34: #{decoder_forward.8} parent=11 // pred_check_branch
          %308 = sbr.rel (%p306) target = $region36
        $region35: #{decoder_forward.8} parent=11 // pred_region
          _
        $region36: #{decoder_forward.8} parent=11 // pred_fallthru
          _
      $region12: #{decoder_forward.8} parent=5 // pred_fallthru
        _
      %p309 = scmp.lt.s32.totalorder %s20, 2
      // Predicated region
      $region37: #{decoder_forward.8} parent=5 // pred_check
        %p310 = pneg %p309
      $region38: #{decoder_forward.8} parent=5 // pred_check_branch
        %312 = sbr.rel (%p310) target = $region40
      $region39: #{decoder_forward.8} parent=5 // pred_region
        // Predicated region
        $region41: #{decoder_forward.8} parent=39 // pred_check
          %p313 = pneg %p40
        $region42: #{decoder_forward.8} parent=39 // pred_check_branch
          %315 = sbr.rel (%p313) target = $region44
        $region43: #{decoder_forward.8} parent=39 // pred_region
          %p316 = scmp.lt.s32.totalorder %s20, 1
          %s317 = scalar_select %p316, %s20, 1
          %s318 = smul.addr %s317, 8
          %s319 = scalar_lea.vmem %s0, %s318
        $region44: #{decoder_forward.8} parent=39 // pred_fallthru
          _
        // Predicated region
        $region45: #{decoder_forward.8} parent=39 // pred_check
          %p320 = pneg %p66
        $region46: #{decoder_forward.8} parent=39 // pred_check_branch
          %322 = sbr.rel (%p320) target = $region48
        $region47: #{decoder_forward.8} parent=39 // pred_region
          %p323 = scmp.lt.s32.totalorder %s20, 1
          %s324 = scalar_select %p323, %s20, 1
          %s325 = smul.addr %s324, 2
          %s326 = smul.addr %s325, 8
          %s327 = scalar_lea.vmem %s1, %s326
        $region48: #{decoder_forward.8} parent=39 // pred_fallthru
          _
        // Predicated region
        $region49: #{decoder_forward.8} parent=39 // pred_check
          %p328 = pneg %p92
        $region50: #{decoder_forward.8} parent=39 // pred_check_branch
          %330 = sbr.rel (%p328) target = $region52
        $region51: #{decoder_forward.8} parent=39 // pred_region
          %p331 = scmp.lt.s32.totalorder %s20, 1
          %s332 = scalar_select %p331, %s20, 1
          %s333 = smul.addr %s332, 8
          %s334 = scalar_lea.vmem %s2, %s333
        $region52: #{decoder_forward.8} parent=39 // pred_fallthru
          _
      $region40: #{decoder_forward.8} parent=5 // pred_fallthru
        _
      %p335 = scmp.le.s32.totalorder 1, %s20
      %p336 = scmp.lt.s32.totalorder %s20, 3
      %p337 = pnand %p335, %p336
      %p338 = pneg %p337
      // Predicated region
      $region53: #{decoder_forward.8} parent=5 // pred_check
        _
      $region54: #{decoder_forward.8} parent=5 // pred_check_branch
        %340 = sbr.rel (%p337) target = $region56
      $region55: #{decoder_forward.8} parent=5 // pred_region
        %s341 = ssub.s32 %s20, 1
        %p342 = scmp.lt.s32.totalorder %s25, 1
        %s343 = scalar_select %p342, %s25, 1
        %s344 = smul.addr %s343, 8
        %s345 = scalar_lea.vmem %s0, %s344
        %p346 = pneg %p46
        %p347 = pneg %p43
        %p348 = scmp.lt.s32.totalorder %s25, 1
        %s349 = scalar_select %p348, %s25, 1
        %s350 = smul.addr %s349, 2
        %s351 = smul.addr %s350, 8
        %s352 = scalar_lea.vmem %s1, %s351
        %p353 = pneg %p72
        %p354 = pneg %p69
        %p355 = scmp.lt.s32.totalorder %s25, 1
        %s356 = scalar_select %p355, %s25, 1
        %s357 = smul.addr %s356, 8
        %s358 = scalar_lea.vmem %s2, %s357
        %p359 = pneg %p98
        %p360 = pneg %p95
        %p361 = pneg %p119
        %p362 = pneg %p116
        %p363 = pneg %p140
        %p364 = pneg %p137
        %p365 = pneg %p161
        %p366 = pneg %p158
        %p367 = pneg %p182
        %p368 = pneg %p179
        %p369 = pneg %p203
        %p370 = pneg %p200
        %p371 = pneg %p224
        %p372 = pneg %p221
        %p373 = pneg %p250
        %p374 = pneg %p247
        %p375 = scmp.lt.s32.totalorder %s25, 1
        %s376 = scalar_select %p375, %s25, 1
        %s377 = smul.addr %s376, 8
        %s378 = scalar_lea.vmem %s9, %s377
        %p379 = pneg %p276
        %p380 = pneg %p273
        %s381 = sand.u32 %s263, 1
        %s382 = scalar_lea.sflag [#allocation3], %s381
        %s383 = sand.u32 %s263, 1
        %s384 = smul.addr %s383, 32
        %s385 = scalar_lea.vmem [#allocation2], %s384
        %p386 = scmp.lt.s32.totalorder %s25, 1
        %s387 = scalar_select %p386, %s25, 1
        %s388 = smul.addr %s387, 8
        %s389 = scalar_lea.vmem %s0, %s388
        %p390 = scmp.lt.s32.totalorder %s25, 1
        %s391 = scalar_select %p390, %s25, 1
        %s392 = smul.addr %s391, 2
        %s393 = smul.addr %s392, 8
        %s394 = scalar_lea.vmem %s1, %s393
        %p395 = scmp.lt.s32.totalorder %s25, 1
        %s396 = scalar_select %p395, %s25, 1
        %s397 = smul.addr %s396, 8
        %s398 = scalar_lea.vmem %s2, %s397
        %p399 = scmp.lt.s32.totalorder %s25, 1
        %s400 = scalar_select %p399, %s25, 1
        %s401 = smul.addr %s400, 8
        %s402 = scalar_lea.vmem %s9, %s401
        %v403 = vld [vmem:[%s389] sm:$0xff]
        %v404 = vld [vmem:[%s394] sm:$0xff]
        %v405 = vld [vmem:[%s394 + $0x8] sm:$0xff]
        %v406 = vld [vmem:[%s398] sm:$0xff]
        %v407 = vld [vmem:[%s3] sm:$0xff]
        %v408 = vld [vmem:[%s3 + $0x8] sm:$0xff]
        %v409 = vld [vmem:[%s3 + $0x10] sm:$0xff]
        %v410 = vld [vmem:[%s3 + $0x18] sm:$0xff]
        %v411 = vld [vmem:[%s4] sm:$0x1]
        %v413 = vlaneseq
        %v414 = vshrl.u32 %v413, 7
        %v415 = vsub.s32 0, %v414
        %v416 = vrot.slane %v411, %v415
        %vm418 = vcmask 261120
        %v420 = vsel %vm418, %v403, 0
        %422 = vmatprep.subr.mxu0 0.0
        %423 = vmatpush1.msra.mxu0 %v407
        %424 = vmatprep.subr.mxu0 0.0
        %425 = vmatpush1.msra.mxu0 %v408
        %426 = vmatprep.subr.mxu0 0.0
        %427 = vmatpush1.msra.mxu0 %v409
        %428 = vmatprep.subr.mxu0 0.0
        %429 = vmatpush1.msra.mxu0 %v410
        %430 = vmatprep.subr.mxu0 0.0
        %431 = vmatpush1.msra.mxu0 0.0
        %432 = vmatprep.subr.mxu0 0.0
        %433 = vmatpush1.msra.mxu0 0.0
        %434 = vmatprep.subr.mxu0 0.0
        %435 = vmatpush1.msra.mxu0 0.0
        %436 = vmatprep.subr.mxu0 0.0
        %437 = vmatpush1.msra.mxu0 0.0
        %438 = vmatprep.subr.mxu0 0.0
        %439 = vmatpush1.msra.mxu0 0.0
        %440 = vmatprep.subr.mxu0 0.0
        %441 = vmatpush1.msra.mxu0 0.0
        %442 = vmatprep.subr.mxu0 0.0
        %443 = vmatpush1.msra.mxu0 0.0
        %444 = vmatprep.subr.mxu0 0.0
        %445 = vmatpush1.msra.mxu0 0.0
        %446 = vmatprep.subr.mxu0 0.0
        %447 = vmatpush1.msra.mxu0 0.0
        %448 = vmatprep.subr.mxu0 0.0
        %449 = vmatpush1.msra.mxu0 0.0
        %450 = vmatprep.subr.mxu0 0.0
        %451 = vmatpush1.msra.mxu0 0.0
        %452 = vmatprep.subr.mxu0 0.0
        %453 = vmatpush1.msra.mxu0 0.0
        %454 = vmatprep.subr.mxu0 0.0
        %455 = vmatpush1.msra.mxu0 0.0
        %456 = vmatprep.subr.mxu0 0.0
        %457 = vmatpush1.msra.mxu0 0.0
        %458 = vmatprep.subr.mxu0 0.0
        %459 = vmatpush1.msra.mxu0 0.0
        %460 = vmatprep.subr.mxu0 0.0
        %461 = vmatpush1.msra.mxu0 0.0
        %462 = vmatprep.subr.mxu0 0.0
        %463 = vmatpush1.msra.mxu0 0.0
        %464 = vmatprep.subr.mxu0 0.0
        %465 = vmatpush1.msra.mxu0 0.0
        %466 = vmatprep.subr.mxu0 0.0
        %467 = vmatpush1.msra.mxu0 0.0
        %468 = vmatprep.subr.mxu0 0.0
        %469 = vmatpush1.msra.mxu0 0.0
        %470 = vmatprep.subr.mxu0 0.0
        %471 = vmatpush1.msra.mxu0 0.0
        %472 = vmatprep.subr.mxu0 0.0
        %473 = vmatpush1.msra.mxu0 0.0
        %474 = vmatprep.subr.mxu0 0.0
        %475 = vmatpush1.msra.mxu0 0.0
        %476 = vmatprep.subr.mxu0 0.0
        %477 = vmatpush1.msra.mxu0 0.0
        %478 = vmatprep.subr.mxu0 0.0
        %479 = vmatpush1.msra.mxu0 0.0
        %480 = vmatprep.subr.mxu0 0.0
        %481 = vmatpush1.msra.mxu0 0.0
        %482 = vmatprep.subr.mxu0 0.0
        %483 = vmatpush1.msra.mxu0 0.0
        %484 = vmatprep.subr.mxu0 0.0
        %485 = vmatpush1.msra.mxu0 0.0
        %486 = vmatprep.mubr.f32.mxu0 0.0
        %487 = vmatmul.mubr.f32.gmra.mrb[0].mxu0 %v420
        %v488 = vpop.f32.mrb[0].mxu0
        %v489 = vadd.f32 %v416, %v488
        %v490 = vpop.f32.mrb[0].mxu0
        %491 = vdwg.mxu0
        %v492 = vmul.f32 %v489, 0.25
        %v493 = vld [vmem:[%s5] sm:$0xff]
        %v494 = vld [vmem:[%s5 + $0x8] sm:$0xff]
        %v495 = vld [vmem:[%s5 + $0x10] sm:$0xff]
        %v496 = vld [vmem:[%s5 + $0x18] sm:$0xff]
        %v497 = vld [vmem:[%s5 + $0x20] sm:$0xff]
        %v498 = vld [vmem:[%s5 + $0x28] sm:$0xff]
        %v499 = vld [vmem:[%s5 + $0x30] sm:$0xff]
        %v500 = vld [vmem:[%s5 + $0x38] sm:$0xff]
        %v501 = vld [vmem:[%s6] sm:$0x1]
        %v503 = vlaneseq
        %v504 = vshrl.u32 %v503, 7
        %v505 = vsub.s32 0, %v504
        %v506 = vrot.slane %v501, %v505
        %vm508 = vcmask 523264
        %v510 = vsel %vm508, %v404, 0
        %v513 = vsel %vm508, %v405, 0
        %515 = vmatprep.subr.mxu0 0.0
        %516 = vmatpush1.msra.mxu0 %v493
        %517 = vmatprep.subr.mxu0 0.0
        %518 = vmatpush1.msra.mxu0 %v494
        %519 = vmatprep.subr.mxu0 0.0
        %520 = vmatpush1.msra.mxu0 %v495
        %521 = vmatprep.subr.mxu0 0.0
        %522 = vmatpush1.msra.mxu0 %v496
        %523 = vmatprep.subr.mxu0 0.0
        %524 = vmatpush1.msra.mxu0 %v497
        %525 = vmatprep.subr.mxu0 0.0
        %526 = vmatpush1.msra.mxu0 %v498
        %527 = vmatprep.subr.mxu0 0.0
        %528 = vmatpush1.msra.mxu0 %v499
        %529 = vmatprep.subr.mxu0 0.0
        %530 = vmatpush1.msra.mxu0 %v500
        %531 = vmatprep.subr.mxu0 0.0
        %532 = vmatpush1.msra.mxu0 0.0
        %533 = vmatprep.subr.mxu0 0.0
        %534 = vmatpush1.msra.mxu0 0.0
        %535 = vmatprep.subr.mxu0 0.0
        %536 = vmatpush1.msra.mxu0 0.0
        %537 = vmatprep.subr.mxu0 0.0
        %538 = vmatpush1.msra.mxu0 0.0
        %539 = vmatprep.subr.mxu0 0.0
        %540 = vmatpush1.msra.mxu0 0.0
        %541 = vmatprep.subr.mxu0 0.0
        %542 = vmatpush1.msra.mxu0 0.0
        %543 = vmatprep.subr.mxu0 0.0
        %544 = vmatpush1.msra.mxu0 0.0
        %545 = vmatprep.subr.mxu0 0.0
        %546 = vmatpush1.msra.mxu0 0.0
        %547 = vmatprep.subr.mxu0 0.0
        %548 = vmatpush1.msra.mxu0 0.0
        %549 = vmatprep.subr.mxu0 0.0
        %550 = vmatpush1.msra.mxu0 0.0
        %551 = vmatprep.subr.mxu0 0.0
        %552 = vmatpush1.msra.mxu0 0.0
        %553 = vmatprep.subr.mxu0 0.0
        %554 = vmatpush1.msra.mxu0 0.0
        %555 = vmatprep.subr.mxu0 0.0
        %556 = vmatpush1.msra.mxu0 0.0
        %557 = vmatprep.subr.mxu0 0.0
        %558 = vmatpush1.msra.mxu0 0.0
        %559 = vmatprep.subr.mxu0 0.0
        %560 = vmatpush1.msra.mxu0 0.0
        %561 = vmatprep.subr.mxu0 0.0
        %562 = vmatpush1.msra.mxu0 0.0
        %563 = vmatprep.subr.mxu0 0.0
        %564 = vmatpush1.msra.mxu0 0.0
        %565 = vmatprep.subr.mxu0 0.0
        %566 = vmatpush1.msra.mxu0 0.0
        %567 = vmatprep.subr.mxu0 0.0
        %568 = vmatpush1.msra.mxu0 0.0
        %569 = vmatprep.subr.mxu0 0.0
        %570 = vmatpush1.msra.mxu0 0.0
        %571 = vmatprep.subr.mxu0 0.0
        %572 = vmatpush1.msra.mxu0 0.0
        %573 = vmatprep.subr.mxu0 0.0
        %574 = vmatpush1.msra.mxu0 0.0
        %575 = vmatprep.subr.mxu0 0.0
        %576 = vmatpush1.msra.mxu0 0.0
        %577 = vmatprep.subr.mxu0 0.0
        %578 = vmatpush1.msra.mxu0 0.0
        %579 = vmatprep.mubr.f32.mxu0 0.0
        %580 = vmatmul.mubr.f32.gmra.mrb[0].mxu0 %v510
        %v581 = vpop.f32.mrb[0].mxu0
        %v582 = vadd.f32 %v506, %v581
        %v583 = vpop.f32.mrb[0].mxu0
        %584 = vmatprep.mubr.f32.mxu0 0.0
        %585 = vmatmul.mubr.f32.gmra.mrb[0].mxu0 %v513
        %v586 = vpop.f32.mrb[0].mxu0
        %v587 = vadd.f32 %v506, %v586
        %v588 = vpop.f32.mrb[0].mxu0
        %589 = vdwg.mxu0
        %vm590 = vcmask 130048
        %v592 = vsel %vm590, %v492, 0
        %v595 = vsel %vm590, %v582, 0
        %v598 = vsel %vm590, %v587, 0
        %600 = vmatprep.subr.mxu0 0.0
        %601 = vmatpush1.xpose.msra.mxu0 %v595
        %602 = vmatprep.subr.mxu0 0.0
        %603 = vmatpush1.xpose.msra.mxu0 %v598
        %604 = vmatprep.subr.mxu0 0.0
        %605 = vmatpush1.xpose.msra.mxu0 0.0
        %606 = vmatprep.subr.mxu0 0.0
        %607 = vmatpush1.xpose.msra.mxu0 0.0
        %608 = vmatprep.subr.mxu0 0.0
        %609 = vmatpush1.xpose.msra.mxu0 0.0
        %610 = vmatprep.subr.mxu0 0.0
        %611 = vmatpush1.xpose.msra.mxu0 0.0
        %612 = vmatprep.subr.mxu0 0.0
        %613 = vmatpush1.xpose.msra.mxu0 0.0
        %614 = vmatprep.subr.mxu0 0.0
        %615 = vmatpush1.xpose.msra.mxu0 0.0
        %616 = vmatprep.subr.mxu0 0.0
        %617 = vmatpush1.xpose.msra.mxu0 0.0
        %618 = vmatprep.subr.mxu0 0.0
        %619 = vmatpush1.xpose.msra.mxu0 0.0
        %620 = vmatprep.subr.mxu0 0.0
        %621 = vmatpush1.xpose.msra.mxu0 0.0
        %622 = vmatprep.subr.mxu0 0.0
        %623 = vmatpush1.xpose.msra.mxu0 0.0
        %624 = vmatprep.subr.mxu0 0.0
        %625 = vmatpush1.xpose.msra.mxu0 0.0
        %626 = vmatprep.subr.mxu0 0.0
        %627 = vmatpush1.xpose.msra.mxu0 0.0
        %628 = vmatprep.subr.mxu0 0.0
        %629 = vmatpush1.xpose.msra.mxu0 0.0
        %630 = vmatprep.subr.mxu0 0.0
        %631 = vmatpush1.xpose.msra.mxu0 0.0
        %632 = vmatprep.subr.mxu0 0.0
        %633 = vmatpush1.xpose.msra.mxu0 0.0
        %634 = vmatprep.subr.mxu0 0.0
        %635 = vmatpush1.xpose.msra.mxu0 0.0
        %636 = vmatprep.subr.mxu0 0.0
        %637 = vmatpush1.xpose.msra.mxu0 0.0
        %638 = vmatprep.subr.mxu0 0.0
        %639 = vmatpush1.xpose.msra.mxu0 0.0
        %640 = vmatprep.subr.mxu0 0.0
        %641 = vmatpush1.xpose.msra.mxu0 0.0
        %642 = vmatprep.subr.mxu0 0.0
        %643 = vmatpush1.xpose.msra.mxu0 0.0
        %644 = vmatprep.subr.mxu0 0.0
        %645 = vmatpush1.xpose.msra.mxu0 0.0
        %646 = vmatprep.subr.mxu0 0.0
        %647 = vmatpush1.xpose.msra.mxu0 0.0
        %648 = vmatprep.subr.mxu0 0.0
        %649 = vmatpush1.xpose.msra.mxu0 0.0
        %650 = vmatprep.subr.mxu0 0.0
        %651 = vmatpush1.xpose.msra.mxu0 0.0
        %652 = vmatprep.subr.mxu0 0.0
        %653 = vmatpush1.xpose.msra.mxu0 0.0
        %654 = vmatprep.subr.mxu0 0.0
        %655 = vmatpush1.xpose.msra.mxu0 0.0
        %656 = vmatprep.subr.mxu0 0.0
        %657 = vmatpush1.xpose.msra.mxu0 0.0
        %658 = vmatprep.subr.mxu0 0.0
        %659 = vmatpush1.xpose.msra.mxu0 0.0
        %660 = vmatprep.subr.mxu0 0.0
        %661 = vmatpush1.xpose.msra.mxu0 0.0
        %662 = vmatprep.subr.mxu0 0.0
        %663 = vmatpush1.xpose.msra.mxu0 0.0
        %664 = vmatprep.mubr.f32.mxu0 0.0
        %665 = vmatmul.mubr.f32.gmra.mrb[0].mxu0 %v592
        %v666 = vpop.f32.mrb[0].mxu0
        %v667 = vadd.f32 %v406, %v666
        %v668 = vpop.f32.mrb[0].mxu0
        %669 = vdwg.mxu0
        %v670 = vsel %vm590, %v667, -inf
        %671 = vmax.xlane.f32.xlu0 %v670
        %v672 = vpop.xlane.xlu0 %671
        %v673 = vsub.f32 %v667, %v672
        %v674 = vmul.f32 %v673, 1.442695
        %v675 = vpow.pop %v674
        %v676 = vsel %vm590, %v675, 0.0
        %677 = vadd.xlane.f32.xlu0 %v676
        %v678 = vpop.xlane.xlu0 %677
        %v679 = vrcp.pop %v678
        %v680 = vmul.f32 %v675, %v679
        %681 = vst.msk [vmem:[%s385] sm:$0xff] %vm590, %v680
        %682 = vrot.lane.b32.xlu0 %v582, 64
        %v683 = vpop.permute.xlu0 %682
        %684 = vrot.lane.b32.xlu0 %v587, 64
        %v685 = vpop.permute.xlu0 %684
        %v689 = vsel %vm590, %v680, 0
        %691 = vmatprep.subr.mxu0 0.0
        %692 = vmatpush1.msra.mxu0 %v683
        %693 = vmatprep.subr.mxu0 0.0
        %694 = vmatpush1.msra.mxu0 %v685
        %695 = vmatprep.subr.mxu0 0.0
        %696 = vmatpush1.msra.mxu0 0.0
        %697 = vmatprep.subr.mxu0 0.0
        %698 = vmatpush1.msra.mxu0 0.0
        %699 = vmatprep.subr.mxu0 0.0
        %700 = vmatpush1.msra.mxu0 0.0
        %701 = vmatprep.subr.mxu0 0.0
        %702 = vmatpush1.msra.mxu0 0.0
        %703 = vmatprep.subr.mxu0 0.0
        %704 = vmatpush1.msra.mxu0 0.0
        %705 = vmatprep.subr.mxu0 0.0
        %706 = vmatpush1.msra.mxu0 0.0
        %707 = vmatprep.subr.mxu0 0.0
        %708 = vmatpush1.msra.mxu0 0.0
        %709 = vmatprep.subr.mxu0 0.0
        %710 = vmatpush1.msra.mxu0 0.0
        %711 = vmatprep.subr.mxu0 0.0
        %712 = vmatpush1.msra.mxu0 0.0
        %713 = vmatprep.subr.mxu0 0.0
        %714 = vmatpush1.msra.mxu0 0.0
        %715 = vmatprep.subr.mxu0 0.0
        %716 = vmatpush1.msra.mxu0 0.0
        %717 = vmatprep.subr.mxu0 0.0
        %718 = vmatpush1.msra.mxu0 0.0
        %719 = vmatprep.subr.mxu0 0.0
        %720 = vmatpush1.msra.mxu0 0.0
        %721 = vmatprep.subr.mxu0 0.0
        %722 = vmatpush1.msra.mxu0 0.0
        %723 = vmatprep.subr.mxu0 0.0
        %724 = vmatpush1.msra.mxu0 0.0
        %725 = vmatprep.subr.mxu0 0.0
        %726 = vmatpush1.msra.mxu0 0.0
        %727 = vmatprep.subr.mxu0 0.0
        %728 = vmatpush1.msra.mxu0 0.0
        %729 = vmatprep.subr.mxu0 0.0
        %730 = vmatpush1.msra.mxu0 0.0
        %731 = vmatprep.subr.mxu0 0.0
        %732 = vmatpush1.msra.mxu0 0.0
        %733 = vmatprep.subr.mxu0 0.0
        %734 = vmatpush1.msra.mxu0 0.0
        %735 = vmatprep.subr.mxu0 0.0
        %736 = vmatpush1.msra.mxu0 0.0
        %737 = vmatprep.subr.mxu0 0.0
        %738 = vmatpush1.msra.mxu0 0.0
        %739 = vmatprep.subr.mxu0 0.0
        %740 = vmatpush1.msra.mxu0 0.0
        %741 = vmatprep.subr.mxu0 0.0
        %742 = vmatpush1.msra.mxu0 0.0
        %743 = vmatprep.subr.mxu0 0.0
        %744 = vmatpush1.msra.mxu0 0.0
        %745 = vmatprep.subr.mxu0 0.0
        %746 = vmatpush1.msra.mxu0 0.0
        %747 = vmatprep.subr.mxu0 0.0
        %748 = vmatpush1.msra.mxu0 0.0
        %749 = vmatprep.subr.mxu0 0.0
        %750 = vmatpush1.msra.mxu0 0.0
        %751 = vmatprep.subr.mxu0 0.0
        %752 = vmatpush1.msra.mxu0 0.0
        %753 = vmatprep.subr.mxu0 0.0
        %754 = vmatpush1.msra.mxu0 0.0
        %755 = vmatprep.mubr.f32.mxu0 0.0
        %756 = vmatmul.mubr.f32.gmra.mrb[0].mxu0 %v689
        %v757 = vpop.f32.mrb[0].mxu0
        %v758 = vadd.f32 0.0, %v757
        %v759 = vpop.f32.mrb[0].mxu0
        %760 = vdwg.mxu0
        %761 = vrot.lane.b32.xlu0 %v492, 112
        %v762 = vpop.permute.xlu0 %761
        %763 = vrot.lane.b32.xlu0 %v582, 112
        %v764 = vpop.permute.xlu0 %763
        %765 = vrot.lane.b32.xlu0 %v587, 112
        %v766 = vpop.permute.xlu0 %765
        %v767 = vsel %vm590, %v762, 0
        %v769 = vsel %vm590, %v764, 0
        %v771 = vsel %vm590, %v766, 0
        %773 = vmatprep.subr.mxu0 0.0
        %774 = vmatpush1.xpose.msra.mxu0 %v769
        %775 = vmatprep.subr.mxu0 0.0
        %776 = vmatpush1.xpose.msra.mxu0 %v771
        %777 = vmatprep.subr.mxu0 0.0
        %778 = vmatpush1.xpose.msra.mxu0 0.0
        %779 = vmatprep.subr.mxu0 0.0
        %780 = vmatpush1.xpose.msra.mxu0 0.0
        %781 = vmatprep.subr.mxu0 0.0
        %782 = vmatpush1.xpose.msra.mxu0 0.0
        %783 = vmatprep.subr.mxu0 0.0
        %784 = vmatpush1.xpose.msra.mxu0 0.0
        %785 = vmatprep.subr.mxu0 0.0
        %786 = vmatpush1.xpose.msra.mxu0 0.0
        %787 = vmatprep.subr.mxu0 0.0
        %788 = vmatpush1.xpose.msra.mxu0 0.0
        %789 = vmatprep.subr.mxu0 0.0
        %790 = vmatpush1.xpose.msra.mxu0 0.0
        %791 = vmatprep.subr.mxu0 0.0
        %792 = vmatpush1.xpose.msra.mxu0 0.0
        %793 = vmatprep.subr.mxu0 0.0
        %794 = vmatpush1.xpose.msra.mxu0 0.0
        %795 = vmatprep.subr.mxu0 0.0
        %796 = vmatpush1.xpose.msra.mxu0 0.0
        %797 = vmatprep.subr.mxu0 0.0
        %798 = vmatpush1.xpose.msra.mxu0 0.0
        %799 = vmatprep.subr.mxu0 0.0
        %800 = vmatpush1.xpose.msra.mxu0 0.0
        %801 = vmatprep.subr.mxu0 0.0
        %802 = vmatpush1.xpose.msra.mxu0 0.0
        %803 = vmatprep.subr.mxu0 0.0
        %804 = vmatpush1.xpose.msra.mxu0 0.0
        %805 = vmatprep.subr.mxu0 0.0
        %806 = vmatpush1.xpose.msra.mxu0 0.0
        %807 = vmatprep.subr.mxu0 0.0
        %808 = vmatpush1.xpose.msra.mxu0 0.0
        %809 = vmatprep.subr.mxu0 0.0
        %810 = vmatpush1.xpose.msra.mxu0 0.0
        %811 = vmatprep.subr.mxu0 0.0
        %812 = vmatpush1.xpose.msra.mxu0 0.0
        %813 = vmatprep.subr.mxu0 0.0
        %814 = vmatpush1.xpose.msra.mxu0 0.0
        %815 = vmatprep.subr.mxu0 0.0
        %816 = vmatpush1.xpose.msra.mxu0 0.0
        %817 = vmatprep.subr.mxu0 0.0
        %818 = vmatpush1.xpose.msra.mxu0 0.0
        %819 = vmatprep.subr.mxu0 0.0
        %820 = vmatpush1.xpose.msra.mxu0 0.0
        %821 = vmatprep.subr.mxu0 0.0
        %822 = vmatpush1.xpose.msra.mxu0 0.0
        %823 = vmatprep.subr.mxu0 0.0
        %824 = vmatpush1.xpose.msra.mxu0 0.0
        %825 = vmatprep.subr.mxu0 0.0
        %826 = vmatpush1.xpose.msra.mxu0 0.0
        %827 = vmatprep.subr.mxu0 0.0
        %828 = vmatpush1.xpose.msra.mxu0 0.0
        %829 = vmatprep.subr.mxu0 0.0
        %830 = vmatpush1.xpose.msra.mxu0 0.0
        %831 = vmatprep.subr.mxu0 0.0
        %832 = vmatpush1.xpose.msra.mxu0 0.0
        %833 = vmatprep.subr.mxu0 0.0
        %834 = vmatpush1.xpose.msra.mxu0 0.0
        %835 = vmatprep.subr.mxu0 0.0
        %836 = vmatpush1.xpose.msra.mxu0 0.0
        %837 = vmatprep.mubr.f32.mxu0 0.0
        %838 = vmatmul.mubr.f32.gmra.mrb[0].mxu0 %v767
        %v839 = vpop.f32.mrb[0].mxu0
        %v840 = vadd.f32 %v406, %v839
        %v841 = vpop.f32.mrb[0].mxu0
        %842 = vdwg.mxu0
        %v843 = vsel %vm590, %v840, -inf
        %844 = vmax.xlane.f32.xlu0 %v843
        %v845 = vpop.xlane.xlu0 %844
        %v846 = vsub.f32 %v840, %v845
        %v847 = vmul.f32 %v846, 1.442695
        %v848 = vpow.pop %v847
        %v849 = vsel %vm590, %v848, 0.0
        %850 = vadd.xlane.f32.xlu0 %v849
        %v851 = vpop.xlane.xlu0 %850
        %v852 = vrcp.pop %v851
        %v853 = vmul.f32 %v848, %v852
        %s854 = scalar_lea.vmem %s385, 8 [#allocation2]
        %855 = vst.msk [vmem:[%s854] sm:$0xff] %vm590, %v853
        %856 = vrot.lane.b32.xlu0 %v582, 48
        %v857 = vpop.permute.xlu0 %856
        %858 = vrot.lane.b32.xlu0 %v587, 48
        %v859 = vpop.permute.xlu0 %858
        %v863 = vsel %vm590, %v853, 0
        %865 = vmatprep.subr.mxu0 0.0
        %866 = vmatpush1.msra.mxu0 %v857
        %867 = vmatprep.subr.mxu0 0.0
        %868 = vmatpush1.msra.mxu0 %v859
        %869 = vmatprep.subr.mxu0 0.0
        %870 = vmatpush1.msra.mxu0 0.0
        %871 = vmatprep.subr.mxu0 0.0
        %872 = vmatpush1.msra.mxu0 0.0
        %873 = vmatprep.subr.mxu0 0.0
        %874 = vmatpush1.msra.mxu0 0.0
        %875 = vmatprep.subr.mxu0 0.0
        %876 = vmatpush1.msra.mxu0 0.0
        %877 = vmatprep.subr.mxu0 0.0
        %878 = vmatpush1.msra.mxu0 0.0
        %879 = vmatprep.subr.mxu0 0.0
        %880 = vmatpush1.msra.mxu0 0.0
        %881 = vmatprep.subr.mxu0 0.0
        %882 = vmatpush1.msra.mxu0 0.0
        %883 = vmatprep.subr.mxu0 0.0
        %884 = vmatpush1.msra.mxu0 0.0
        %885 = vmatprep.subr.mxu0 0.0
        %886 = vmatpush1.msra.mxu0 0.0
        %887 = vmatprep.subr.mxu0 0.0
        %888 = vmatpush1.msra.mxu0 0.0
        %889 = vmatprep.subr.mxu0 0.0
        %890 = vmatpush1.msra.mxu0 0.0
        %891 = vmatprep.subr.mxu0 0.0
        %892 = vmatpush1.msra.mxu0 0.0
        %893 = vmatprep.subr.mxu0 0.0
        %894 = vmatpush1.msra.mxu0 0.0
        %895 = vmatprep.subr.mxu0 0.0
        %896 = vmatpush1.msra.mxu0 0.0
        %897 = vmatprep.subr.mxu0 0.0
        %898 = vmatpush1.msra.mxu0 0.0
        %899 = vmatprep.subr.mxu0 0.0
        %900 = vmatpush1.msra.mxu0 0.0
        %901 = vmatprep.subr.mxu0 0.0
        %902 = vmatpush1.msra.mxu0 0.0
        %903 = vmatprep.subr.mxu0 0.0
        %904 = vmatpush1.msra.mxu0 0.0
        %905 = vmatprep.subr.mxu0 0.0
        %906 = vmatpush1.msra.mxu0 0.0
        %907 = vmatprep.subr.mxu0 0.0
        %908 = vmatpush1.msra.mxu0 0.0
        %909 = vmatprep.subr.mxu0 0.0
        %910 = vmatpush1.msra.mxu0 0.0
        %911 = vmatprep.subr.mxu0 0.0
        %912 = vmatpush1.msra.mxu0 0.0
        %913 = vmatprep.subr.mxu0 0.0
        %914 = vmatpush1.msra.mxu0 0.0
        %915 = vmatprep.subr.mxu0 0.0
        %916 = vmatpush1.msra.mxu0 0.0
        %917 = vmatprep.subr.mxu0 0.0
        %918 = vmatpush1.msra.mxu0 0.0
        %919 = vmatprep.subr.mxu0 0.0
        %920 = vmatpush1.msra.mxu0 0.0
        %921 = vmatprep.subr.mxu0 0.0
        %922 = vmatpush1.msra.mxu0 0.0
        %923 = vmatprep.subr.mxu0 0.0
        %924 = vmatpush1.msra.mxu0 0.0
        %925 = vmatprep.subr.mxu0 0.0
        %926 = vmatpush1.msra.mxu0 0.0
        %927 = vmatprep.subr.mxu0 0.0
        %928 = vmatpush1.msra.mxu0 0.0
        %929 = vmatprep.mubr.f32.mxu0 0.0
        %930 = vmatmul.mubr.f32.gmra.mrb[0].mxu0 %v863
        %v931 = vpop.f32.mrb[0].mxu0
        %v932 = vadd.f32 0.0, %v931
        %v933 = vpop.f32.mrb[0].mxu0
        %934 = vdwg.mxu0
        %935 = vrot.lane.b32.xlu0 %v492, 96
        %v936 = vpop.permute.xlu0 %935
        %937 = vrot.lane.b32.xlu0 %v582, 96
        %v938 = vpop.permute.xlu0 %937
        %939 = vrot.lane.b32.xlu0 %v587, 96
        %v940 = vpop.permute.xlu0 %939
        %v941 = vsel %vm590, %v936, 0
        %v943 = vsel %vm590, %v938, 0
        %v945 = vsel %vm590, %v940, 0
        %947 = vmatprep.subr.mxu0 0.0
        %948 = vmatpush1.xpose.msra.mxu0 %v943
        %949 = vmatprep.subr.mxu0 0.0
        %950 = vmatpush1.xpose.msra.mxu0 %v945
        %951 = vmatprep.subr.mxu0 0.0
        %952 = vmatpush1.xpose.msra.mxu0 0.0
        %953 = vmatprep.subr.mxu0 0.0
        %954 = vmatpush1.xpose.msra.mxu0 0.0
        %955 = vmatprep.subr.mxu0 0.0
        %956 = vmatpush1.xpose.msra.mxu0 0.0
        %957 = vmatprep.subr.mxu0 0.0
        %958 = vmatpush1.xpose.msra.mxu0 0.0
        %959 = vmatprep.subr.mxu0 0.0
        %960 = vmatpush1.xpose.msra.mxu0 0.0
        %961 = vmatprep.subr.mxu0 0.0
        %962 = vmatpush1.xpose.msra.mxu0 0.0
        %963 = vmatprep.subr.mxu0 0.0
        %964 = vmatpush1.xpose.msra.mxu0 0.0
        %965 = vmatprep.subr.mxu0 0.0
        %966 = vmatpush1.xpose.msra.mxu0 0.0
        %967 = vmatprep.subr.mxu0 0.0
        %968 = vmatpush1.xpose.msra.mxu0 0.0
        %969 = vmatprep.subr.mxu0 0.0
        %970 = vmatpush1.xpose.msra.mxu0 0.0
        %971 = vmatprep.subr.mxu0 0.0
        %972 = vmatpush1.xpose.msra.mxu0 0.0
        %973 = vmatprep.subr.mxu0 0.0
        %974 = vmatpush1.xpose.msra.mxu0 0.0
        %975 = vmatprep.subr.mxu0 0.0
        %976 = vmatpush1.xpose.msra.mxu0 0.0
        %977 = vmatprep.subr.mxu0 0.0
        %978 = vmatpush1.xpose.msra.mxu0 0.0
        %979 = vmatprep.subr.mxu0 0.0
        %980 = vmatpush1.xpose.msra.mxu0 0.0
        %981 = vmatprep.subr.mxu0 0.0
        %982 = vmatpush1.xpose.msra.mxu0 0.0
        %983 = vmatprep.subr.mxu0 0.0
        %984 = vmatpush1.xpose.msra.mxu0 0.0
        %985 = vmatprep.subr.mxu0 0.0
        %986 = vmatpush1.xpose.msra.mxu0 0.0
        %987 = vmatprep.subr.mxu0 0.0
        %988 = vmatpush1.xpose.msra.mxu0 0.0
        %989 = vmatprep.subr.mxu0 0.0
        %990 = vmatpush1.xpose.msra.mxu0 0.0
        %991 = vmatprep.subr.mxu0 0.0
        %992 = vmatpush1.xpose.msra.mxu0 0.0
        %993 = vmatprep.subr.mxu0 0.0
        %994 = vmatpush1.xpose.msra.mxu0 0.0
        %995 = vmatprep.subr.mxu0 0.0
        %996 = vmatpush1.xpose.msra.mxu0 0.0
        %997 = vmatprep.subr.mxu0 0.0
        %998 = vmatpush1.xpose.msra.mxu0 0.0
        %999 = vmatprep.subr.mxu0 0.0
        %1000 = vmatpush1.xpose.msra.mxu0 0.0
        %1001 = vmatprep.subr.mxu0 0.0
        %1002 = vmatpush1.xpose.msra.mxu0 0.0
        %1003 = vmatprep.subr.mxu0 0.0
        %1004 = vmatpush1.xpose.msra.mxu0 0.0
        %1005 = vmatprep.subr.mxu0 0.0
        %1006 = vmatpush1.xpose.msra.mxu0 0.0
        %1007 = vmatprep.subr.mxu0 0.0
        %1008 = vmatpush1.xpose.msra.mxu0 0.0
        %1009 = vmatprep.subr.mxu0 0.0
        %1010 = vmatpush1.xpose.msra.mxu0 0.0
        %1011 = vmatprep.mubr.f32.mxu0 0.0
        %1012 = vmatmul.mubr.f32.gmra.mrb[0].mxu0 %v941
        %v1013 = vpop.f32.mrb[0].mxu0
        %v1014 = vadd.f32 %v406, %v1013
        %v1015 = vpop.f32.mrb[0].mxu0
        %1016 = vdwg.mxu0
        %v1017 = vsel %vm590, %v1014, -inf
        %1018 = vmax.xlane.f32.xlu0 %v1017
        %v1019 = vpop.xlane.xlu0 %1018
        %v1020 = vsub.f32 %v1014, %v1019
        %v1021 = vmul.f32 %v1020, 1.442695
        %v1022 = vpow.pop %v1021
        %v1023 = vsel %vm590, %v1022, 0.0
        %1024 = vadd.xlane.f32.xlu0 %v1023
        %v1025 = vpop.xlane.xlu0 %1024
        %v1026 = vrcp.pop %v1025
        %v1027 = vmul.f32 %v1022, %v1026
        %s1028 = scalar_lea.vmem %s385, 16 [#allocation2]
        %1029 = vst.msk [vmem:[%s1028] sm:$0xff] %vm590, %v1027
        %1030 = vrot.lane.b32.xlu0 %v582, 32
        %v1031 = vpop.permute.xlu0 %1030
        %1032 = vrot.lane.b32.xlu0 %v587, 32
        %v1033 = vpop.permute.xlu0 %1032
        %v1037 = vsel %vm590, %v1027, 0
        %1039 = vmatprep.subr.mxu0 0.0
        %1040 = vmatpush1.msra.mxu0 %v1031
        %1041 = vmatprep.subr.mxu0 0.0
        %1042 = vmatpush1.msra.mxu0 %v1033
        %1043 = vmatprep.subr.mxu0 0.0
        %1044 = vmatpush1.msra.mxu0 0.0
        %1045 = vmatprep.subr.mxu0 0.0
        %1046 = vmatpush1.msra.mxu0 0.0
        %1047 = vmatprep.subr.mxu0 0.0
        %1048 = vmatpush1.msra.mxu0 0.0
        %1049 = vmatprep.subr.mxu0 0.0
        %1050 = vmatpush1.msra.mxu0 0.0
        %1051 = vmatprep.subr.mxu0 0.0
        %1052 = vmatpush1.msra.mxu0 0.0
        %1053 = vmatprep.subr.mxu0 0.0
        %1054 = vmatpush1.msra.mxu0 0.0
        %1055 = vmatprep.subr.mxu0 0.0
        %1056 = vmatpush1.msra.mxu0 0.0
        %1057 = vmatprep.subr.mxu0 0.0
        %1058 = vmatpush1.msra.mxu0 0.0
        %1059 = vmatprep.subr.mxu0 0.0
        %1060 = vmatpush1.msra.mxu0 0.0
        %1061 = vmatprep.subr.mxu0 0.0
        %1062 = vmatpush1.msra.mxu0 0.0
        %1063 = vmatprep.subr.mxu0 0.0
        %1064 = vmatpush1.msra.mxu0 0.0
        %1065 = vmatprep.subr.mxu0 0.0
        %1066 = vmatpush1.msra.mxu0 0.0
        %1067 = vmatprep.subr.mxu0 0.0
        %1068 = vmatpush1.msra.mxu0 0.0
        %1069 = vmatprep.subr.mxu0 0.0
        %1070 = vmatpush1.msra.mxu0 0.0
        %1071 = vmatprep.subr.mxu0 0.0
        %1072 = vmatpush1.msra.mxu0 0.0
        %1073 = vmatprep.subr.mxu0 0.0
        %1074 = vmatpush1.msra.mxu0 0.0
        %1075 = vmatprep.subr.mxu0 0.0
        %1076 = vmatpush1.msra.mxu0 0.0
        %1077 = vmatprep.subr.mxu0 0.0
        %1078 = vmatpush1.msra.mxu0 0.0
        %1079 = vmatprep.subr.mxu0 0.0
        %1080 = vmatpush1.msra.mxu0 0.0
        %1081 = vmatprep.subr.mxu0 0.0
        %1082 = vmatpush1.msra.mxu0 0.0
        %1083 = vmatprep.subr.mxu0 0.0
        %1084 = vmatpush1.msra.mxu0 0.0
        %1085 = vmatprep.subr.mxu0 0.0
        %1086 = vmatpush1.msra.mxu0 0.0
        %1087 = vmatprep.subr.mxu0 0.0
        %1088 = vmatpush1.msra.mxu0 0.0
        %1089 = vmatprep.subr.mxu0 0.0
        %1090 = vmatpush1.msra.mxu0 0.0
        %1091 = vmatprep.subr.mxu0 0.0
        %1092 = vmatpush1.msra.mxu0 0.0
        %1093 = vmatprep.subr.mxu0 0.0
        %1094 = vmatpush1.msra.mxu0 0.0
        %1095 = vmatprep.subr.mxu0 0.0
        %1096 = vmatpush1.msra.mxu0 0.0
        %1097 = vmatprep.subr.mxu0 0.0
        %1098 = vmatpush1.msra.mxu0 0.0
        %1099 = vmatprep.subr.mxu0 0.0
        %1100 = vmatpush1.msra.mxu0 0.0
        %1101 = vmatprep.subr.mxu0 0.0
        %1102 = vmatpush1.msra.mxu0 0.0
        %1103 = vmatprep.mubr.f32.mxu0 0.0
        %1104 = vmatmul.mubr.f32.gmra.mrb[0].mxu0 %v1037
        %v1105 = vpop.f32.mrb[0].mxu0
        %v1106 = vadd.f32 0.0, %v1105
        %v1107 = vpop.f32.mrb[0].mxu0
        %1108 = vdwg.mxu0
        %1109 = vrot.lane.b32.xlu0 %v492, 80
        %v1110 = vpop.permute.xlu0 %1109
        %1111 = vrot.lane.b32.xlu0 %v582, 80
        %v1112 = vpop.permute.xlu0 %1111
        %1113 = vrot.lane.b32.xlu0 %v587, 80
        %v1114 = vpop.permute.xlu0 %1113
        %v1115 = vsel %vm590, %v1110, 0
        %v1117 = vsel %vm590, %v1112, 0
        %v1119 = vsel %vm590, %v1114, 0
        %1121 = vmatprep.subr.mxu0 0.0
        %1122 = vmatpush1.xpose.msra.mxu0 %v1117
        %1123 = vmatprep.subr.mxu0 0.0
        %1124 = vmatpush1.xpose.msra.mxu0 %v1119
        %1125 = vmatprep.subr.mxu0 0.0
        %1126 = vmatpush1.xpose.msra.mxu0 0.0
        %1127 = vmatprep.subr.mxu0 0.0
        %1128 = vmatpush1.xpose.msra.mxu0 0.0
        %1129 = vmatprep.subr.mxu0 0.0
        %1130 = vmatpush1.xpose.msra.mxu0 0.0
        %1131 = vmatprep.subr.mxu0 0.0
        %1132 = vmatpush1.xpose.msra.mxu0 0.0
        %1133 = vmatprep.subr.mxu0 0.0
        %1134 = vmatpush1.xpose.msra.mxu0 0.0
        %1135 = vmatprep.subr.mxu0 0.0
        %1136 = vmatpush1.xpose.msra.mxu0 0.0
        %1137 = vmatprep.subr.mxu0 0.0
        %1138 = vmatpush1.xpose.msra.mxu0 0.0
        %1139 = vmatprep.subr.mxu0 0.0
        %1140 = vmatpush1.xpose.msra.mxu0 0.0
        %1141 = vmatprep.subr.mxu0 0.0
        %1142 = vmatpush1.xpose.msra.mxu0 0.0
        %1143 = vmatprep.subr.mxu0 0.0
        %1144 = vmatpush1.xpose.msra.mxu0 0.0
        %1145 = vmatprep.subr.mxu0 0.0
        %1146 = vmatpush1.xpose.msra.mxu0 0.0
        %1147 = vmatprep.subr.mxu0 0.0
        %1148 = vmatpush1.xpose.msra.mxu0 0.0
        %1149 = vmatprep.subr.mxu0 0.0
        %1150 = vmatpush1.xpose.msra.mxu0 0.0
        %1151 = vmatprep.subr.mxu0 0.0
        %1152 = vmatpush1.xpose.msra.mxu0 0.0
        %1153 = vmatprep.subr.mxu0 0.0
        %1154 = vmatpush1.xpose.msra.mxu0 0.0
        %1155 = vmatprep.subr.mxu0 0.0
        %1156 = vmatpush1.xpose.msra.mxu0 0.0
        %1157 = vmatprep.subr.mxu0 0.0
        %1158 = vmatpush1.xpose.msra.mxu0 0.0
        %1159 = vmatprep.subr.mxu0 0.0
        %1160 = vmatpush1.xpose.msra.mxu0 0.0
        %1161 = vmatprep.subr.mxu0 0.0
        %1162 = vmatpush1.xpose.msra.mxu0 0.0
        %1163 = vmatprep.subr.mxu0 0.0
        %1164 = vmatpush1.xpose.msra.mxu0 0.0
        %1165 = vmatprep.subr.mxu0 0.0
        %1166 = vmatpush1.xpose.msra.mxu0 0.0
        %1167 = vmatprep.subr.mxu0 0.0
        %1168 = vmatpush1.xpose.msra.mxu0 0.0
        %1169 = vmatprep.subr.mxu0 0.0
        %1170 = vmatpush1.xpose.msra.mxu0 0.0
        %1171 = vmatprep.subr.mxu0 0.0
        %1172 = vmatpush1.xpose.msra.mxu0 0.0
        %1173 = vmatprep.subr.mxu0 0.0
        %1174 = vmatpush1.xpose.msra.mxu0 0.0
        %1175 = vmatprep.subr.mxu0 0.0
        %1176 = vmatpush1.xpose.msra.mxu0 0.0
        %1177 = vmatprep.subr.mxu0 0.0
        %1178 = vmatpush1.xpose.msra.mxu0 0.0
        %1179 = vmatprep.subr.mxu0 0.0
        %1180 = vmatpush1.xpose.msra.mxu0 0.0
        %1181 = vmatprep.subr.mxu0 0.0
        %1182 = vmatpush1.xpose.msra.mxu0 0.0
        %1183 = vmatprep.subr.mxu0 0.0
        %1184 = vmatpush1.xpose.msra.mxu0 0.0
        %1185 = vmatprep.mubr.f32.mxu0 0.0
        %1186 = vmatmul.mubr.f32.gmra.mrb[0].mxu0 %v1115
        %v1187 = vpop.f32.mrb[0].mxu0
        %v1188 = vadd.f32 %v406, %v1187
        %v1189 = vpop.f32.mrb[0].mxu0
        %1190 = vdwg.mxu0
        %v1191 = vsel %vm590, %v1188, -inf
        %1192 = vmax.xlane.f32.xlu0 %v1191
        %v1193 = vpop.xlane.xlu0 %1192
        %v1194 = vsub.f32 %v1188, %v1193
        %v1195 = vmul.f32 %v1194, 1.442695
        %v1196 = vpow.pop %v1195
        %v1197 = vsel %vm590, %v1196, 0.0
        %1198 = vadd.xlane.f32.xlu0 %v1197
        %v1199 = vpop.xlane.xlu0 %1198
        %v1200 = vrcp.pop %v1199
        %v1201 = vmul.f32 %v1196, %v1200
        %s1202 = scalar_lea.vmem %s385, 24 [#allocation2]
        %1203 = vst.msk [vmem:[%s1202] sm:$0xff] %vm590, %v1201
        %1204 = vrot.lane.b32.xlu0 %v582, 16
        %v1205 = vpop.permute.xlu0 %1204
        %1206 = vrot.lane.b32.xlu0 %v587, 16
        %v1207 = vpop.permute.xlu0 %1206
        %v1211 = vsel %vm590, %v1201, 0
        %1213 = vmatprep.subr.mxu0 0.0
        %1214 = vmatpush1.msra.mxu0 %v1205
        %1215 = vmatprep.subr.mxu0 0.0
        %1216 = vmatpush1.msra.mxu0 %v1207
        %1217 = vmatprep.subr.mxu0 0.0
        %1218 = vmatpush1.msra.mxu0 0.0
        %1219 = vmatprep.subr.mxu0 0.0
        %1220 = vmatpush1.msra.mxu0 0.0
        %1221 = vmatprep.subr.mxu0 0.0
        %1222 = vmatpush1.msra.mxu0 0.0
        %1223 = vmatprep.subr.mxu0 0.0
        %1224 = vmatpush1.msra.mxu0 0.0
        %1225 = vmatprep.subr.mxu0 0.0
        %1226 = vmatpush1.msra.mxu0 0.0
        %1227 = vmatprep.subr.mxu0 0.0
        %1228 = vmatpush1.msra.mxu0 0.0
        %1229 = vmatprep.subr.mxu0 0.0
        %1230 = vmatpush1.msra.mxu0 0.0
        %1231 = vmatprep.subr.mxu0 0.0
        %1232 = vmatpush1.msra.mxu0 0.0
        %1233 = vmatprep.subr.mxu0 0.0
        %1234 = vmatpush1.msra.mxu0 0.0
        %1235 = vmatprep.subr.mxu0 0.0
        %1236 = vmatpush1.msra.mxu0 0.0
        %1237 = vmatprep.subr.mxu0 0.0
        %1238 = vmatpush1.msra.mxu0 0.0
        %1239 = vmatprep.subr.mxu0 0.0
        %1240 = vmatpush1.msra.mxu0 0.0
        %1241 = vmatprep.subr.mxu0 0.0
        %1242 = vmatpush1.msra.mxu0 0.0
        %1243 = vmatprep.subr.mxu0 0.0
        %1244 = vmatpush1.msra.mxu0 0.0
        %1245 = vmatprep.subr.mxu0 0.0
        %1246 = vmatpush1.msra.mxu0 0.0
        %1247 = vmatprep.subr.mxu0 0.0
        %1248 = vmatpush1.msra.mxu0 0.0
        %1249 = vmatprep.subr.mxu0 0.0
        %1250 = vmatpush1.msra.mxu0 0.0
        %1251 = vmatprep.subr.mxu0 0.0
        %1252 = vmatpush1.msra.mxu0 0.0
        %1253 = vmatprep.subr.mxu0 0.0
        %1254 = vmatpush1.msra.mxu0 0.0
        %1255 = vmatprep.subr.mxu0 0.0
        %1256 = vmatpush1.msra.mxu0 0.0
        %1257 = vmatprep.subr.mxu0 0.0
        %1258 = vmatpush1.msra.mxu0 0.0
        %1259 = vmatprep.subr.mxu0 0.0
        %1260 = vmatpush1.msra.mxu0 0.0
        %1261 = vmatprep.subr.mxu0 0.0
        %1262 = vmatpush1.msra.mxu0 0.0
        %1263 = vmatprep.subr.mxu0 0.0
        %1264 = vmatpush1.msra.mxu0 0.0
        %1265 = vmatprep.subr.mxu0 0.0
        %1266 = vmatpush1.msra.mxu0 0.0
        %1267 = vmatprep.subr.mxu0 0.0
        %1268 = vmatpush1.msra.mxu0 0.0
        %1269 = vmatprep.subr.mxu0 0.0
        %1270 = vmatpush1.msra.mxu0 0.0
        %1271 = vmatprep.subr.mxu0 0.0
        %1272 = vmatpush1.msra.mxu0 0.0
        %1273 = vmatprep.subr.mxu0 0.0
        %1274 = vmatpush1.msra.mxu0 0.0
        %1275 = vmatprep.subr.mxu0 0.0
        %1276 = vmatpush1.msra.mxu0 0.0
        %1277 = vmatprep.mubr.f32.mxu0 0.0
        %1278 = vmatmul.mubr.f32.gmra.mrb[0].mxu0 %v1211
        %v1279 = vpop.f32.mrb[0].mxu0
        %v1280 = vadd.f32 0.0, %v1279
        %v1281 = vpop.f32.mrb[0].mxu0
        %1282 = vdwg.mxu0
        %1284 = vrot.lane.b32.xlu0 %v932, 16
        %v1285 = vpop.permute.xlu0 %1284
        %1288 = vrot.lane.b32.xlu0 %v1106, 32
        %v1289 = vpop.permute.xlu0 %1288
        %1292 = vrot.lane.b32.xlu0 %v1280, 48
        %v1293 = vpop.permute.xlu0 %1292
        %v1295 = vsel %vm590, %v758, %v1285
        %v1296 = vsel %vm418, %v1295, %v1289
        %vm1297 = vcmask 392192
        %v1298 = vsel %vm1297, %v1296, %v1293
        %v1299 = vld [vmem:[%s7] sm:$0xff]
        %v1300 = vld [vmem:[%s7 + $0x8] sm:$0xff]
        %v1301 = vld [vmem:[%s7 + $0x10] sm:$0xff]
        %v1302 = vld [vmem:[%s7 + $0x18] sm:$0xff]
        %v1303 = vld [vmem:[%s7 + $0x20] sm:$0xff]
        %v1304 = vld [vmem:[%s7 + $0x28] sm:$0xff]
        %v1305 = vld [vmem:[%s7 + $0x30] sm:$0xff]
        %v1306 = vld [vmem:[%s7 + $0x38] sm:$0xff]
        %v1307 = vld [vmem:[%s8] sm:$0x1]
        %v1309 = vlaneseq
        %v1310 = vshrl.u32 %v1309, 7
        %v1311 = vsub.s32 0, %v1310
        %v1312 = vrot.slane %v1307, %v1311
        %v1315 = vsel %vm508, %v1298, 0
        %1317 = vmatprep.subr.mxu0 0.0
        %1318 = vmatpush1.msra.mxu0 %v1299
        %1319 = vmatprep.subr.mxu0 0.0
        %1320 = vmatpush1.msra.mxu0 %v1300
        %1321 = vmatprep.subr.mxu0 0.0
        %1322 = vmatpush1.msra.mxu0 %v1301
        %1323 = vmatprep.subr.mxu0 0.0
        %1324 = vmatpush1.msra.mxu0 %v1302
        %1325 = vmatprep.subr.mxu0 0.0
        %1326 = vmatpush1.msra.mxu0 %v1303
        %1327 = vmatprep.subr.mxu0 0.0
        %1328 = vmatpush1.msra.mxu0 %v1304
        %1329 = vmatprep.subr.mxu0 0.0
        %1330 = vmatpush1.msra.mxu0 %v1305
        %1331 = vmatprep.subr.mxu0 0.0
        %1332 = vmatpush1.msra.mxu0 %v1306
        %1333 = vmatprep.subr.mxu0 0.0
        %1334 = vmatpush1.msra.mxu0 0.0
        %1335 = vmatprep.subr.mxu0 0.0
        %1336 = vmatpush1.msra.mxu0 0.0
        %1337 = vmatprep.subr.mxu0 0.0
        %1338 = vmatpush1.msra.mxu0 0.0
        %1339 = vmatprep.subr.mxu0 0.0
        %1340 = vmatpush1.msra.mxu0 0.0
        %1341 = vmatprep.subr.mxu0 0.0
        %1342 = vmatpush1.msra.mxu0 0.0
        %1343 = vmatprep.subr.mxu0 0.0
        %1344 = vmatpush1.msra.mxu0 0.0
        %1345 = vmatprep.subr.mxu0 0.0
        %1346 = vmatpush1.msra.mxu0 0.0
        %1347 = vmatprep.subr.mxu0 0.0
        %1348 = vmatpush1.msra.mxu0 0.0
        %1349 = vmatprep.subr.mxu0 0.0
        %1350 = vmatpush1.msra.mxu0 0.0
        %1351 = vmatprep.subr.mxu0 0.0
        %1352 = vmatpush1.msra.mxu0 0.0
        %1353 = vmatprep.subr.mxu0 0.0
        %1354 = vmatpush1.msra.mxu0 0.0
        %1355 = vmatprep.subr.mxu0 0.0
        %1356 = vmatpush1.msra.mxu0 0.0
        %1357 = vmatprep.subr.mxu0 0.0
        %1358 = vmatpush1.msra.mxu0 0.0
        %1359 = vmatprep.subr.mxu0 0.0
        %1360 = vmatpush1.msra.mxu0 0.0
        %1361 = vmatprep.subr.mxu0 0.0
        %1362 = vmatpush1.msra.mxu0 0.0
        %1363 = vmatprep.subr.mxu0 0.0
        %1364 = vmatpush1.msra.mxu0 0.0
        %1365 = vmatprep.subr.mxu0 0.0
        %1366 = vmatpush1.msra.mxu0 0.0
        %1367 = vmatprep.subr.mxu0 0.0
        %1368 = vmatpush1.msra.mxu0 0.0
        %1369 = vmatprep.subr.mxu0 0.0
        %1370 = vmatpush1.msra.mxu0 0.0
        %1371 = vmatprep.subr.mxu0 0.0
        %1372 = vmatpush1.msra.mxu0 0.0
        %1373 = vmatprep.subr.mxu0 0.0
        %1374 = vmatpush1.msra.mxu0 0.0
        %1375 = vmatprep.subr.mxu0 0.0
        %1376 = vmatpush1.msra.mxu0 0.0
        %1377 = vmatprep.subr.mxu0 0.0
        %1378 = vmatpush1.msra.mxu0 0.0
        %1379 = vmatprep.subr.mxu0 0.0
        %1380 = vmatpush1.msra.mxu0 0.0
        %1381 = vmatprep.mubr.f32.mxu0 0.0
        %1382 = vmatmul.mubr.f32.gmra.mrb[0].mxu0 %v1315
        %v1383 = vpop.f32.mrb[0].mxu0
        %v1384 = vadd.f32 %v1312, %v1383
        %v1385 = vpop.f32.mrb[0].mxu0
        %1386 = vdwg.mxu0
        %v1387 = vadd.f32 %v1384, %v403
        %v1388 = vsel %vm418, %v1387, 0.0
        %1389 = vadd.xlane.f32.xlu0 %v1388
        %v1390 = vpop.xlane.xlu0 %1389
        %v1391 = vrcp.pop 32.0
        %v1392 = vmul.f32 %v1390, %v1391
        %v1393 = vsub.f32 %v1387, %v1392
        %v1394 = vmul.f32 %v1393, %v1393
        %v1395 = vsel %vm418, %v1394, 0.0
        %1396 = vadd.xlane.f32.xlu0 %v1395
        %v1397 = vpop.xlane.xlu0 %1396
        %v1398 = vmul.f32 %v1397, %v1391
        %v1399 = vadd.f32 %v1398, 1e-05
        %v1400 = vrsqrt.pop %v1399
        %v1401 = vmul.f32 %v1393, %v1400
        %1402 = vst.msk [vmem:[%s402] sm:$0xff] %vm418, %v1401
        %p1403 = scmp.lt.s32.totalorder %s25, 1
        %s1404 = scalar_select %p1403, %s25, 1
        %s1405 = smul.addr %s1404, 8
        %s1406 = scalar_lea.vmem %s9, %s1405
        %s1407 = sand.u32 %s263, 1
        %s1408 = scalar_lea.sflag [#allocation3], %s1407
        %s1409 = sand.u32 %s263, 1
        %s1410 = smul.addr %s1409, 32
        %s1411 = scalar_lea.vmem [#allocation2], %s1410
        // Predicated region
        $region57: #{decoder_forward.8} parent=55 // pred_check
          %p1412 = pneg %p247
        $region58: #{decoder_forward.8} parent=55 // pred_check_branch
          %1414 = sbr.rel (%p1412) target = $region60
        $region59: #{decoder_forward.8} parent=55 // pred_region
          _
        $region60: #{decoder_forward.8} parent=55 // pred_fallthru
          _
        // Predicated region
        $region61: #{decoder_forward.8} parent=55 // pred_check
          %p1415 = pneg %p273
        $region62: #{decoder_forward.8} parent=55 // pred_check_branch
          %1417 = sbr.rel (%p1415) target = $region64
        $region63: #{decoder_forward.8} parent=55 // pred_region
          %s1419 = ssub.s32 512, 512
          %1420 = vsyncadd %s1408, %s1419
          %s1421 = smul.addr %s25, 4
          %s1422 = smul.addr %s1421, 128
          %s1423 = scalar_lea.hbm %s10, %s1422
          %s1424 = sshll.u32 %s1411, 4
          %s1425 = int_to_ptr.vmem [resolvable:$true] %s1424
          %1430 = dma.vmem_to_hbm [thread:$0]  %s1425, 512, %s1423, %s1408, 128, 128, 8
        $region64: #{decoder_forward.8} parent=55 // pred_fallthru
          _
      $region56: #{decoder_forward.8} parent=5 // pred_fallthru
        _
      %p1431 = scmp.le.s32.totalorder 2, %s20
      // Predicated region
      $region65: #{decoder_forward.8} parent=5 // pred_check
        %p1432 = pneg %p1431
      $region66: #{decoder_forward.8} parent=5 // pred_check_branch
        %1434 = sbr.rel (%p1432) target = $region68
      $region67: #{decoder_forward.8} parent=5 // pred_region
        %s1435 = ssub.s32 %s20, 2
        // Predicated region
        $region69: #{decoder_forward.8} parent=67 // pred_check
          %p1436 = pneg %p253
        $region70: #{decoder_forward.8} parent=67 // pred_check_branch
          %1438 = sbr.rel (%p1436) target = $region72
        $region71: #{decoder_forward.8} parent=67 // pred_region
          %p1439 = scmp.lt.s32.totalorder %s26, 1
          %s1440 = scalar_select %p1439, %s26, 1
          %s1441 = smul.addr %s1440, 8
          %s1442 = scalar_lea.vmem %s9, %s1441
        $region72: #{decoder_forward.8} parent=67 // pred_fallthru
          _
        // Predicated region
        $region73: #{decoder_forward.8} parent=67 // pred_check
          %p1443 = pneg %p279
        $region74: #{decoder_forward.8} parent=67 // pred_check_branch
          %1445 = sbr.rel (%p1443) target = $region76
        $region75: #{decoder_forward.8} parent=67 // pred_region
          %s1446 = sand.u32 %s264, 1
          %s1447 = scalar_lea.sflag [#allocation3], %s1446
          %s1448 = sand.u32 %s264, 1
          %s1449 = smul.addr %s1448, 32
          %s1450 = scalar_lea.vmem [#allocation2], %s1449
          %1451 = dma.done %s1447, 512
        $region76: #{decoder_forward.8} parent=67 // pred_fallthru
          _
      $region68: #{decoder_forward.8} parent=5 // pred_fallthru
        _
    $region6: #{decoder_forward.8} parent=1 // loop_footer
      %s24 = sadd.s32 1, %s20
    $region7: #{decoder_forward.8} parent=1 // loop_footer_branch
      %19 = sbr.rel target = $region3
    $region8: #{decoder_forward.8} parent=1 // loop_exit
      _
    %1452 = vsyncpa [#allocation3], 1
    %s1453 = scalar_lea.sflag [#allocation3], 1
    %1454 = vsyncpa %s1453, 1

// kernel: decoder_forward.7
$region0: #{decoder_forward.7}
  #allocation0 [shape = 'u32[]', space=smem, size = 0x4, offset = 0x4, fixed_abs, tag = 'smem constant byte address 0x4 - core index']
  #allocation1 [shape = 'u32[144,128]{1,0:T(1,128)}', space=vmem, size = 0x12000, scoped, tag = 'internal scratch']
  %s0 = inlined_call_operand.vmem [shape: f32[2,8,32], index: 0, kind: input, shape index: {}, may-alias: {0,1}]
  %s1 = inlined_call_operand.vmem [shape: f32[2,8,32], index: 1, kind: input, shape index: {}, may-alias: {0,1}]
  %s2 = inlined_call_operand.vmem [shape: f32[2,8,8], index: 2, kind: input, shape index: {}]
  %s3 = inlined_call_operand.vmem [shape: f32[32,64], index: 3, kind: input, shape index: {}]
  %s4 = inlined_call_operand.vmem [shape: f32[1,64], index: 4, kind: input, shape index: {}]
  %s5 = inlined_call_operand.vmem [shape: f32[32,128], index: 5, kind: input, shape index: {}]
  %s6 = inlined_call_operand.vmem [shape: f32[1,128], index: 6, kind: input, shape index: {}]
  %s7 = inlined_call_operand.vmem [shape: f32[64,32], index: 7, kind: input, shape index: {}]
  %s8 = inlined_call_operand.vmem [shape: f32[1,32], index: 8, kind: input, shape index: {}]
  %s9 = inlined_call_operand.vmem [shape: f32[2,8,32], index: 9, kind: output, shape index: {0}]
  %s10 = inlined_call_operand.hbm [shape: f32[2,4,8,8], index: 10, kind: output, shape index: {1}]
  %11 = xla_tuple %s9, %s10
  %s12 = sld [smem:[#allocation0]]
  $region77: #{decoder_forward.7} parent=0
    _
  %s14 = ssub.s32 1, %s12
  %s15 = scalar_select 0, %s14, %s12
  $region1: #{decoder_forward.7} parent=0
    #allocation2 [shape = 'u8[32768]{0}', space=vmem, size = 0x8000, scoped, tag = 'output window, operand 1']
    #allocation3 [shape = 's32[2]{0}', space=sflag, size = 0x8, scoped, tag = 'scoped memory for decoder_forward.7']
    %16 = vsyncpa [#allocation3], 0
    %s17 = scalar_lea.sflag [#allocation3], 1
    %18 = vsyncpa %s17, 0
    loop: start=0, step=1, limit=4
    $region2: #{decoder_forward.7} parent=1 // loop_pre_header
      _
    $region3: #{decoder_forward.7} parent=1 // loop_header
      %s20 = sphi 0, %s24
      %p21 = scmp.ge.s32.totalorder %s20, 4
      %s30 = sphi 0, %s32
      %s33 = sphi 0, %s30
      %s34 = sphi 0, %s33
      %s50 = sphi 0, %s34
      %s56 = sphi 0, %s58
      %s59 = sphi 0, %s56
      %s60 = sphi 0, %s59
      %s76 = sphi 0, %s60
      %s82 = sphi 0, %s84
      %s85 = sphi 0, %s82
      %s86 = sphi 0, %s85
      %s102 = sphi 0, %s86
      %s106 = sphi 0, %s106
      %s108 = sphi 0, %s106
      %s109 = sphi 0, %s108
      %s123 = sphi 0, %s109
      %s127 = sphi 0, %s127
      %s129 = sphi 0, %s127
      %s130 = sphi 0, %s129
      %s144 = sphi 0, %s130
      %s148 = sphi 0, %s148
      %s150 = sphi 0, %s148
      %s151 = sphi 0, %s150
      %s165 = sphi 0, %s151
      %s169 = sphi 0, %s169
      %s171 = sphi 0, %s169
      %s172 = sphi 0, %s171
      %s186 = sphi 0, %s172
      %s190 = sphi 0, %s190
      %s192 = sphi 0, %s190
      %s193 = sphi 0, %s192
      %s207 = sphi 0, %s193
      %s211 = sphi 0, %s211
      %s213 = sphi 0, %s211
      %s214 = sphi 0, %s213
      %s228 = sphi 0, %s214
      %s234 = sphi 0, %s236
      %s237 = sphi 0, %s234
      %s238 = sphi 0, %s237
      %s254 = sphi 0, %s238
      %s260 = sphi 0, %s262
      %s263 = sphi 0, %s260
      %s264 = sphi 0, %s263
      %s280 = sphi 0, %s264
    $region4: #{decoder_forward.7} parent=1 // loop_header_branch
      %23 = sbr.rel (%p21) target = $region8
    $region5: #{decoder_forward.7} parent=1 // loop_body
      %s25 = ssub.s32 %s20, 1
      %s26 = ssub.s32 %s20, 2
      %s27 = sadd.s32 %s20, 1
      %s28 = ssub.s32 %s20, %s27
      %p29 = scmp.eq.s32.totalorder %s28, 0
      %s31 = sadd.s32 %s30, 1
      %s32 = scalar_select %p29, %s30, %s31
      %p35 = pneg %p29
      %p36 = scmp.eq.s32.totalorder %s20, 1
      %p37 = por %p35, %p36
      %p38 = scmp.ne.s32.totalorder %s30, %s33
      %p39 = scmp.eq.s32.totalorder %s20, 0
      %p40 = por %p38, %p39
      %p41 = scmp.ne.s32.totalorder %s30, %s33
      %p42 = scmp.eq.s32.totalorder %s25, 1
      %p43 = por %p41, %p42
      %p44 = scmp.ne.s32.totalorder %s33, %s34
      %p45 = scmp.eq.s32.totalorder %s25, 0
      %p46 = por %p44, %p45
      %p47 = scmp.ne.s32.totalorder %s33, %s34
      %p48 = scmp.eq.s32.totalorder %s26, 1
      %p49 = por %p47, %p48
      %p51 = scmp.ne.s32.totalorder %s34, %s50
      %p52 = scmp.eq.s32.totalorder %s26, 0
      %p53 = por %p51, %p52
      %s54 = ssub.s32 %s20, %s27
      %p55 = scmp.eq.s32.totalorder %s54, 0
      %s57 = sadd.s32 %s56, 1
      %s58 = scalar_select %p55, %s56, %s57
      %p61 = pneg %p55
      %p62 = scmp.eq.s32.totalorder %s20, 1
      %p63 = por %p61, %p62
      %p64 = scmp.ne.s32.totalorder %s56, %s59
      %p65 = scmp.eq.s32.totalorder %s20, 0
      %p66 = por %p64, %p65
      %p67 = scmp.ne.s32.totalorder %s56, %s59
      %p68 = scmp.eq.s32.totalorder %s25, 1
      %p69 = por %p67, %p68
      %p70 = scmp.ne.s32.totalorder %s59, %s60
      %p71 = scmp.eq.s32.totalorder %s25, 0
      %p72 = por %p70, %p71
      %p73 = scmp.ne.s32.totalorder %s59, %s60
      %p74 = scmp.eq.s32.totalorder %s26, 1
      %p75 = por %p73, %p74
      %p77 = scmp.ne.s32.totalorder %s60, %s76
      %p78 = scmp.eq.s32.totalorder %s26, 0
      %p79 = por %p77, %p78
      %s80 = ssub.s32 %s20, %s27
      %p81 = scmp.eq.s32.totalorder %s80, 0
      %s83 = sadd.s32 %s82, 1
      %s84 = scalar_select %p81, %s82, %s83
      %p87 = pneg %p81
      %p88 = scmp.eq.s32.totalorder %s20, 1
      %p89 = por %p87, %p88
      %p90 = scmp.ne.s32.totalorder %s82, %s85
      %p91 = scmp.eq.s32.totalorder %s20, 0
      %p92 = por %p90, %p91
      %p93 = scmp.ne.s32.totalorder %s82, %s85
      %p94 = scmp.eq.s32.totalorder %s25, 1
      %p95 = por %p93, %p94
      %p96 = scmp.ne.s32.totalorder %s85, %s86
      %p97 = scmp.eq.s32.totalorder %s25, 0
      %p98 = por %p96, %p97
      %p99 = scmp.ne.s32.totalorder %s85, %s86
      %p100 = scmp.eq.s32.totalorder %s26, 1
      %p101 = por %p99, %p100
      %p103 = scmp.ne.s32.totalorder %s86, %s102
      %p104 = scmp.eq.s32.totalorder %s26, 0
      %p105 = por %p103, %p104
      %s107 = sadd.s32 %s106, 1
      %p110 = scmp.eq.s32.totalorder %s20, 1
      %p111 = scmp.ne.s32.totalorder %s106, %s108
      %p112 = scmp.eq.s32.totalorder %s20, 0
      %p113 = por %p111, %p112
      %p114 = scmp.ne.s32.totalorder %s106, %s108
      %p115 = scmp.eq.s32.totalorder %s25, 1
      %p116 = por %p114, %p115
      %p117 = scmp.ne.s32.totalorder %s108, %s109
      %p118 = scmp.eq.s32.totalorder %s25, 0
      %p119 = por %p117, %p118
      %p120 = scmp.ne.s32.totalorder %s108, %s109
      %p121 = scmp.eq.s32.totalorder %s26, 1
      %p122 = por %p120, %p121
      %p124 = scmp.ne.s32.totalorder %s109, %s123
      %p125 = scmp.eq.s32.totalorder %s26, 0
      %p126 = por %p124, %p125
      %s128 = sadd.s32 %s127, 1
      %p131 = scmp.eq.s32.totalorder %s20, 1
      %p132 = scmp.ne.s32.totalorder %s127, %s129
      %p133 = scmp.eq.s32.totalorder %s20, 0
      %p134 = por %p132, %p133
      %p135 = scmp.ne.s32.totalorder %s127, %s129
      %p136 = scmp.eq.s32.totalorder %s25, 1
      %p137 = por %p135, %p136
      %p138 = scmp.ne.s32.totalorder %s129, %s130
      %p139 = scmp.eq.s32.totalorder %s25, 0
      %p140 = por %p138, %p139
      %p141 = scmp.ne.s32.totalorder %s129, %s130
      %p142 = scmp.eq.s32.totalorder %s26, 1
      %p143 = por %p141, %p142
      %p145 = scmp.ne.s32.totalorder %s130, %s144
      %p146 = scmp.eq.s32.totalorder %s26, 0
      %p147 = por %p145, %p146
      %s149 = sadd.s32 %s148, 1
      %p152 = scmp.eq.s32.totalorder %s20, 1
      %p153 = scmp.ne.s32.totalorder %s148, %s150
      %p154 = scmp.eq.s32.totalorder %s20, 0
      %p155 = por %p153, %p154
      %p156 = scmp.ne.s32.totalorder %s148, %s150
      %p157 = scmp.eq.s32.totalorder %s25, 1
      %p158 = por %p156, %p157
      %p159 = scmp.ne.s32.totalorder %s150, %s151
      %p160 = scmp.eq.s32.totalorder %s25, 0
      %p161 = por %p159, %p160
      %p162 = scmp.ne.s32.totalorder %s150, %s151
      %p163 = scmp.eq.s32.totalorder %s26, 1
      %p164 = por %p162, %p163
      %p166 = scmp.ne.s32.totalorder %s151, %s165
      %p167 = scmp.eq.s32.totalorder %s26, 0
      %p168 = por %p166, %p167
      %s170 = sadd.s32 %s169, 1
      %p173 = scmp.eq.s32.totalorder %s20, 1
      %p174 = scmp.ne.s32.totalorder %s169, %s171
      %p175 = scmp.eq.s32.totalorder %s20, 0
      %p176 = por %p174, %p175
      %p177 = scmp.ne.s32.totalorder %s169, %s171
      %p178 = scmp.eq.s32.totalorder %s25, 1
      %p179 = por %p177, %p178
      %p180 = scmp.ne.s32.totalorder %s171, %s172
      %p181 = scmp.eq.s32.totalorder %s25, 0
      %p182 = por %p180, %p181
      %p183 = scmp.ne.s32.totalorder %s171, %s172
      %p184 = scmp.eq.s32.totalorder %s26, 1
      %p185 = por %p183, %p184
      %p187 = scmp.ne.s32.totalorder %s172, %s186
      %p188 = scmp.eq.s32.totalorder %s26, 0
      %p189 = por %p187, %p188
      %s191 = sadd.s32 %s190, 1
      %p194 = scmp.eq.s32.totalorder %s20, 1
      %p195 = scmp.ne.s32.totalorder %s190, %s192
      %p196 = scmp.eq.s32.totalorder %s20, 0
      %p197 = por %p195, %p196
      %p198 = scmp.ne.s32.totalorder %s190, %s192
      %p199 = scmp.eq.s32.totalorder %s25, 1
      %p200 = por %p198, %p199
      %p201 = scmp.ne.s32.totalorder %s192, %s193
      %p202 = scmp.eq.s32.totalorder %s25, 0
      %p203 = por %p201, %p202
      %p204 = scmp.ne.s32.totalorder %s192, %s193
      %p205 = scmp.eq.s32.totalorder %s26, 1
      %p206 = por %p204, %p205
      %p208 = scmp.ne.s32.totalorder %s193, %s207
      %p209 = scmp.eq.s32.totalorder %s26, 0
      %p210 = por %p208, %p209
      %s212 = sadd.s32 %s211, 1
      %p215 = scmp.eq.s32.totalorder %s20, 1
      %p216 = scmp.ne.s32.totalorder %s211, %s213
      %p217 = scmp.eq.s32.totalorder %s20, 0
      %p218 = por %p216, %p217
      %p219 = scmp.ne.s32.totalorder %s211, %s213
      %p220 = scmp.eq.s32.totalorder %s25, 1
      %p221 = por %p219, %p220
      %p222 = scmp.ne.s32.totalorder %s213, %s214
      %p223 = scmp.eq.s32.totalorder %s25, 0
      %p224 = por %p222, %p223
      %p225 = scmp.ne.s32.totalorder %s213, %s214
      %p226 = scmp.eq.s32.totalorder %s26, 1
      %p227 = por %p225, %p226
      %p229 = scmp.ne.s32.totalorder %s214, %s228
      %p230 = scmp.eq.s32.totalorder %s26, 0
      %p231 = por %p229, %p230
      %s232 = ssub.s32 %s20, %s27
      %p233 = scmp.eq.s32.totalorder %s232, 0
      %s235 = sadd.s32 %s234, 1
      %s236 = scalar_select %p233, %s234, %s235
      %p239 = pneg %p233
      %p240 = scmp.eq.s32.totalorder %s20, 1
      %p241 = por %p239, %p240
      %p242 = scmp.ne.s32.totalorder %s234, %s237
      %p243 = scmp.eq.s32.totalorder %s20, 0
      %p244 = por %p242, %p243
      %p245 = scmp.ne.s32.totalorder %s234, %s237
      %p246 = scmp.eq.s32.totalorder %s25, 1
      %p247 = por %p245, %p246
      %p248 = scmp.ne.s32.totalorder %s237, %s238
      %p249 = scmp.eq.s32.totalorder %s25, 0
      %p250 = por %p248, %p249
      %p251 = scmp.ne.s32.totalorder %s237, %s238
      %p252 = scmp.eq.s32.totalorder %s26, 1
      %p253 = por %p251, %p252
      %p255 = scmp.ne.s32.totalorder %s238, %s254
      %p256 = scmp.eq.s32.totalorder %s26, 0
      %p257 = por %p255, %p256
      %s258 = ssub.s32 %s20, %s27
      %p259 = scmp.eq.s32.totalorder %s258, 0
      %s261 = sadd.s32 %s260, 1
      %s262 = scalar_select %p259, %s260, %s261
      %p265 = pneg %p259
      %p266 = scmp.eq.s32.totalorder %s20, 1
      %p267 = por %p265, %p266
      %p268 = scmp.ne.s32.totalorder %s260, %s263
      %p269 = scmp.eq.s32.totalorder %s20, 0
      %p270 = por %p268, %p269
      %p271 = scmp.ne.s32.totalorder %s260, %s263
      %p272 = scmp.eq.s32.totalorder %s25, 1
      %p273 = por %p271, %p272
      %p274 = scmp.ne.s32.totalorder %s263, %s264
      %p275 = scmp.eq.s32.totalorder %s25, 0
      %p276 = por %p274, %p275
      %p277 = scmp.ne.s32.totalorder %s263, %s264
      %p278 = scmp.eq.s32.totalorder %s26, 1
      %p279 = por %p277, %p278
      %p281 = scmp.ne.s32.totalorder %s264, %s280
      %p282 = scmp.eq.s32.totalorder %s26, 0
      %p283 = por %p281, %p282
      %p284 = scmp.le.s32.totalorder 1, %s20
      %p285 = scmp.lt.s32.totalorder %s20, 3
      %p286 = pnand %p284, %p285
      %p287 = pneg %p286
      // Predicated region
      $region9: #{decoder_forward.7} parent=5 // pred_check
        _
      $region10: #{decoder_forward.7} parent=5 // pred_check_branch
        %289 = sbr.rel (%p286) target = $region12
      $region11: #{decoder_forward.7} parent=5 // pred_region
        %s290 = ssub.s32 %s20, 1
        // Predicated region
        $region13: #{decoder_forward.7} parent=11 // pred_check
          %p291 = pneg %p119
        $region14: #{decoder_forward.7} parent=11 // pred_check_branch
          %293 = sbr.rel (%p291) target = $region16
        $region15: #{decoder_forward.7} parent=11 // pred_region
          _
        $region16: #{decoder_forward.7} parent=11 // pred_fallthru
          _
        // Predicated region
        $region17: #{decoder_forward.7} parent=11 // pred_check
          %p294 = pneg %p140
        $region18: #{decoder_forward.7} parent=11 // pred_check_branch
          %296 = sbr.rel (%p294) target = $region20
        $region19: #{decoder_forward.7} parent=11 // pred_region
          _
        $region20: #{decoder_forward.7} parent=11 // pred_fallthru
          _
        // Predicated region
        $region21: #{decoder_forward.7} parent=11 // pred_check
          %p297 = pneg %p161
        $region22: #{decoder_forward.7} parent=11 // pred_check_branch
          %299 = sbr.rel (%p297) target = $region24
        $region23: #{decoder_forward.7} parent=11 // pred_region
          _
        $region24: #{decoder_forward.7} parent=11 // pred_fallthru
          _
        // Predicated region
        $region25: #{decoder_forward.7} parent=11 // pred_check
          %p300 = pneg %p182
        $region26: #{decoder_forward.7} parent=11 // pred_check_branch
          %302 = sbr.rel (%p300) target = $region28
        $region27: #{decoder_forward.7} parent=11 // pred_region
          _
        $region28: #{decoder_forward.7} parent=11 // pred_fallthru
          _
        // Predicated region
        $region29: #{decoder_forward.7} parent=11 // pred_check
          %p303 = pneg %p203
        $region30: #{decoder_forward.7} parent=11 // pred_check_branch
          %305 = sbr.rel (%p303) target = $region32
        $region31: #{decoder_forward.7} parent=11 // pred_region
          _
        $region32: #{decoder_forward.7} parent=11 // pred_fallthru
          _
        // Predicated region
        $region33: #{decoder_forward.7} parent=11 // pred_check
          %p306 = pneg %p224
        $region34: #{decoder_forward.7} parent=11 // pred_check_branch
          %308 = sbr.rel (%p306) target = $region36
        $region35: #{decoder_forward.7} parent=11 // pred_region
          _
        $region36: #{decoder_forward.7} parent=11 // pred_fallthru
          _
      $region12: #{decoder_forward.7} parent=5 // pred_fallthru
        _
      %p309 = scmp.lt.s32.totalorder %s20, 2
      // Predicated region
      $region37: #{decoder_forward.7} parent=5 // pred_check
        %p310 = pneg %p309
      $region38: #{decoder_forward.7} parent=5 // pred_check_branch
        %312 = sbr.rel (%p310) target = $region40
      $region39: #{decoder_forward.7} parent=5 // pred_region
        // Predicated region
        $region41: #{decoder_forward.7} parent=39 // pred_check
          %p313 = pneg %p40
        $region42: #{decoder_forward.7} parent=39 // pred_check_branch
          %315 = sbr.rel (%p313) target = $region44
        $region43: #{decoder_forward.7} parent=39 // pred_region
          %p316 = scmp.lt.s32.totalorder %s20, 1
          %s317 = scalar_select %p316, %s20, 1
          %s318 = smul.addr %s317, 8
          %s319 = scalar_lea.vmem %s0, %s318
        $region44: #{decoder_forward.7} parent=39 // pred_fallthru
          _
        // Predicated region
        $region45: #{decoder_forward.7} parent=39 // pred_check
          %p320 = pneg %p66
        $region46: #{decoder_forward.7} parent=39 // pred_check_branch
          %322 = sbr.rel (%p320) target = $region48
        $region47: #{decoder_forward.7} parent=39 // pred_region
          %p323 = scmp.lt.s32.totalorder %s20, 1
          %s324 = scalar_select %p323, %s20, 1
          %s325 = smul.addr %s324, 8
          %s326 = scalar_lea.vmem %s1, %s325
        $region48: #{decoder_forward.7} parent=39 // pred_fallthru
          _
        // Predicated region
        $region49: #{decoder_forward.7} parent=39 // pred_check
          %p327 = pneg %p92
        $region50: #{decoder_forward.7} parent=39 // pred_check_branch
          %329 = sbr.rel (%p327) target = $region52
        $region51: #{decoder_forward.7} parent=39 // pred_region
          %p330 = scmp.lt.s32.totalorder %s20, 1
          %s331 = scalar_select %p330, %s20, 1
          %s332 = smul.addr %s331, 8
          %s333 = scalar_lea.vmem %s2, %s332
        $region52: #{decoder_forward.7} parent=39 // pred_fallthru
          _
      $region40: #{decoder_forward.7} parent=5 // pred_fallthru
        _
      %p334 = scmp.le.s32.totalorder 1, %s20
      %p335 = scmp.lt.s32.totalorder %s20, 3
      %p336 = pnand %p334, %p335
      %p337 = pneg %p336
      // Predicated region
      $region53: #{decoder_forward.7} parent=5 // pred_check
        _
      $region54: #{decoder_forward.7} parent=5 // pred_check_branch
        %339 = sbr.rel (%p336) target = $region56
      $region55: #{decoder_forward.7} parent=5 // pred_region
        %s340 = ssub.s32 %s20, 1
        %p341 = scmp.lt.s32.totalorder %s25, 1
        %s342 = scalar_select %p341, %s25, 1
        %s343 = smul.addr %s342, 8
        %s344 = scalar_lea.vmem %s0, %s343
        %p345 = pneg %p46
        %p346 = pneg %p43
        %p347 = scmp.lt.s32.totalorder %s25, 1
        %s348 = scalar_select %p347, %s25, 1
        %s349 = smul.addr %s348, 8
        %s350 = scalar_lea.vmem %s1, %s349
        %p351 = pneg %p72
        %p352 = pneg %p69
        %p353 = scmp.lt.s32.totalorder %s25, 1
        %s354 = scalar_select %p353, %s25, 1
        %s355 = smul.addr %s354, 8
        %s356 = scalar_lea.vmem %s2, %s355
        %p357 = pneg %p98
        %p358 = pneg %p95
        %p359 = pneg %p119
        %p360 = pneg %p116
        %p361 = pneg %p140
        %p362 = pneg %p137
        %p363 = pneg %p161
        %p364 = pneg %p158
        %p365 = pneg %p182
        %p366 = pneg %p179
        %p367 = pneg %p203
        %p368 = pneg %p200
        %p369 = pneg %p224
        %p370 = pneg %p221
        %p371 = pneg %p250
        %p372 = pneg %p247
        %p373 = scmp.lt.s32.totalorder %s25, 1
        %s374 = scalar_select %p373, %s25, 1
        %s375 = smul.addr %s374, 8
        %s376 = scalar_lea.vmem %s9, %s375
        %p377 = pneg %p276
        %p378 = pneg %p273
        %s379 = sand.u32 %s263, 1
        %s380 = scalar_lea.sflag [#allocation3], %s379
        %s381 = sand.u32 %s263, 1
        %s382 = smul.addr %s381, 32
        %s383 = scalar_lea.vmem [#allocation2], %s382
        %p384 = scmp.lt.s32.totalorder %s25, 1
        %s385 = scalar_select %p384, %s25, 1
        %s386 = smul.addr %s385, 8
        %s387 = scalar_lea.vmem %s0, %s386
        %p388 = scmp.lt.s32.totalorder %s25, 1
        %s389 = scalar_select %p388, %s25, 1
        %s390 = smul.addr %s389, 8
        %s391 = scalar_lea.vmem %s1, %s390
        %p392 = scmp.lt.s32.totalorder %s25, 1
        %s393 = scalar_select %p392, %s25, 1
        %s394 = smul.addr %s393, 8
        %s395 = scalar_lea.vmem %s2, %s394
        %p396 = scmp.lt.s32.totalorder %s25, 1
        %s397 = scalar_select %p396, %s25, 1
        %s398 = smul.addr %s397, 8
        %s399 = scalar_lea.vmem %s9, %s398
        %v400 = vld [vmem:[%s387] sm:$0xff]
        %v401 = vld [vmem:[%s391] sm:$0xff]
        %v402 = vld [vmem:[%s395] sm:$0xff]
        %v403 = vld [vmem:[%s3] sm:$0xff]
        %v404 = vld [vmem:[%s3 + $0x8] sm:$0xff]
        %v405 = vld [vmem:[%s3 + $0x10] sm:$0xff]
        %v406 = vld [vmem:[%s3 + $0x18] sm:$0xff]
        %v407 = vld [vmem:[%s4] sm:$0x1]
        %v409 = vlaneseq
        %v410 = vshrl.u32 %v409, 7
        %v411 = vsub.s32 0, %v410
        %v412 = vrot.slane %v407, %v411
        %vm414 = vcmask 261120
        %v416 = vsel %vm414, %v400, 0
        %418 = vmatprep.subr.mxu0 0.0
        %419 = vmatpush1.msra.mxu0 %v403
        %420 = vmatprep.subr.mxu0 0.0
        %421 = vmatpush1.msra.mxu0 %v404
        %422 = vmatprep.subr.mxu0 0.0
        %423 = vmatpush1.msra.mxu0 %v405
        %424 = vmatprep.subr.mxu0 0.0
        %425 = vmatpush1.msra.mxu0 %v406
        %426 = vmatprep.subr.mxu0 0.0
        %427 = vmatpush1.msra.mxu0 0.0
        %428 = vmatprep.subr.mxu0 0.0
        %429 = vmatpush1.msra.mxu0 0.0
        %430 = vmatprep.subr.mxu0 0.0
        %431 = vmatpush1.msra.mxu0 0.0
        %432 = vmatprep.subr.mxu0 0.0
        %433 = vmatpush1.msra.mxu0 0.0
        %434 = vmatprep.subr.mxu0 0.0
        %435 = vmatpush1.msra.mxu0 0.0
        %436 = vmatprep.subr.mxu0 0.0
        %437 = vmatpush1.msra.mxu0 0.0
        %438 = vmatprep.subr.mxu0 0.0
        %439 = vmatpush1.msra.mxu0 0.0
        %440 = vmatprep.subr.mxu0 0.0
        %441 = vmatpush1.msra.mxu0 0.0
        %442 = vmatprep.subr.mxu0 0.0
        %443 = vmatpush1.msra.mxu0 0.0
        %444 = vmatprep.subr.mxu0 0.0
        %445 = vmatpush1.msra.mxu0 0.0
        %446 = vmatprep.subr.mxu0 0.0
        %447 = vmatpush1.msra.mxu0 0.0
        %448 = vmatprep.subr.mxu0 0.0
        %449 = vmatpush1.msra.mxu0 0.0
        %450 = vmatprep.subr.mxu0 0.0
        %451 = vmatpush1.msra.mxu0 0.0
        %452 = vmatprep.subr.mxu0 0.0
        %453 = vmatpush1.msra.mxu0 0.0
        %454 = vmatprep.subr.mxu0 0.0
        %455 = vmatpush1.msra.mxu0 0.0
        %456 = vmatprep.subr.mxu0 0.0
        %457 = vmatpush1.msra.mxu0 0.0
        %458 = vmatprep.subr.mxu0 0.0
        %459 = vmatpush1.msra.mxu0 0.0
        %460 = vmatprep.subr.mxu0 0.0
        %461 = vmatpush1.msra.mxu0 0.0
        %462 = vmatprep.subr.mxu0 0.0
        %463 = vmatpush1.msra.mxu0 0.0
        %464 = vmatprep.subr.mxu0 0.0
        %465 = vmatpush1.msra.mxu0 0.0
        %466 = vmatprep.subr.mxu0 0.0
        %467 = vmatpush1.msra.mxu0 0.0
        %468 = vmatprep.subr.mxu0 0.0
        %469 = vmatpush1.msra.mxu0 0.0
        %470 = vmatprep.subr.mxu0 0.0
        %471 = vmatpush1.msra.mxu0 0.0
        %472 = vmatprep.subr.mxu0 0.0
        %473 = vmatpush1.msra.mxu0 0.0
        %474 = vmatprep.subr.mxu0 0.0
        %475 = vmatpush1.msra.mxu0 0.0
        %476 = vmatprep.subr.mxu0 0.0
        %477 = vmatpush1.msra.mxu0 0.0
        %478 = vmatprep.subr.mxu0 0.0
        %479 = vmatpush1.msra.mxu0 0.0
        %480 = vmatprep.subr.mxu0 0.0
        %481 = vmatpush1.msra.mxu0 0.0
        %482 = vmatprep.mubr.f32.mxu0 0.0
        %483 = vmatmul.mubr.f32.gmra.mrb[0].mxu0 %v416
        %v484 = vpop.f32.mrb[0].mxu0
        %v485 = vadd.f32 %v412, %v484
        %v486 = vpop.f32.mrb[0].mxu0
        %487 = vdwg.mxu0
        %v488 = vmul.f32 %v485, 0.25
        %v489 = vld [vmem:[%s5] sm:$0xff]
        %v490 = vld [vmem:[%s5 + $0x8] sm:$0xff]
        %v491 = vld [vmem:[%s5 + $0x10] sm:$0xff]
        %v492 = vld [vmem:[%s5 + $0x18] sm:$0xff]
        %v493 = vld [vmem:[%s6] sm:$0x1]
        %v495 = vlaneseq
        %v496 = vshrl.u32 %v495, 7
        %v497 = vsub.s32 0, %v496
        %v498 = vrot.slane %v493, %v497
        %v501 = vsel %vm414, %v401, 0
        %503 = vmatprep.subr.mxu0 0.0
        %504 = vmatpush1.msra.mxu0 %v489
        %505 = vmatprep.subr.mxu0 0.0
        %506 = vmatpush1.msra.mxu0 %v490
        %507 = vmatprep.subr.mxu0 0.0
        %508 = vmatpush1.msra.mxu0 %v491
        %509 = vmatprep.subr.mxu0 0.0
        %510 = vmatpush1.msra.mxu0 %v492
        %511 = vmatprep.subr.mxu0 0.0
        %512 = vmatpush1.msra.mxu0 0.0
        %513 = vmatprep.subr.mxu0 0.0
        %514 = vmatpush1.msra.mxu0 0.0
        %515 = vmatprep.subr.mxu0 0.0
        %516 = vmatpush1.msra.mxu0 0.0
        %517 = vmatprep.subr.mxu0 0.0
        %518 = vmatpush1.msra.mxu0 0.0
        %519 = vmatprep.subr.mxu0 0.0
        %520 = vmatpush1.msra.mxu0 0.0
        %521 = vmatprep.subr.mxu0 0.0
        %522 = vmatpush1.msra.mxu0 0.0
        %523 = vmatprep.subr.mxu0 0.0
        %524 = vmatpush1.msra.mxu0 0.0
        %525 = vmatprep.subr.mxu0 0.0
        %526 = vmatpush1.msra.mxu0 0.0
        %527 = vmatprep.subr.mxu0 0.0
        %528 = vmatpush1.msra.mxu0 0.0
        %529 = vmatprep.subr.mxu0 0.0
        %530 = vmatpush1.msra.mxu0 0.0
        %531 = vmatprep.subr.mxu0 0.0
        %532 = vmatpush1.msra.mxu0 0.0
        %533 = vmatprep.subr.mxu0 0.0
        %534 = vmatpush1.msra.mxu0 0.0
        %535 = vmatprep.subr.mxu0 0.0
        %536 = vmatpush1.msra.mxu0 0.0
        %537 = vmatprep.subr.mxu0 0.0
        %538 = vmatpush1.msra.mxu0 0.0
        %539 = vmatprep.subr.mxu0 0.0
        %540 = vmatpush1.msra.mxu0 0.0
        %541 = vmatprep.subr.mxu0 0.0
        %542 = vmatpush1.msra.mxu0 0.0
        %543 = vmatprep.subr.mxu0 0.0
        %544 = vmatpush1.msra.mxu0 0.0
        %545 = vmatprep.subr.mxu0 0.0
        %546 = vmatpush1.msra.mxu0 0.0
        %547 = vmatprep.subr.mxu0 0.0
        %548 = vmatpush1.msra.mxu0 0.0
        %549 = vmatprep.subr.mxu0 0.0
        %550 = vmatpush1.msra.mxu0 0.0
        %551 = vmatprep.subr.mxu0 0.0
        %552 = vmatpush1.msra.mxu0 0.0
        %553 = vmatprep.subr.mxu0 0.0
        %554 = vmatpush1.msra.mxu0 0.0
        %555 = vmatprep.subr.mxu0 0.0
        %556 = vmatpush1.msra.mxu0 0.0
        %557 = vmatprep.subr.mxu0 0.0
        %558 = vmatpush1.msra.mxu0 0.0
        %559 = vmatprep.subr.mxu0 0.0
        %560 = vmatpush1.msra.mxu0 0.0
        %561 = vmatprep.subr.mxu0 0.0
        %562 = vmatpush1.msra.mxu0 0.0
        %563 = vmatprep.subr.mxu0 0.0
        %564 = vmatpush1.msra.mxu0 0.0
        %565 = vmatprep.subr.mxu0 0.0
        %566 = vmatpush1.msra.mxu0 0.0
        %567 = vmatprep.mubr.f32.mxu0 0.0
        %568 = vmatmul.mubr.f32.gmra.mrb[0].mxu0 %v501
        %v569 = vpop.f32.mrb[0].mxu0
        %v570 = vadd.f32 %v498, %v569
        %v571 = vpop.f32.mrb[0].mxu0
        %572 = vdwg.mxu0
        %vm573 = vcmask 130048
        %v575 = vsel %vm573, %v488, 0
        %v578 = vsel %vm573, %v570, 0
        %580 = vmatprep.subr.mxu0 0.0
        %581 = vmatpush1.xpose.msra.mxu0 %v578
        %582 = vmatprep.subr.mxu0 0.0
        %583 = vmatpush1.xpose.msra.mxu0 0.0
        %584 = vmatprep.subr.mxu0 0.0
        %585 = vmatpush1.xpose.msra.mxu0 0.0
        %586 = vmatprep.subr.mxu0 0.0
        %587 = vmatpush1.xpose.msra.mxu0 0.0
        %588 = vmatprep.subr.mxu0 0.0
        %589 = vmatpush1.xpose.msra.mxu0 0.0
        %590 = vmatprep.subr.mxu0 0.0
        %591 = vmatpush1.xpose.msra.mxu0 0.0
        %592 = vmatprep.subr.mxu0 0.0
        %593 = vmatpush1.xpose.msra.mxu0 0.0
        %594 = vmatprep.subr.mxu0 0.0
        %595 = vmatpush1.xpose.msra.mxu0 0.0
        %596 = vmatprep.subr.mxu0 0.0
        %597 = vmatpush1.xpose.msra.mxu0 0.0
        %598 = vmatprep.subr.mxu0 0.0
        %599 = vmatpush1.xpose.msra.mxu0 0.0
        %600 = vmatprep.subr.mxu0 0.0
        %601 = vmatpush1.xpose.msra.mxu0 0.0
        %602 = vmatprep.subr.mxu0 0.0
        %603 = vmatpush1.xpose.msra.mxu0 0.0
        %604 = vmatprep.subr.mxu0 0.0
        %605 = vmatpush1.xpose.msra.mxu0 0.0
        %606 = vmatprep.subr.mxu0 0.0
        %607 = vmatpush1.xpose.msra.mxu0 0.0
        %608 = vmatprep.subr.mxu0 0.0
        %609 = vmatpush1.xpose.msra.mxu0 0.0
        %610 = vmatprep.subr.mxu0 0.0
        %611 = vmatpush1.xpose.msra.mxu0 0.0
        %612 = vmatprep.subr.mxu0 0.0
        %613 = vmatpush1.xpose.msra.mxu0 0.0
        %614 = vmatprep.subr.mxu0 0.0
        %615 = vmatpush1.xpose.msra.mxu0 0.0
        %616 = vmatprep.subr.mxu0 0.0
        %617 = vmatpush1.xpose.msra.mxu0 0.0
        %618 = vmatprep.subr.mxu0 0.0
        %619 = vmatpush1.xpose.msra.mxu0 0.0
        %620 = vmatprep.subr.mxu0 0.0
        %621 = vmatpush1.xpose.msra.mxu0 0.0
        %622 = vmatprep.subr.mxu0 0.0
        %623 = vmatpush1.xpose.msra.mxu0 0.0
        %624 = vmatprep.subr.mxu0 0.0
        %625 = vmatpush1.xpose.msra.mxu0 0.0
        %626 = vmatprep.subr.mxu0 0.0
        %627 = vmatpush1.xpose.msra.mxu0 0.0
        %628 = vmatprep.subr.mxu0 0.0
        %629 = vmatpush1.xpose.msra.mxu0 0.0
        %630 = vmatprep.subr.mxu0 0.0
        %631 = vmatpush1.xpose.msra.mxu0 0.0
        %632 = vmatprep.subr.mxu0 0.0
        %633 = vmatpush1.xpose.msra.mxu0 0.0
        %634 = vmatprep.subr.mxu0 0.0
        %635 = vmatpush1.xpose.msra.mxu0 0.0
        %636 = vmatprep.subr.mxu0 0.0
        %637 = vmatpush1.xpose.msra.mxu0 0.0
        %638 = vmatprep.subr.mxu0 0.0
        %639 = vmatpush1.xpose.msra.mxu0 0.0
        %640 = vmatprep.subr.mxu0 0.0
        %641 = vmatpush1.xpose.msra.mxu0 0.0
        %642 = vmatprep.subr.mxu0 0.0
        %643 = vmatpush1.xpose.msra.mxu0 0.0
        %644 = vmatprep.mubr.f32.mxu0 0.0
        %645 = vmatmul.mubr.f32.gmra.mrb[0].mxu0 %v575
        %v646 = vpop.f32.mrb[0].mxu0
        %v647 = vadd.f32 %v402, %v646
        %v648 = vpop.f32.mrb[0].mxu0
        %649 = vdwg.mxu0
        %vm650 = vcmask 64512
        %v651 = vsel %vm650, %v647, -inf
        %652 = vmax.xlane.f32.xlu0 %v651
        %v653 = vpop.xlane.xlu0 %652
        %v654 = vsub.f32 %v647, %v653
        %v655 = vmul.f32 %v654, 1.442695
        %v656 = vpow.pop %v655
        %v657 = vsel %vm650, %v656, 0.0
        %658 = vadd.xlane.f32.xlu0 %v657
        %v659 = vpop.xlane.xlu0 %658
        %v660 = vrcp.pop %v659
        %v661 = vmul.f32 %v656, %v660
        %662 = vst.msk [vmem:[%s383] sm:$0xff] %vm650, %v661
        %663 = vrot.lane.b32.xlu0 %v570, 64
        %v664 = vpop.permute.xlu0 %663
        %v667 = vsel %vm650, %v661, 0
        %669 = vmatprep.subr.mxu0 0.0
        %670 = vmatpush1.msra.mxu0 %v664
        %671 = vmatprep.subr.mxu0 0.0
        %672 = vmatpush1.msra.mxu0 0.0
        %673 = vmatprep.subr.mxu0 0.0
        %674 = vmatpush1.msra.mxu0 0.0
        %675 = vmatprep.subr.mxu0 0.0
        %676 = vmatpush1.msra.mxu0 0.0
        %677 = vmatprep.subr.mxu0 0.0
        %678 = vmatpush1.msra.mxu0 0.0
        %679 = vmatprep.subr.mxu0 0.0
        %680 = vmatpush1.msra.mxu0 0.0
        %681 = vmatprep.subr.mxu0 0.0
        %682 = vmatpush1.msra.mxu0 0.0
        %683 = vmatprep.subr.mxu0 0.0
        %684 = vmatpush1.msra.mxu0 0.0
        %685 = vmatprep.subr.mxu0 0.0
        %686 = vmatpush1.msra.mxu0 0.0
        %687 = vmatprep.subr.mxu0 0.0
        %688 = vmatpush1.msra.mxu0 0.0
        %689 = vmatprep.subr.mxu0 0.0
        %690 = vmatpush1.msra.mxu0 0.0
        %691 = vmatprep.subr.mxu0 0.0
        %692 = vmatpush1.msra.mxu0 0.0
        %693 = vmatprep.subr.mxu0 0.0
        %694 = vmatpush1.msra.mxu0 0.0
        %695 = vmatprep.subr.mxu0 0.0
        %696 = vmatpush1.msra.mxu0 0.0
        %697 = vmatprep.subr.mxu0 0.0
        %698 = vmatpush1.msra.mxu0 0.0
        %699 = vmatprep.subr.mxu0 0.0
        %700 = vmatpush1.msra.mxu0 0.0
        %701 = vmatprep.subr.mxu0 0.0
        %702 = vmatpush1.msra.mxu0 0.0
        %703 = vmatprep.subr.mxu0 0.0
        %704 = vmatpush1.msra.mxu0 0.0
        %705 = vmatprep.subr.mxu0 0.0
        %706 = vmatpush1.msra.mxu0 0.0
        %707 = vmatprep.subr.mxu0 0.0
        %708 = vmatpush1.msra.mxu0 0.0
        %709 = vmatprep.subr.mxu0 0.0
        %710 = vmatpush1.msra.mxu0 0.0
        %711 = vmatprep.subr.mxu0 0.0
        %712 = vmatpush1.msra.mxu0 0.0
        %713 = vmatprep.subr.mxu0 0.0
        %714 = vmatpush1.msra.mxu0 0.0
        %715 = vmatprep.subr.mxu0 0.0
        %716 = vmatpush1.msra.mxu0 0.0
        %717 = vmatprep.subr.mxu0 0.0
        %718 = vmatpush1.msra.mxu0 0.0
        %719 = vmatprep.subr.mxu0 0.0
        %720 = vmatpush1.msra.mxu0 0.0
        %721 = vmatprep.subr.mxu0 0.0
        %722 = vmatpush1.msra.mxu0 0.0
        %723 = vmatprep.subr.mxu0 0.0
        %724 = vmatpush1.msra.mxu0 0.0
        %725 = vmatprep.subr.mxu0 0.0
        %726 = vmatpush1.msra.mxu0 0.0
        %727 = vmatprep.subr.mxu0 0.0
        %728 = vmatpush1.msra.mxu0 0.0
        %729 = vmatprep.subr.mxu0 0.0
        %730 = vmatpush1.msra.mxu0 0.0
        %731 = vmatprep.subr.mxu0 0.0
        %732 = vmatpush1.msra.mxu0 0.0
        %733 = vmatprep.mubr.f32.mxu0 0.0
        %734 = vmatmul.mubr.f32.gmra.mrb[0].mxu0 %v667
        %v735 = vpop.f32.mrb[0].mxu0
        %v736 = vadd.f32 0.0, %v735
        %v737 = vpop.f32.mrb[0].mxu0
        %738 = vdwg.mxu0
        %739 = vrot.lane.b32.xlu0 %v488, 112
        %v740 = vpop.permute.xlu0 %739
        %741 = vrot.lane.b32.xlu0 %v570, 112
        %v742 = vpop.permute.xlu0 %741
        %v743 = vsel %vm573, %v740, 0
        %v745 = vsel %vm573, %v742, 0
        %747 = vmatprep.subr.mxu0 0.0
        %748 = vmatpush1.xpose.msra.mxu0 %v745
        %749 = vmatprep.subr.mxu0 0.0
        %750 = vmatpush1.xpose.msra.mxu0 0.0
        %751 = vmatprep.subr.mxu0 0.0
        %752 = vmatpush1.xpose.msra.mxu0 0.0
        %753 = vmatprep.subr.mxu0 0.0
        %754 = vmatpush1.xpose.msra.mxu0 0.0
        %755 = vmatprep.subr.mxu0 0.0
        %756 = vmatpush1.xpose.msra.mxu0 0.0
        %757 = vmatprep.subr.mxu0 0.0
        %758 = vmatpush1.xpose.msra.mxu0 0.0
        %759 = vmatprep.subr.mxu0 0.0
        %760 = vmatpush1.xpose.msra.mxu0 0.0
        %761 = vmatprep.subr.mxu0 0.0
        %762 = vmatpush1.xpose.msra.mxu0 0.0
        %763 = vmatprep.subr.mxu0 0.0
        %764 = vmatpush1.xpose.msra.mxu0 0.0
        %765 = vmatprep.subr.mxu0 0.0
        %766 = vmatpush1.xpose.msra.mxu0 0.0
        %767 = vmatprep.subr.mxu0 0.0
        %768 = vmatpush1.xpose.msra.mxu0 0.0
        %769 = vmatprep.subr.mxu0 0.0
        %770 = vmatpush1.xpose.msra.mxu0 0.0
        %771 = vmatprep.subr.mxu0 0.0
        %772 = vmatpush1.xpose.msra.mxu0 0.0
        %773 = vmatprep.subr.mxu0 0.0
        %774 = vmatpush1.xpose.msra.mxu0 0.0
        %775 = vmatprep.subr.mxu0 0.0
        %776 = vmatpush1.xpose.msra.mxu0 0.0
        %777 = vmatprep.subr.mxu0 0.0
        %778 = vmatpush1.xpose.msra.mxu0 0.0
        %779 = vmatprep.subr.mxu0 0.0
        %780 = vmatpush1.xpose.msra.mxu0 0.0
        %781 = vmatprep.subr.mxu0 0.0
        %782 = vmatpush1.xpose.msra.mxu0 0.0
        %783 = vmatprep.subr.mxu0 0.0
        %784 = vmatpush1.xpose.msra.mxu0 0.0
        %785 = vmatprep.subr.mxu0 0.0
        %786 = vmatpush1.xpose.msra.mxu0 0.0
        %787 = vmatprep.subr.mxu0 0.0
        %788 = vmatpush1.xpose.msra.mxu0 0.0
        %789 = vmatprep.subr.mxu0 0.0
        %790 = vmatpush1.xpose.msra.mxu0 0.0
        %791 = vmatprep.subr.mxu0 0.0
        %792 = vmatpush1.xpose.msra.mxu0 0.0
        %793 = vmatprep.subr.mxu0 0.0
        %794 = vmatpush1.xpose.msra.mxu0 0.0
        %795 = vmatprep.subr.mxu0 0.0
        %796 = vmatpush1.xpose.msra.mxu0 0.0
        %797 = vmatprep.subr.mxu0 0.0
        %798 = vmatpush1.xpose.msra.mxu0 0.0
        %799 = vmatprep.subr.mxu0 0.0
        %800 = vmatpush1.xpose.msra.mxu0 0.0
        %801 = vmatprep.subr.mxu0 0.0
        %802 = vmatpush1.xpose.msra.mxu0 0.0
        %803 = vmatprep.subr.mxu0 0.0
        %804 = vmatpush1.xpose.msra.mxu0 0.0
        %805 = vmatprep.subr.mxu0 0.0
        %806 = vmatpush1.xpose.msra.mxu0 0.0
        %807 = vmatprep.subr.mxu0 0.0
        %808 = vmatpush1.xpose.msra.mxu0 0.0
        %809 = vmatprep.subr.mxu0 0.0
        %810 = vmatpush1.xpose.msra.mxu0 0.0
        %811 = vmatprep.mubr.f32.mxu0 0.0
        %812 = vmatmul.mubr.f32.gmra.mrb[0].mxu0 %v743
        %v813 = vpop.f32.mrb[0].mxu0
        %v814 = vadd.f32 %v402, %v813
        %v815 = vpop.f32.mrb[0].mxu0
        %816 = vdwg.mxu0
        %v817 = vsel %vm650, %v814, -inf
        %818 = vmax.xlane.f32.xlu0 %v817
        %v819 = vpop.xlane.xlu0 %818
        %v820 = vsub.f32 %v814, %v819
        %v821 = vmul.f32 %v820, 1.442695
        %v822 = vpow.pop %v821
        %v823 = vsel %vm650, %v822, 0.0
        %824 = vadd.xlane.f32.xlu0 %v823
        %v825 = vpop.xlane.xlu0 %824
        %v826 = vrcp.pop %v825
        %v827 = vmul.f32 %v822, %v826
        %s828 = scalar_lea.vmem %s383, 8 [#allocation2]
        %829 = vst.msk [vmem:[%s828] sm:$0xff] %vm650, %v827
        %830 = vrot.lane.b32.xlu0 %v570, 48
        %v831 = vpop.permute.xlu0 %830
        %v834 = vsel %vm650, %v827, 0
        %836 = vmatprep.subr.mxu0 0.0
        %837 = vmatpush1.msra.mxu0 %v831
        %838 = vmatprep.subr.mxu0 0.0
        %839 = vmatpush1.msra.mxu0 0.0
        %840 = vmatprep.subr.mxu0 0.0
        %841 = vmatpush1.msra.mxu0 0.0
        %842 = vmatprep.subr.mxu0 0.0
        %843 = vmatpush1.msra.mxu0 0.0
        %844 = vmatprep.subr.mxu0 0.0
        %845 = vmatpush1.msra.mxu0 0.0
        %846 = vmatprep.subr.mxu0 0.0
        %847 = vmatpush1.msra.mxu0 0.0
        %848 = vmatprep.subr.mxu0 0.0
        %849 = vmatpush1.msra.mxu0 0.0
        %850 = vmatprep.subr.mxu0 0.0
        %851 = vmatpush1.msra.mxu0 0.0
        %852 = vmatprep.subr.mxu0 0.0
        %853 = vmatpush1.msra.mxu0 0.0
        %854 = vmatprep.subr.mxu0 0.0
        %855 = vmatpush1.msra.mxu0 0.0
        %856 = vmatprep.subr.mxu0 0.0
        %857 = vmatpush1.msra.mxu0 0.0
        %858 = vmatprep.subr.mxu0 0.0
        %859 = vmatpush1.msra.mxu0 0.0
        %860 = vmatprep.subr.mxu0 0.0
        %861 = vmatpush1.msra.mxu0 0.0
        %862 = vmatprep.subr.mxu0 0.0
        %863 = vmatpush1.msra.mxu0 0.0
        %864 = vmatprep.subr.mxu0 0.0
        %865 = vmatpush1.msra.mxu0 0.0
        %866 = vmatprep.subr.mxu0 0.0
        %867 = vmatpush1.msra.mxu0 0.0
        %868 = vmatprep.subr.mxu0 0.0
        %869 = vmatpush1.msra.mxu0 0.0
        %870 = vmatprep.subr.mxu0 0.0
        %871 = vmatpush1.msra.mxu0 0.0
        %872 = vmatprep.subr.mxu0 0.0
        %873 = vmatpush1.msra.mxu0 0.0
        %874 = vmatprep.subr.mxu0 0.0
        %875 = vmatpush1.msra.mxu0 0.0
        %876 = vmatprep.subr.mxu0 0.0
        %877 = vmatpush1.msra.mxu0 0.0
        %878 = vmatprep.subr.mxu0 0.0
        %879 = vmatpush1.msra.mxu0 0.0
        %880 = vmatprep.subr.mxu0 0.0
        %881 = vmatpush1.msra.mxu0 0.0
        %882 = vmatprep.subr.mxu0 0.0
        %883 = vmatpush1.msra.mxu0 0.0
        %884 = vmatprep.subr.mxu0 0.0
        %885 = vmatpush1.msra.mxu0 0.0
        %886 = vmatprep.subr.mxu0 0.0
        %887 = vmatpush1.msra.mxu0 0.0
        %888 = vmatprep.subr.mxu0 0.0
        %889 = vmatpush1.msra.mxu0 0.0
        %890 = vmatprep.subr.mxu0 0.0
        %891 = vmatpush1.msra.mxu0 0.0
        %892 = vmatprep.subr.mxu0 0.0
        %893 = vmatpush1.msra.mxu0 0.0
        %894 = vmatprep.subr.mxu0 0.0
        %895 = vmatpush1.msra.mxu0 0.0
        %896 = vmatprep.subr.mxu0 0.0
        %897 = vmatpush1.msra.mxu0 0.0
        %898 = vmatprep.subr.mxu0 0.0
        %899 = vmatpush1.msra.mxu0 0.0
        %900 = vmatprep.mubr.f32.mxu0 0.0
        %901 = vmatmul.mubr.f32.gmra.mrb[0].mxu0 %v834
        %v902 = vpop.f32.mrb[0].mxu0
        %v903 = vadd.f32 0.0, %v902
        %v904 = vpop.f32.mrb[0].mxu0
        %905 = vdwg.mxu0
        %906 = vrot.lane.b32.xlu0 %v488, 96
        %v907 = vpop.permute.xlu0 %906
        %908 = vrot.lane.b32.xlu0 %v570, 96
        %v909 = vpop.permute.xlu0 %908
        %v910 = vsel %vm573, %v907, 0
        %v912 = vsel %vm573, %v909, 0
        %914 = vmatprep.subr.mxu0 0.0
        %915 = vmatpush1.xpose.msra.mxu0 %v912
        %916 = vmatprep.subr.mxu0 0.0
        %917 = vmatpush1.xpose.msra.mxu0 0.0
        %918 = vmatprep.subr.mxu0 0.0
        %919 = vmatpush1.xpose.msra.mxu0 0.0
        %920 = vmatprep.subr.mxu0 0.0
        %921 = vmatpush1.xpose.msra.mxu0 0.0
        %922 = vmatprep.subr.mxu0 0.0
        %923 = vmatpush1.xpose.msra.mxu0 0.0
        %924 = vmatprep.subr.mxu0 0.0
        %925 = vmatpush1.xpose.msra.mxu0 0.0
        %926 = vmatprep.subr.mxu0 0.0
        %927 = vmatpush1.xpose.msra.mxu0 0.0
        %928 = vmatprep.subr.mxu0 0.0
        %929 = vmatpush1.xpose.msra.mxu0 0.0
        %930 = vmatprep.subr.mxu0 0.0
        %931 = vmatpush1.xpose.msra.mxu0 0.0
        %932 = vmatprep.subr.mxu0 0.0
        %933 = vmatpush1.xpose.msra.mxu0 0.0
        %934 = vmatprep.subr.mxu0 0.0
        %935 = vmatpush1.xpose.msra.mxu0 0.0
        %936 = vmatprep.subr.mxu0 0.0
        %937 = vmatpush1.xpose.msra.mxu0 0.0
        %938 = vmatprep.subr.mxu0 0.0
        %939 = vmatpush1.xpose.msra.mxu0 0.0
        %940 = vmatprep.subr.mxu0 0.0
        %941 = vmatpush1.xpose.msra.mxu0 0.0
        %942 = vmatprep.subr.mxu0 0.0
        %943 = vmatpush1.xpose.msra.mxu0 0.0
        %944 = vmatprep.subr.mxu0 0.0
        %945 = vmatpush1.xpose.msra.mxu0 0.0
        %946 = vmatprep.subr.mxu0 0.0
        %947 = vmatpush1.xpose.msra.mxu0 0.0
        %948 = vmatprep.subr.mxu0 0.0
        %949 = vmatpush1.xpose.msra.mxu0 0.0
        %950 = vmatprep.subr.mxu0 0.0
        %951 = vmatpush1.xpose.msra.mxu0 0.0
        %952 = vmatprep.subr.mxu0 0.0
        %953 = vmatpush1.xpose.msra.mxu0 0.0
        %954 = vmatprep.subr.mxu0 0.0
        %955 = vmatpush1.xpose.msra.mxu0 0.0
        %956 = vmatprep.subr.mxu0 0.0
        %957 = vmatpush1.xpose.msra.mxu0 0.0
        %958 = vmatprep.subr.mxu0 0.0
        %959 = vmatpush1.xpose.msra.mxu0 0.0
        %960 = vmatprep.subr.mxu0 0.0
        %961 = vmatpush1.xpose.msra.mxu0 0.0
        %962 = vmatprep.subr.mxu0 0.0
        %963 = vmatpush1.xpose.msra.mxu0 0.0
        %964 = vmatprep.subr.mxu0 0.0
        %965 = vmatpush1.xpose.msra.mxu0 0.0
        %966 = vmatprep.subr.mxu0 0.0
        %967 = vmatpush1.xpose.msra.mxu0 0.0
        %968 = vmatprep.subr.mxu0 0.0
        %969 = vmatpush1.xpose.msra.mxu0 0.0
        %970 = vmatprep.subr.mxu0 0.0
        %971 = vmatpush1.xpose.msra.mxu0 0.0
        %972 = vmatprep.subr.mxu0 0.0
        %973 = vmatpush1.xpose.msra.mxu0 0.0
        %974 = vmatprep.subr.mxu0 0.0
        %975 = vmatpush1.xpose.msra.mxu0 0.0
        %976 = vmatprep.subr.mxu0 0.0
        %977 = vmatpush1.xpose.msra.mxu0 0.0
        %978 = vmatprep.mubr.f32.mxu0 0.0
        %979 = vmatmul.mubr.f32.gmra.mrb[0].mxu0 %v910
        %v980 = vpop.f32.mrb[0].mxu0
        %v981 = vadd.f32 %v402, %v980
        %v982 = vpop.f32.mrb[0].mxu0
        %983 = vdwg.mxu0
        %v984 = vsel %vm650, %v981, -inf
        %985 = vmax.xlane.f32.xlu0 %v984
        %v986 = vpop.xlane.xlu0 %985
        %v987 = vsub.f32 %v981, %v986
        %v988 = vmul.f32 %v987, 1.442695
        %v989 = vpow.pop %v988
        %v990 = vsel %vm650, %v989, 0.0
        %991 = vadd.xlane.f32.xlu0 %v990
        %v992 = vpop.xlane.xlu0 %991
        %v993 = vrcp.pop %v992
        %v994 = vmul.f32 %v989, %v993
        %s995 = scalar_lea.vmem %s383, 16 [#allocation2]
        %996 = vst.msk [vmem:[%s995] sm:$0xff] %vm650, %v994
        %997 = vrot.lane.b32.xlu0 %v570, 32
        %v998 = vpop.permute.xlu0 %997
        %v1001 = vsel %vm650, %v994, 0
        %1003 = vmatprep.subr.mxu0 0.0
        %1004 = vmatpush1.msra.mxu0 %v998
        %1005 = vmatprep.subr.mxu0 0.0
        %1006 = vmatpush1.msra.mxu0 0.0
        %1007 = vmatprep.subr.mxu0 0.0
        %1008 = vmatpush1.msra.mxu0 0.0
        %1009 = vmatprep.subr.mxu0 0.0
        %1010 = vmatpush1.msra.mxu0 0.0
        %1011 = vmatprep.subr.mxu0 0.0
        %1012 = vmatpush1.msra.mxu0 0.0
        %1013 = vmatprep.subr.mxu0 0.0
        %1014 = vmatpush1.msra.mxu0 0.0
        %1015 = vmatprep.subr.mxu0 0.0
        %1016 = vmatpush1.msra.mxu0 0.0
        %1017 = vmatprep.subr.mxu0 0.0
        %1018 = vmatpush1.msra.mxu0 0.0
        %1019 = vmatprep.subr.mxu0 0.0
        %1020 = vmatpush1.msra.mxu0 0.0
        %1021 = vmatprep.subr.mxu0 0.0
        %1022 = vmatpush1.msra.mxu0 0.0
        %1023 = vmatprep.subr.mxu0 0.0
        %1024 = vmatpush1.msra.mxu0 0.0
        %1025 = vmatprep.subr.mxu0 0.0
        %1026 = vmatpush1.msra.mxu0 0.0
        %1027 = vmatprep.subr.mxu0 0.0
        %1028 = vmatpush1.msra.mxu0 0.0
        %1029 = vmatprep.subr.mxu0 0.0
        %1030 = vmatpush1.msra.mxu0 0.0
        %1031 = vmatprep.subr.mxu0 0.0
        %1032 = vmatpush1.msra.mxu0 0.0
        %1033 = vmatprep.subr.mxu0 0.0
        %1034 = vmatpush1.msra.mxu0 0.0
        %1035 = vmatprep.subr.mxu0 0.0
        %1036 = vmatpush1.msra.mxu0 0.0
        %1037 = vmatprep.subr.mxu0 0.0
        %1038 = vmatpush1.msra.mxu0 0.0
        %1039 = vmatprep.subr.mxu0 0.0
        %1040 = vmatpush1.msra.mxu0 0.0
        %1041 = vmatprep.subr.mxu0 0.0
        %1042 = vmatpush1.msra.mxu0 0.0
        %1043 = vmatprep.subr.mxu0 0.0
        %1044 = vmatpush1.msra.mxu0 0.0
        %1045 = vmatprep.subr.mxu0 0.0
        %1046 = vmatpush1.msra.mxu0 0.0
        %1047 = vmatprep.subr.mxu0 0.0
        %1048 = vmatpush1.msra.mxu0 0.0
        %1049 = vmatprep.subr.mxu0 0.0
        %1050 = vmatpush1.msra.mxu0 0.0
        %1051 = vmatprep.subr.mxu0 0.0
        %1052 = vmatpush1.msra.mxu0 0.0
        %1053 = vmatprep.subr.mxu0 0.0
        %1054 = vmatpush1.msra.mxu0 0.0
        %1055 = vmatprep.subr.mxu0 0.0
        %1056 = vmatpush1.msra.mxu0 0.0
        %1057 = vmatprep.subr.mxu0 0.0
        %1058 = vmatpush1.msra.mxu0 0.0
        %1059 = vmatprep.subr.mxu0 0.0
        %1060 = vmatpush1.msra.mxu0 0.0
        %1061 = vmatprep.subr.mxu0 0.0
        %1062 = vmatpush1.msra.mxu0 0.0
        %1063 = vmatprep.subr.mxu0 0.0
        %1064 = vmatpush1.msra.mxu0 0.0
        %1065 = vmatprep.subr.mxu0 0.0
        %1066 = vmatpush1.msra.mxu0 0.0
        %1067 = vmatprep.mubr.f32.mxu0 0.0
        %1068 = vmatmul.mubr.f32.gmra.mrb[0].mxu0 %v1001
        %v1069 = vpop.f32.mrb[0].mxu0
        %v1070 = vadd.f32 0.0, %v1069
        %v1071 = vpop.f32.mrb[0].mxu0
        %1072 = vdwg.mxu0
        %1073 = vrot.lane.b32.xlu0 %v488, 80
        %v1074 = vpop.permute.xlu0 %1073
        %1075 = vrot.lane.b32.xlu0 %v570, 80
        %v1076 = vpop.permute.xlu0 %1075
        %v1077 = vsel %vm573, %v1074, 0
        %v1079 = vsel %vm573, %v1076, 0
        %1081 = vmatprep.subr.mxu0 0.0
        %1082 = vmatpush1.xpose.msra.mxu0 %v1079
        %1083 = vmatprep.subr.mxu0 0.0
        %1084 = vmatpush1.xpose.msra.mxu0 0.0
        %1085 = vmatprep.subr.mxu0 0.0
        %1086 = vmatpush1.xpose.msra.mxu0 0.0
        %1087 = vmatprep.subr.mxu0 0.0
        %1088 = vmatpush1.xpose.msra.mxu0 0.0
        %1089 = vmatprep.subr.mxu0 0.0
        %1090 = vmatpush1.xpose.msra.mxu0 0.0
        %1091 = vmatprep.subr.mxu0 0.0
        %1092 = vmatpush1.xpose.msra.mxu0 0.0
        %1093 = vmatprep.subr.mxu0 0.0
        %1094 = vmatpush1.xpose.msra.mxu0 0.0
        %1095 = vmatprep.subr.mxu0 0.0
        %1096 = vmatpush1.xpose.msra.mxu0 0.0
        %1097 = vmatprep.subr.mxu0 0.0
        %1098 = vmatpush1.xpose.msra.mxu0 0.0
        %1099 = vmatprep.subr.mxu0 0.0
        %1100 = vmatpush1.xpose.msra.mxu0 0.0
        %1101 = vmatprep.subr.mxu0 0.0
        %1102 = vmatpush1.xpose.msra.mxu0 0.0
        %1103 = vmatprep.subr.mxu0 0.0
        %1104 = vmatpush1.xpose.msra.mxu0 0.0
        %1105 = vmatprep.subr.mxu0 0.0
        %1106 = vmatpush1.xpose.msra.mxu0 0.0
        %1107 = vmatprep.subr.mxu0 0.0
        %1108 = vmatpush1.xpose.msra.mxu0 0.0
        %1109 = vmatprep.subr.mxu0 0.0
        %1110 = vmatpush1.xpose.msra.mxu0 0.0
        %1111 = vmatprep.subr.mxu0 0.0
        %1112 = vmatpush1.xpose.msra.mxu0 0.0
        %1113 = vmatprep.subr.mxu0 0.0
        %1114 = vmatpush1.xpose.msra.mxu0 0.0
        %1115 = vmatprep.subr.mxu0 0.0
        %1116 = vmatpush1.xpose.msra.mxu0 0.0
        %1117 = vmatprep.subr.mxu0 0.0
        %1118 = vmatpush1.xpose.msra.mxu0 0.0
        %1119 = vmatprep.subr.mxu0 0.0
        %1120 = vmatpush1.xpose.msra.mxu0 0.0
        %1121 = vmatprep.subr.mxu0 0.0
        %1122 = vmatpush1.xpose.msra.mxu0 0.0
        %1123 = vmatprep.subr.mxu0 0.0
        %1124 = vmatpush1.xpose.msra.mxu0 0.0
        %1125 = vmatprep.subr.mxu0 0.0
        %1126 = vmatpush1.xpose.msra.mxu0 0.0
        %1127 = vmatprep.subr.mxu0 0.0
        %1128 = vmatpush1.xpose.msra.mxu0 0.0
        %1129 = vmatprep.subr.mxu0 0.0
        %1130 = vmatpush1.xpose.msra.mxu0 0.0
        %1131 = vmatprep.subr.mxu0 0.0
        %1132 = vmatpush1.xpose.msra.mxu0 0.0
        %1133 = vmatprep.subr.mxu0 0.0
        %1134 = vmatpush1.xpose.msra.mxu0 0.0
        %1135 = vmatprep.subr.mxu0 0.0
        %1136 = vmatpush1.xpose.msra.mxu0 0.0
        %1137 = vmatprep.subr.mxu0 0.0
        %1138 = vmatpush1.xpose.msra.mxu0 0.0
        %1139 = vmatprep.subr.mxu0 0.0
        %1140 = vmatpush1.xpose.msra.mxu0 0.0
        %1141 = vmatprep.subr.mxu0 0.0
        %1142 = vmatpush1.xpose.msra.mxu0 0.0
        %1143 = vmatprep.subr.mxu0 0.0
        %1144 = vmatpush1.xpose.msra.mxu0 0.0
        %1145 = vmatprep.mubr.f32.mxu0 0.0
        %1146 = vmatmul.mubr.f32.gmra.mrb[0].mxu0 %v1077
        %v1147 = vpop.f32.mrb[0].mxu0
        %v1148 = vadd.f32 %v402, %v1147
        %v1149 = vpop.f32.mrb[0].mxu0
        %1150 = vdwg.mxu0
        %v1151 = vsel %vm650, %v1148, -inf
        %1152 = vmax.xlane.f32.xlu0 %v1151
        %v1153 = vpop.xlane.xlu0 %1152
        %v1154 = vsub.f32 %v1148, %v1153
        %v1155 = vmul.f32 %v1154, 1.442695
        %v1156 = vpow.pop %v1155
        %v1157 = vsel %vm650, %v1156, 0.0
        %1158 = vadd.xlane.f32.xlu0 %v1157
        %v1159 = vpop.xlane.xlu0 %1158
        %v1160 = vrcp.pop %v1159
        %v1161 = vmul.f32 %v1156, %v1160
        %s1162 = scalar_lea.vmem %s383, 24 [#allocation2]
        %1163 = vst.msk [vmem:[%s1162] sm:$0xff] %vm650, %v1161
        %1164 = vrot.lane.b32.xlu0 %v570, 16
        %v1165 = vpop.permute.xlu0 %1164
        %v1168 = vsel %vm650, %v1161, 0
        %1170 = vmatprep.subr.mxu0 0.0
        %1171 = vmatpush1.msra.mxu0 %v1165
        %1172 = vmatprep.subr.mxu0 0.0
        %1173 = vmatpush1.msra.mxu0 0.0
        %1174 = vmatprep.subr.mxu0 0.0
        %1175 = vmatpush1.msra.mxu0 0.0
        %1176 = vmatprep.subr.mxu0 0.0
        %1177 = vmatpush1.msra.mxu0 0.0
        %1178 = vmatprep.subr.mxu0 0.0
        %1179 = vmatpush1.msra.mxu0 0.0
        %1180 = vmatprep.subr.mxu0 0.0
        %1181 = vmatpush1.msra.mxu0 0.0
        %1182 = vmatprep.subr.mxu0 0.0
        %1183 = vmatpush1.msra.mxu0 0.0
        %1184 = vmatprep.subr.mxu0 0.0
        %1185 = vmatpush1.msra.mxu0 0.0
        %1186 = vmatprep.subr.mxu0 0.0
        %1187 = vmatpush1.msra.mxu0 0.0
        %1188 = vmatprep.subr.mxu0 0.0
        %1189 = vmatpush1.msra.mxu0 0.0
        %1190 = vmatprep.subr.mxu0 0.0
        %1191 = vmatpush1.msra.mxu0 0.0
        %1192 = vmatprep.subr.mxu0 0.0
        %1193 = vmatpush1.msra.mxu0 0.0
        %1194 = vmatprep.subr.mxu0 0.0
        %1195 = vmatpush1.msra.mxu0 0.0
        %1196 = vmatprep.subr.mxu0 0.0
        %1197 = vmatpush1.msra.mxu0 0.0
        %1198 = vmatprep.subr.mxu0 0.0
        %1199 = vmatpush1.msra.mxu0 0.0
        %1200 = vmatprep.subr.mxu0 0.0
        %1201 = vmatpush1.msra.mxu0 0.0
        %1202 = vmatprep.subr.mxu0 0.0
        %1203 = vmatpush1.msra.mxu0 0.0
        %1204 = vmatprep.subr.mxu0 0.0
        %1205 = vmatpush1.msra.mxu0 0.0
        %1206 = vmatprep.subr.mxu0 0.0
        %1207 = vmatpush1.msra.mxu0 0.0
        %1208 = vmatprep.subr.mxu0 0.0
        %1209 = vmatpush1.msra.mxu0 0.0
        %1210 = vmatprep.subr.mxu0 0.0
        %1211 = vmatpush1.msra.mxu0 0.0
        %1212 = vmatprep.subr.mxu0 0.0
        %1213 = vmatpush1.msra.mxu0 0.0
        %1214 = vmatprep.subr.mxu0 0.0
        %1215 = vmatpush1.msra.mxu0 0.0
        %1216 = vmatprep.subr.mxu0 0.0
        %1217 = vmatpush1.msra.mxu0 0.0
        %1218 = vmatprep.subr.mxu0 0.0
        %1219 = vmatpush1.msra.mxu0 0.0
        %1220 = vmatprep.subr.mxu0 0.0
        %1221 = vmatpush1.msra.mxu0 0.0
        %1222 = vmatprep.subr.mxu0 0.0
        %1223 = vmatpush1.msra.mxu0 0.0
        %1224 = vmatprep.subr.mxu0 0.0
        %1225 = vmatpush1.msra.mxu0 0.0
        %1226 = vmatprep.subr.mxu0 0.0
        %1227 = vmatpush1.msra.mxu0 0.0
        %1228 = vmatprep.subr.mxu0 0.0
        %1229 = vmatpush1.msra.mxu0 0.0
        %1230 = vmatprep.subr.mxu0 0.0
        %1231 = vmatpush1.msra.mxu0 0.0
        %1232 = vmatprep.subr.mxu0 0.0
        %1233 = vmatpush1.msra.mxu0 0.0
        %1234 = vmatprep.mubr.f32.mxu0 0.0
        %1235 = vmatmul.mubr.f32.gmra.mrb[0].mxu0 %v1168
        %v1236 = vpop.f32.mrb[0].mxu0
        %v1237 = vadd.f32 0.0, %v1236
        %v1238 = vpop.f32.mrb[0].mxu0
        %1239 = vdwg.mxu0
        %1241 = vrot.lane.b32.xlu0 %v903, 16
        %v1242 = vpop.permute.xlu0 %1241
        %1245 = vrot.lane.b32.xlu0 %v1070, 32
        %v1246 = vpop.permute.xlu0 %1245
        %1249 = vrot.lane.b32.xlu0 %v1237, 48
        %v1250 = vpop.permute.xlu0 %1249
        %v1252 = vsel %vm573, %v736, %v1242
        %v1253 = vsel %vm414, %v1252, %v1246
        %vm1254 = vcmask 392192
        %v1255 = vsel %vm1254, %v1253, %v1250
        %v1256 = vld [vmem:[%s7] sm:$0xff]
        %v1257 = vld [vmem:[%s7 + $0x8] sm:$0xff]
        %v1258 = vld [vmem:[%s7 + $0x10] sm:$0xff]
        %v1259 = vld [vmem:[%s7 + $0x18] sm:$0xff]
        %v1260 = vld [vmem:[%s7 + $0x20] sm:$0xff]
        %v1261 = vld [vmem:[%s7 + $0x28] sm:$0xff]
        %v1262 = vld [vmem:[%s7 + $0x30] sm:$0xff]
        %v1263 = vld [vmem:[%s7 + $0x38] sm:$0xff]
        %v1264 = vld [vmem:[%s8] sm:$0x1]
        %v1266 = vlaneseq
        %v1267 = vshrl.u32 %v1266, 7
        %v1268 = vsub.s32 0, %v1267
        %v1269 = vrot.slane %v1264, %v1268
        %vm1271 = vcmask 523264
        %v1273 = vsel %vm1271, %v1255, 0
        %1275 = vmatprep.subr.mxu0 0.0
        %1276 = vmatpush1.msra.mxu0 %v1256
        %1277 = vmatprep.subr.mxu0 0.0
        %1278 = vmatpush1.msra.mxu0 %v1257
        %1279 = vmatprep.subr.mxu0 0.0
        %1280 = vmatpush1.msra.mxu0 %v1258
        %1281 = vmatprep.subr.mxu0 0.0
        %1282 = vmatpush1.msra.mxu0 %v1259
        %1283 = vmatprep.subr.mxu0 0.0
        %1284 = vmatpush1.msra.mxu0 %v1260
        %1285 = vmatprep.subr.mxu0 0.0
        %1286 = vmatpush1.msra.mxu0 %v1261
        %1287 = vmatprep.subr.mxu0 0.0
        %1288 = vmatpush1.msra.mxu0 %v1262
        %1289 = vmatprep.subr.mxu0 0.0
        %1290 = vmatpush1.msra.mxu0 %v1263
        %1291 = vmatprep.subr.mxu0 0.0
        %1292 = vmatpush1.msra.mxu0 0.0
        %1293 = vmatprep.subr.mxu0 0.0
        %1294 = vmatpush1.msra.mxu0 0.0
        %1295 = vmatprep.subr.mxu0 0.0
        %1296 = vmatpush1.msra.mxu0 0.0
        %1297 = vmatprep.subr.mxu0 0.0
        %1298 = vmatpush1.msra.mxu0 0.0
        %1299 = vmatprep.subr.mxu0 0.0
        %1300 = vmatpush1.msra.mxu0 0.0
        %1301 = vmatprep.subr.mxu0 0.0
        %1302 = vmatpush1.msra.mxu0 0.0
        %1303 = vmatprep.subr.mxu0 0.0
        %1304 = vmatpush1.msra.mxu0 0.0
        %1305 = vmatprep.subr.mxu0 0.0
        %1306 = vmatpush1.msra.mxu0 0.0
        %1307 = vmatprep.subr.mxu0 0.0
        %1308 = vmatpush1.msra.mxu0 0.0
        %1309 = vmatprep.subr.mxu0 0.0
        %1310 = vmatpush1.msra.mxu0 0.0
        %1311 = vmatprep.subr.mxu0 0.0
        %1312 = vmatpush1.msra.mxu0 0.0
        %1313 = vmatprep.subr.mxu0 0.0
        %1314 = vmatpush1.msra.mxu0 0.0
        %1315 = vmatprep.subr.mxu0 0.0
        %1316 = vmatpush1.msra.mxu0 0.0
        %1317 = vmatprep.subr.mxu0 0.0
        %1318 = vmatpush1.msra.mxu0 0.0
        %1319 = vmatprep.subr.mxu0 0.0
        %1320 = vmatpush1.msra.mxu0 0.0
        %1321 = vmatprep.subr.mxu0 0.0
        %1322 = vmatpush1.msra.mxu0 0.0
        %1323 = vmatprep.subr.mxu0 0.0
        %1324 = vmatpush1.msra.mxu0 0.0
        %1325 = vmatprep.subr.mxu0 0.0
        %1326 = vmatpush1.msra.mxu0 0.0
        %1327 = vmatprep.subr.mxu0 0.0
        %1328 = vmatpush1.msra.mxu0 0.0
        %1329 = vmatprep.subr.mxu0 0.0
        %1330 = vmatpush1.msra.mxu0 0.0
        %1331 = vmatprep.subr.mxu0 0.0
        %1332 = vmatpush1.msra.mxu0 0.0
        %1333 = vmatprep.subr.mxu0 0.0
        %1334 = vmatpush1.msra.mxu0 0.0
        %1335 = vmatprep.subr.mxu0 0.0
        %1336 = vmatpush1.msra.mxu0 0.0
        %1337 = vmatprep.subr.mxu0 0.0
        %1338 = vmatpush1.msra.mxu0 0.0
        %1339 = vmatprep.mubr.f32.mxu0 0.0
        %1340 = vmatmul.mubr.f32.gmra.mrb[0].mxu0 %v1273
        %v1341 = vpop.f32.mrb[0].mxu0
        %v1342 = vadd.f32 %v1269, %v1341
        %v1343 = vpop.f32.mrb[0].mxu0
        %1344 = vdwg.mxu0
        %v1345 = vadd.f32 %v1342, %v400
        %v1346 = vsel %vm414, %v1345, 0.0
        %1347 = vadd.xlane.f32.xlu0 %v1346
        %v1348 = vpop.xlane.xlu0 %1347
        %v1349 = vrcp.pop 32.0
        %v1350 = vmul.f32 %v1348, %v1349
        %v1351 = vsub.f32 %v1345, %v1350
        %v1352 = vmul.f32 %v1351, %v1351
        %v1353 = vsel %vm414, %v1352, 0.0
        %1354 = vadd.xlane.f32.xlu0 %v1353
        %v1355 = vpop.xlane.xlu0 %1354
        %v1356 = vmul.f32 %v1355, %v1349
        %v1357 = vadd.f32 %v1356, 1e-05
        %v1358 = vrsqrt.pop %v1357
        %v1359 = vmul.f32 %v1351, %v1358
        %1360 = vst.msk [vmem:[%s399] sm:$0xff] %vm414, %v1359
        %p1361 = scmp.lt.s32.totalorder %s25, 1
        %s1362 = scalar_select %p1361, %s25, 1
        %s1363 = smul.addr %s1362, 8
        %s1364 = scalar_lea.vmem %s9, %s1363
        %s1365 = sand.u32 %s263, 1
        %s1366 = scalar_lea.sflag [#allocation3], %s1365
        %s1367 = sand.u32 %s263, 1
        %s1368 = smul.addr %s1367, 32
        %s1369 = scalar_lea.vmem [#allocation2], %s1368
        // Predicated region
        $region57: #{decoder_forward.7} parent=55 // pred_check
          %p1370 = pneg %p247
        $region58: #{decoder_forward.7} parent=55 // pred_check_branch
          %1372 = sbr.rel (%p1370) target = $region60
        $region59: #{decoder_forward.7} parent=55 // pred_region
          _
        $region60: #{decoder_forward.7} parent=55 // pred_fallthru
          _
        // Predicated region
        $region61: #{decoder_forward.7} parent=55 // pred_check
          %p1373 = pneg %p273
        $region62: #{decoder_forward.7} parent=55 // pred_check_branch
          %1375 = sbr.rel (%p1373) target = $region64
        $region63: #{decoder_forward.7} parent=55 // pred_region
          %s1377 = ssub.s32 512, 512
          %1378 = vsyncadd %s1366, %s1377
          %s1379 = smul.addr %s25, 4
          %s1380 = smul.addr %s1379, 128
          %s1381 = scalar_lea.hbm %s10, %s1380
          %s1382 = sshll.u32 %s1369, 4
          %s1383 = int_to_ptr.vmem [resolvable:$true] %s1382
          %1388 = dma.vmem_to_hbm [thread:$0]  %s1383, 512, %s1381, %s1366, 128, 128, 8
        $region64: #{decoder_forward.7} parent=55 // pred_fallthru
          _
      $region56: #{decoder_forward.7} parent=5 // pred_fallthru
        _
      %p1389 = scmp.le.s32.totalorder 2, %s20
      // Predicated region
      $region65: #{decoder_forward.7} parent=5 // pred_check
        %p1390 = pneg %p1389
      $region66: #{decoder_forward.7} parent=5 // pred_check_branch
        %1392 = sbr.rel (%p1390) target = $region68
      $region67: #{decoder_forward.7} parent=5 // pred_region
        %s1393 = ssub.s32 %s20, 2
        // Predicated region
        $region69: #{decoder_forward.7} parent=67 // pred_check
          %p1394 = pneg %p253
        $region70: #{decoder_forward.7} parent=67 // pred_check_branch
          %1396 = sbr.rel (%p1394) target = $region72
        $region71: #{decoder_forward.7} parent=67 // pred_region
          %p1397 = scmp.lt.s32.totalorder %s26, 1
          %s1398 = scalar_select %p1397, %s26, 1
          %s1399 = smul.addr %s1398, 8
          %s1400 = scalar_lea.vmem %s9, %s1399
        $region72: #{decoder_forward.7} parent=67 // pred_fallthru
          _
        // Predicated region
        $region73: #{decoder_forward.7} parent=67 // pred_check
          %p1401 = pneg %p279
        $region74: #{decoder_forward.7} parent=67 // pred_check_branch
          %1403 = sbr.rel (%p1401) target = $region76
        $region75: #{decoder_forward.7} parent=67 // pred_region
          %s1404 = sand.u32 %s264, 1
          %s1405 = scalar_lea.sflag [#allocation3], %s1404
          %s1406 = sand.u32 %s264, 1
          %s1407 = smul.addr %s1406, 32
          %s1408 = scalar_lea.vmem [#allocation2], %s1407
          %1409 = dma.done %s1405, 512
        $region76: #{decoder_forward.7} parent=67 // pred_fallthru
          _
      $region68: #{decoder_forward.7} parent=5 // pred_fallthru
        _
    $region6: #{decoder_forward.7} parent=1 // loop_footer
      %s24 = sadd.s32 1, %s20
    $region7: #{decoder_forward.7} parent=1 // loop_footer_branch
      %19 = sbr.rel target = $region3
    $region8: #{decoder_forward.7} parent=1 // loop_exit
      _
    %1410 = vsyncpa [#allocation3], 1
    %s1411 = scalar_lea.sflag [#allocation3], 1
    %1412 = vsyncpa %s1411, 1

</llo_original>
